<compile_context>
chip_gen: v7x
topology: tpu7x:2x2x1
jax: 0.10.0
libtpu: 0.0.40
codegen_flags: <defaults>
</compile_context>

<pallas_src>
import jax
import jax.numpy as jnp
from jax import lax
from jax.experimental import pallas as pl
from jax.experimental.pallas import tpu as pltpu

LANE = 128  # lane width: all out-channel dims are zero-padded to this


def _round_up(x, m):
    return ((x + m - 1) // m) * m


def _choose_tile(m, cap):
    """Row-tile size: multiple of 8, <= cap, minimal padding, and >= 2 grid
    steps when there is enough work (lets v7x shard rows across both TCs)."""
    m8 = _round_up(max(m, 8), 8)
    if m8 < 16:
        return m8, m8
    n_tiles = max(2, -(-m8 // cap))           # cdiv(m8, cap), at least 2
    tile = _round_up(-(-m8 // n_tiles), 8)    # balanced, multiple of 8, <= cap
    return tile, tile * n_tiles


# ------------------------------ Pallas kernels -------------------------------

def _conv_relu_pool_kernel(p_ref, w_ref, b_ref, o_ref):
    """Fused conv-as-matmul + bias + ReLU + 2x2 maxpool, taps packed in lanes.

    p_ref: (TM, Kp4)   bf16  im2col patches; the 4 pool taps occupy lane blocks
                             [t*K, (t+1)*K) (zero-padded to Kp4 = round_up(4K,128))
    w_ref: (Kp4, 512)  bf16  block-diagonal packed conv weights (resident)
    b_ref: (1, 128)    f32   packed bias (resident)
    o_ref: (TM, 128)   bf16  pooled activations, lane-dense
    """
    a = jnp.dot(p_ref[...], w_ref[...], preferred_element_type=jnp.float32)
    # tap-max on the VPU over the four 128-lane blocks of the single dot result
    m = jnp.maximum(jnp.maximum(a[:, 0 * LANE:1 * LANE], a[:, 1 * LANE:2 * LANE]),
                    jnp.maximum(a[:, 2 * LANE:3 * LANE], a[:, 3 * LANE:4 * LANE]))
    # maxpool commutes with (+bias, ReLU): max_t relu(a_t + b) == relu(max_t a_t + b)
    o_ref[...] = jnp.maximum(m + b_ref[...], 0.0).astype(o_ref.dtype)


def _fc_fused_kernel(x_ref, w1_ref, b1_ref, w2_ref, b2_ref, w3_ref, b3_ref,
                     o_ref):
    """fc1 -> ReLU -> fc2 -> ReLU -> fc3 in one kernel; weights VMEM-resident,
    intermediates never leave VMEM/vregs. The flatten is folded into fc1's
    reduction dim (3200 = 5*5*128); padded lanes carry exact zeros so the chain
    stays correct."""
    h = jnp.dot(x_ref[...], w1_ref[...], preferred_element_type=jnp.float32)
    h = jnp.maximum(h + b1_ref[...], 0.0).astype(jnp.bfloat16)   # cols >=120 are 0
    h = jnp.dot(h, w2_ref[...], preferred_element_type=jnp.float32)
    h = jnp.maximum(h + b2_ref[...], 0.0).astype(jnp.bfloat16)   # cols >=84 are 0
    h = jnp.dot(h, w3_ref[...], preferred_element_type=jnp.float32)
    o_ref[...] = h + b3_ref[...]                                  # logits in cols 0..9


# ------------------------------ kernel wrappers -------------------------------

def conv_relu_pool(x_nhwc, w_packed, b_packed, *, kh=5, kw=5, cap=1024):
    """VALID conv (stride 1) + bias + ReLU + 2x2 maxpool, channels-last.

    x_nhwc:   (N, H, W, Cin)                    (cast to bf16 before the gather)
    w_packed: (round_up(4*kh*kw*Cin,128), 512)  bf16 block-diagonal weights
    b_packed: (1, 128)                          f32 bias
    Returns (N, OH//2, OW//2, 128) bf16; valid channels in the leading lanes,
    padding lanes are exactly 0.
    """
    if x_nhwc.dtype != jnp.bfloat16:
        x_nhwc = x_nhwc.astype(jnp.bfloat16)
    N, H, W, C = x_nhwc.shape
    OH, OW = H - kh + 1, W - kw + 1
    OH2, OW2 = OH // 2, OW // 2
    M, K = N * OH2 * OW2, kh * kw * C
    kp4 = w_packed.shape[0]                    # round_up(4*K, 128)

    # im2col, taps packed along lanes (XLA glue: static strided bf16 slices +
    # one concat; all FLOPs happen inside the Pallas kernel).
    cols = []
    for dy in range(2):
        for dx in range(2):
            for ky in range(kh):
                for kx in range(kw):
                    ys, xs = dy + ky, dx + kx
                    sl = x_nhwc[:, ys:ys + 2 * OH2 - 1:2,
                                xs:xs + 2 * OW2 - 1:2, :]      # (N, OH2, OW2, C)
                    cols.append(sl.reshape(M, C))
    patches = jnp.concatenate(cols, axis=-1)                    # (M, 4*K) bf16

    tile_m, m_pad = _choose_tile(M, cap)
    pad_rows, pad_cols = m_pad - M, kp4 - 4 * K
    if pad_rows or pad_cols:
        patches = jnp.pad(patches, ((0, pad_rows), (0, pad_cols)))

    out = pl.pallas_call(
        _conv_relu_pool_kernel,
        out_shape=jax.ShapeDtypeStruct((m_pad, LANE), jnp.bfloat16),
        grid_spec=pltpu.PrefetchScalarGridSpec(
            num_scalar_prefetch=0,
            grid=(m_pad // tile_m,),
            in_specs=[
                pl.BlockSpec((tile_m, kp4), lambda m: (m, 0)),
                pl.BlockSpec((kp4, 4 * LANE), lambda m: (0, 0)),  # resident weights
                pl.BlockSpec((1, LANE), lambda m: (0, 0)),        # resident bias
            ],
            out_specs=pl.BlockSpec((tile_m, LANE), lambda m: (m, 0)),
        ),
        compiler_params=pltpu.CompilerParams(
            dimension_semantics=("parallel",)),    # shard row tiles across TCs (v7x)
    )(patches, w_packed, b_packed)

    return out[:M].reshape(N, OH2, OW2, LANE)


def fc_stack(x, p, *, cap=512):
    """Fused fc1+fc2+fc3. x: (N, 3200) bf16 (flattened (5,5,128) conv2 output)
    -> (N, 128) f32 (logits in cols 0..9)."""
    if x.dtype != jnp.bfloat16:
        x = x.astype(jnp.bfloat16)
    N, K = x.shape
    tile_n, n_pad = _choose_tile(N, cap)
    if n_pad != N:
        x = jnp.pad(x, ((0, n_pad - N), (0, 0)))

    out = pl.pallas_call(
        _fc_fused_kernel,
        out_shape=jax.ShapeDtypeStruct((n_pad, LANE), jnp.float32),
        grid_spec=pltpu.PrefetchScalarGridSpec(
            num_scalar_prefetch=0,
            grid=(n_pad // tile_n,),
            in_specs=[
                pl.BlockSpec((tile_n, K), lambda m: (m, 0)),
                pl.BlockSpec((K, LANE), lambda m: (0, 0)),      # fc1 weight (resident)
                pl.BlockSpec((1, LANE), lambda m: (0, 0)),
                pl.BlockSpec((LANE, LANE), lambda m: (0, 0)),   # fc2 weight
                pl.BlockSpec((1, LANE), lambda m: (0, 0)),
                pl.BlockSpec((LANE, LANE), lambda m: (0, 0)),   # fc3 weight
                pl.BlockSpec((1, LANE), lambda m: (0, 0)),
            ],
            out_specs=pl.BlockSpec((tile_n, LANE), lambda m: (m, 0)),
        ),
        compiler_params=pltpu.CompilerParams(
            dimension_semantics=("parallel",)),
    )(x, p["fc1_w"], p["fc1_b"], p["fc2_w"], p["fc2_b"], p["fc3_w"], p["fc3_b"])
    return out[:N]


# ------------------------------ params / model --------------------------------

def init_params(key):
    """Raw parameters in PyTorch layouts (Conv2d: (Cout,Cin,kh,kw), Linear: (out,in))."""
    ks = jax.random.split(key, 10)

    def u(k, shape, fan_in):
        bound = 1.0 / float(fan_in) ** 0.5
        return jax.random.uniform(k, shape, jnp.float32, -bound, bound)

    return {
        "conv1_w": u(ks[0], (6, 1, 5, 5), 25),
        "conv1_b": u(ks[1], (6,), 25),
        "conv2_w": u(ks[2], (16, 6, 5, 5), 150),
        "conv2_b": u(ks[3], (16,), 150),
        "fc1_w": u(ks[4], (120, 400), 400),
        "fc1_b": u(ks[5], (120,), 400),
        "fc2_w": u(ks[6], (84, 120), 120),
        "fc2_b": u(ks[7], (84,), 120),
        "fc3_w": u(ks[8], (10, 84), 84),
        "fc3_b": u(ks[9], (10,), 84),
    }


def prepare_params(params):
    """One-time packing (NOT inside forward): pre-transpose weights, lane-pad all
    out-feature dims to 128, build block-diagonal conv weights (one MXU dot per
    tile, taps in lane blocks), fold the NHWC/128-lane flatten into fc1's
    reduction dim, and cast MXU operands to bf16 (biases stay f32)."""
    def pack_conv(w, b):
        cout, cin, kh, kw = w.shape
        K = kh * kw * cin
        wk = w.transpose(2, 3, 1, 0).reshape(K, cout)       # K order (ky, kx, cin)
        wk = jnp.pad(wk, ((0, 0), (0, LANE - cout)))         # (K, 128)
        kp4 = _round_up(4 * K, LANE)
        wbd = jnp.zeros((kp4, 4 * LANE), jnp.float32)        # block-diagonal
        for t in range(4):
            wbd = wbd.at[t * K:(t + 1) * K, t * LANE:(t + 1) * LANE].set(wk)
        bk = jnp.pad(b, (0, LANE - cout)).reshape(1, LANE)
        return wbd.astype(jnp.bfloat16), bk.astype(jnp.float32)

    def pack_fc(w, b, k_pad):
        out_f, in_f = w.shape
        wk = jnp.pad(w.T, ((0, k_pad - in_f), (0, LANE - out_f)))
        bk = jnp.pad(b, (0, LANE - out_f)).reshape(1, LANE)
        return wk.astype(jnp.bfloat16), bk.astype(jnp.float32)

    # fc1 consumes the raw (5,5,128)-lane-padded NHWC conv2 output: permute the
    # PyTorch (c,h,w) flatten to (h,w,c) and pad c 16->128 (fold flatten + lane
    # slice into the weight; zero rows at dead channel lanes).
    fc1_w = (params["fc1_w"].reshape(120, 16, 5, 5)
             .transpose(0, 2, 3, 1))                               # (out, h, w, c)
    fc1_w = jnp.pad(fc1_w, ((0, 0), (0, 0), (0, 0), (0, LANE - 16)))
    fc1_w = fc1_w.reshape(120, 5 * 5 * LANE)                       # (120, 3200)

    c1w, c1b = pack_conv(params["conv1_w"], params["conv1_b"])
    c2w, c2b = pack_conv(params["conv2_w"], params["conv2_b"])
    f1w, f1b = pack_fc(fc1_w, params["fc1_b"], 5 * 5 * LANE)
    f2w, f2b = pack_fc(params["fc2_w"], params["fc2_b"], LANE)     # K 120 -> 128
    f3w, f3b = pack_fc(params["fc3_w"], params["fc3_b"], LANE)     # K 84  -> 128
    return {"conv1_w": c1w, "conv1_b": c1b, "conv2_w": c2w, "conv2_b": c2b,
            "fc1_w": f1w, "fc1_b": f1b, "fc2_w": f2w, "fc2_b": f2b,
            "fc3_w": f3w, "fc3_b": f3b}


def forward(packed, x_nchw):
    """Forward pass matching myModel.forward; x_nchw: (N, 1, 32, 32) f32 NCHW."""
    x = jnp.transpose(x_nchw.astype(jnp.bfloat16), (0, 2, 3, 1))          # NCHW->NHWC, bf16 once
    x = conv_relu_pool(x, packed["conv1_w"], packed["conv1_b"])           # (N,14,14,128) bf16, ch 0..5
    x = conv_relu_pool(x[..., :6], packed["conv2_w"], packed["conv2_b"])  # (N,5,5,128) bf16, ch 0..15
    x = x.reshape(x.shape[0], 5 * 5 * LANE)                               # flatten folded into fc1
    return fc_stack(x, packed)[:, :10]


def reference_forward(params, x):
    """Pure-XLA f32 re-implementation of the PyTorch module (validation only)."""
    def conv(x, w, b):
        y = lax.conv_general_dilated(x, w, (1, 1), "VALID",
                                     dimension_numbers=("NCHW", "OIHW", "NCHW"))
        return y + b.reshape(1, -1, 1, 1)

    def pool(x):
        return lax.reduce_window(x, -jnp.inf, lax.max,
                                 (1, 1, 2, 2), (1, 1, 2, 2), "VALID")

    x = pool(jax.nn.relu(conv(x, params["conv1_w"], params["conv1_b"])))
    x = pool(jax.nn.relu(conv(x, params["conv2_w"], params["conv2_b"])))
    x = x.reshape(x.shape[0], -1)
    x = jax.nn.relu(x @ params["fc1_w"].T + params["fc1_b"])
    x = jax.nn.relu(x @ params["fc2_w"].T + params["fc2_b"])
    return x @ params["fc3_w"].T + params["fc3_b"]


if __name__ == "__main__":
    key = jax.random.PRNGKey(0)
    pkey, xkey = jax.random.split(key)
    params = init_params(pkey)
    packed = prepare_params(params)            # one-time weight packing
    x = jax.random.normal(xkey, (2, 1, 32, 32), jnp.float32)

    out = jax.jit(forward)(packed, x)
    out = jax.block_until_ready(out)

    assert out.shape == (2, 10), out.shape
    assert bool(jnp.all(jnp.isfinite(out)))

    # numerics vs. a pure-XLA f32 reference (bf16 MXU operands/activations -> loose tol)
    ref = reference_forward(params, x)
    max_err = float(jnp.max(jnp.abs(out - ref)))
    assert max_err < 5e-2, f"max abs err vs reference: {max_err}"
    print("KERNEL_OK")
</pallas_src>

<mosaic_0001>
module attributes {stable_mosaic.version = 11 : i64} {
  func.func @_conv_relu_pool_kernel(%arg0: i32, %arg1: memref<200x128xbf16, #tpu.memory_space<vmem>>, %arg2: memref<128x512xbf16, #tpu.memory_space<vmem>>, %arg3: memref<1x128xf32, #tpu.memory_space<vmem>>, %arg4: memref<200x128xbf16, #tpu.memory_space<vmem>>) attributes {dimension_semantics = [#tpu.dimension_semantics<parallel>], iteration_bounds = array<i64: 2>, scalar_prefetch = 0 : i64, scratch_operands = 0 : i64, tpu.core_type = #tpu.core_type<tc>, window_params = [{transform_indices = @transform_0, window_bounds = array<i64: 200, 128>}, {pipeline_mode = #tpu.pipeline_mode<synchronous>, transform_indices = @transform_1, window_bounds = array<i64: 128, 512>}, {pipeline_mode = #tpu.pipeline_mode<synchronous>, transform_indices = @transform_2, window_bounds = array<i64: 1, 128>}, {transform_indices = @transform_3, window_bounds = array<i64: 200, 128>}]} {
    %c0 = arith.constant 0 : index
    %c0_0 = arith.constant 0 : index
    %0 = vector.load %arg1[%c0, %c0_0] : memref<200x128xbf16, #tpu.memory_space<vmem>>, vector<200x128xbf16>
    %c0_1 = arith.constant 0 : index
    %c0_2 = arith.constant 0 : index
    %1 = vector.load %arg2[%c0_1, %c0_2] : memref<128x512xbf16, #tpu.memory_space<vmem>>, vector<128x512xbf16>
    %cst = arith.constant dense<0.000000e+00> : vector<200x512xf32>
    %2 = tpu.matmul %0, %1, %cst {dimension_numbers = #tpu.dot_dimension_numbers<[1], [0], [0], [1], [0, 0, 1, 1], [], []>} : vector<200x128xbf16>, vector<128x512xbf16>, vector<200x512xf32> -> vector<200x512xf32>
    %3 = vector.extract_strided_slice %2 {offsets = [0, 0], sizes = [200, 128], strides = [1, 1]} : vector<200x512xf32> to vector<200x128xf32>
    %4 = vector.extract_strided_slice %2 {offsets = [0, 128], sizes = [200, 128], strides = [1, 1]} : vector<200x512xf32> to vector<200x128xf32>
    %5 = arith.maximumf %3, %4 : vector<200x128xf32>
    %6 = vector.extract_strided_slice %2 {offsets = [0, 256], sizes = [200, 128], strides = [1, 1]} : vector<200x512xf32> to vector<200x128xf32>
    %7 = vector.extract_strided_slice %2 {offsets = [0, 384], sizes = [200, 128], strides = [1, 1]} : vector<200x512xf32> to vector<200x128xf32>
    %8 = arith.maximumf %6, %7 : vector<200x128xf32>
    %9 = arith.maximumf %5, %8 : vector<200x128xf32>
    %c0_3 = arith.constant 0 : index
    %c0_4 = arith.constant 0 : index
    %10 = vector.load %arg3[%c0_3, %c0_4] : memref<1x128xf32, #tpu.memory_space<vmem>>, vector<1x128xf32>
    %11 = vector.broadcast %10 : vector<1x128xf32> to vector<200x128xf32>
    %12 = arith.addf %9, %11 : vector<200x128xf32>
    %cst_5 = arith.constant 0.000000e+00 : f32
    %13 = vector.broadcast %cst_5 : f32 to vector<200x128xf32>
    %14 = arith.maximumf %12, %13 : vector<200x128xf32>
    %15 = arith.truncf %14 : vector<200x128xf32> to vector<200x128xbf16>
    %c0_6 = arith.constant 0 : index
    %c0_7 = arith.constant 0 : index
    %16 = vector.load %arg4[%c0_6, %c0_7] : memref<200x128xbf16, #tpu.memory_space<vmem>>, vector<200x128xbf16>
    tpu.vector_store %arg4[%c0_6, %c0_7], %15 {strides = array<i32>} : memref<200x128xbf16, #tpu.memory_space<vmem>>, vector<200x128xbf16>,
    return
  }
  func.func @transform_0(%arg0: i32) -> (i32, i32) {
    %c0_i32 = arith.constant 0 : i32
    %c0_i32_0 = arith.constant 0 : i32
    return %arg0, %c0_i32 : i32, i32
  }
  func.func @transform_1(%arg0: i32) -> (i32, i32) {
    %c0_i32 = arith.constant 0 : i32
    %c0_i32_0 = arith.constant 0 : i32
    %c0_i32_1 = arith.constant 0 : i32
    return %c0_i32, %c0_i32_0 : i32, i32
  }
  func.func @transform_2(%arg0: i32) -> (i32, i32) {
    %c0_i32 = arith.constant 0 : i32
    %c0_i32_0 = arith.constant 0 : i32
    %c0_i32_1 = arith.constant 0 : i32
    return %c0_i32, %c0_i32_0 : i32, i32
  }
  func.func @transform_3(%arg0: i32) -> (i32, i32) {
    %c0_i32 = arith.constant 0 : i32
    %c0_i32_0 = arith.constant 0 : i32
    return %arg0, %c0_i32 : i32, i32
  }
}

module attributes {stable_mosaic.version = 11 : i64} {
  func.func @_fc_fused_kernel(%arg0: i32, %arg1: memref<8x3200xbf16, #tpu.memory_space<vmem>>, %arg2: memref<3200x128xbf16, #tpu.memory_space<vmem>>, %arg3: memref<1x128xf32, #tpu.memory_space<vmem>>, %arg4: memref<128x128xbf16, #tpu.memory_space<vmem>>, %arg5: memref<1x128xf32, #tpu.memory_space<vmem>>, %arg6: memref<128x128xbf16, #tpu.memory_space<vmem>>, %arg7: memref<1x128xf32, #tpu.memory_space<vmem>>, %arg8: memref<8x128xf32, #tpu.memory_space<vmem>>) attributes {dimension_semantics = [#tpu.dimension_semantics<parallel>], iteration_bounds = array<i64: 1>, scalar_prefetch = 0 : i64, scratch_operands = 0 : i64, tpu.core_type = #tpu.core_type<tc>, window_params = [{transform_indices = @transform_0, window_bounds = array<i64: 8, 3200>}, {pipeline_mode = #tpu.pipeline_mode<synchronous>, transform_indices = @transform_1, window_bounds = array<i64: 3200, 128>}, {pipeline_mode = #tpu.pipeline_mode<synchronous>, transform_indices = @transform_2, window_bounds = array<i64: 1, 128>}, {pipeline_mode = #tpu.pipeline_mode<synchronous>, transform_indices = @transform_3, window_bounds = array<i64: 128, 128>}, {pipeline_mode = #tpu.pipeline_mode<synchronous>, transform_indices = @transform_4, window_bounds = array<i64: 1, 128>}, {pipeline_mode = #tpu.pipeline_mode<synchronous>, transform_indices = @transform_5, window_bounds = array<i64: 128, 128>}, {pipeline_mode = #tpu.pipeline_mode<synchronous>, transform_indices = @transform_6, window_bounds = array<i64: 1, 128>}, {transform_indices = @transform_7, window_bounds = array<i64: 8, 128>}]} {
    %c0 = arith.constant 0 : index
    %c0_0 = arith.constant 0 : index
    %0 = vector.load %arg1[%c0, %c0_0] : memref<8x3200xbf16, #tpu.memory_space<vmem>>, vector<8x3200xbf16>
    %c0_1 = arith.constant 0 : index
    %c0_2 = arith.constant 0 : index
    %1 = vector.load %arg2[%c0_1, %c0_2] : memref<3200x128xbf16, #tpu.memory_space<vmem>>, vector<3200x128xbf16>
    %cst = arith.constant dense<0.000000e+00> : vector<8x128xf32>
    %2 = tpu.matmul %0, %1, %cst {dimension_numbers = #tpu.dot_dimension_numbers<[1], [0], [0], [1], [0, 0, 1, 1], [], []>} : vector<8x3200xbf16>, vector<3200x128xbf16>, vector<8x128xf32> -> vector<8x128xf32>
    %c0_3 = arith.constant 0 : index
    %c0_4 = arith.constant 0 : index
    %3 = vector.load %arg3[%c0_3, %c0_4] : memref<1x128xf32, #tpu.memory_space<vmem>>, vector<1x128xf32>
    %4 = vector.broadcast %3 : vector<1x128xf32> to vector<8x128xf32>
    %5 = arith.addf %2, %4 : vector<8x128xf32>
    %cst_5 = arith.constant 0.000000e+00 : f32
    %6 = vector.broadcast %cst_5 : f32 to vector<8x128xf32>
    %7 = arith.maximumf %5, %6 : vector<8x128xf32>
    %8 = arith.truncf %7 : vector<8x128xf32> to vector<8x128xbf16>
    %c0_6 = arith.constant 0 : index
    %c0_7 = arith.constant 0 : index
    %9 = vector.load %arg4[%c0_6, %c0_7] : memref<128x128xbf16, #tpu.memory_space<vmem>>, vector<128x128xbf16>
    %cst_8 = arith.constant dense<0.000000e+00> : vector<8x128xf32>
    %10 = tpu.matmul %8, %9, %cst_8 {dimension_numbers = #tpu.dot_dimension_numbers<[1], [0], [0], [1], [0, 0, 1, 1], [], []>} : vector<8x128xbf16>, vector<128x128xbf16>, vector<8x128xf32> -> vector<8x128xf32>
    %c0_9 = arith.constant 0 : index
    %c0_10 = arith.constant 0 : index
    %11 = vector.load %arg5[%c0_9, %c0_10] : memref<1x128xf32, #tpu.memory_space<vmem>>, vector<1x128xf32>
    %12 = vector.broadcast %11 : vector<1x128xf32> to vector<8x128xf32>
    %13 = arith.addf %10, %12 : vector<8x128xf32>
    %cst_11 = arith.constant 0.000000e+00 : f32
    %14 = vector.broadcast %cst_11 : f32 to vector<8x128xf32>
    %15 = arith.maximumf %13, %14 : vector<8x128xf32>
    %16 = arith.truncf %15 : vector<8x128xf32> to vector<8x128xbf16>
    %c0_12 = arith.constant 0 : index
    %c0_13 = arith.constant 0 : index
    %17 = vector.load %arg6[%c0_12, %c0_13] : memref<128x128xbf16, #tpu.memory_space<vmem>>, vector<128x128xbf16>
    %cst_14 = arith.constant dense<0.000000e+00> : vector<8x128xf32>
    %18 = tpu.matmul %16, %17, %cst_14 {dimension_numbers = #tpu.dot_dimension_numbers<[1], [0], [0], [1], [0, 0, 1, 1], [], []>} : vector<8x128xbf16>, vector<128x128xbf16>, vector<8x128xf32> -> vector<8x128xf32>
    %c0_15 = arith.constant 0 : index
    %c0_16 = arith.constant 0 : index
    %19 = vector.load %arg7[%c0_15, %c0_16] : memref<1x128xf32, #tpu.memory_space<vmem>>, vector<1x128xf32>
    %20 = vector.broadcast %19 : vector<1x128xf32> to vector<8x128xf32>
    %21 = arith.addf %18, %20 : vector<8x128xf32>
    %c0_17 = arith.constant 0 : index
    %c0_18 = arith.constant 0 : index
    %22 = vector.load %arg8[%c0_17, %c0_18] : memref<8x128xf32, #tpu.memory_space<vmem>>, vector<8x128xf32>
    tpu.vector_store %arg8[%c0_17, %c0_18], %21 {strides = array<i32>} : memref<8x128xf32, #tpu.memory_space<vmem>>, vector<8x128xf32>,
    return
  }
  func.func @transform_0(%arg0: i32) -> (i32, i32) {
    %c0_i32 = arith.constant 0 : i32
    %c0_i32_0 = arith.constant 0 : i32
    return %arg0, %c0_i32 : i32, i32
  }
  func.func @transform_1(%arg0: i32) -> (i32, i32) {
    %c0_i32 = arith.constant 0 : i32
    %c0_i32_0 = arith.constant 0 : i32
    %c0_i32_1 = arith.constant 0 : i32
    return %c0_i32, %c0_i32_0 : i32, i32
  }
  func.func @transform_2(%arg0: i32) -> (i32, i32) {
    %c0_i32 = arith.constant 0 : i32
    %c0_i32_0 = arith.constant 0 : i32
    %c0_i32_1 = arith.constant 0 : i32
    return %c0_i32, %c0_i32_0 : i32, i32
  }
  func.func @transform_3(%arg0: i32) -> (i32, i32) {
    %c0_i32 = arith.constant 0 : i32
    %c0_i32_0 = arith.constant 0 : i32
    %c0_i32_1 = arith.constant 0 : i32
    return %c0_i32, %c0_i32_0 : i32, i32
  }
  func.func @transform_4(%arg0: i32) -> (i32, i32) {
    %c0_i32 = arith.constant 0 : i32
    %c0_i32_0 = arith.constant 0 : i32
    %c0_i32_1 = arith.constant 0 : i32
    return %c0_i32, %c0_i32_0 : i32, i32
  }
  func.func @transform_5(%arg0: i32) -> (i32, i32) {
    %c0_i32 = arith.constant 0 : i32
    %c0_i32_0 = arith.constant 0 : i32
    %c0_i32_1 = arith.constant 0 : i32
    return %c0_i32, %c0_i32_0 : i32, i32
  }
  func.func @transform_6(%arg0: i32) -> (i32, i32) {
    %c0_i32 = arith.constant 0 : i32
    %c0_i32_0 = arith.constant 0 : i32
    %c0_i32_1 = arith.constant 0 : i32
    return %c0_i32, %c0_i32_0 : i32, i32
  }
  func.func @transform_7(%arg0: i32) -> (i32, i32) {
    %c0_i32 = arith.constant 0 : i32
    %c0_i32_0 = arith.constant 0 : i32
    return %arg0, %c0_i32 : i32, i32
  }
}

module attributes {stable_mosaic.version = 11 : i64} {
  func.func @_conv_relu_pool_kernel(%arg0: i32, %arg1: memref<32x640xbf16, #tpu.memory_space<vmem>>, %arg2: memref<640x512xbf16, #tpu.memory_space<vmem>>, %arg3: memref<1x128xf32, #tpu.memory_space<vmem>>, %arg4: memref<32x128xbf16, #tpu.memory_space<vmem>>) attributes {dimension_semantics = [#tpu.dimension_semantics<parallel>], iteration_bounds = array<i64: 2>, scalar_prefetch = 0 : i64, scratch_operands = 0 : i64, tpu.core_type = #tpu.core_type<tc>, window_params = [{transform_indices = @transform_0, window_bounds = array<i64: 32, 640>}, {pipeline_mode = #tpu.pipeline_mode<synchronous>, transform_indices = @transform_1, window_bounds = array<i64: 640, 512>}, {pipeline_mode = #tpu.pipeline_mode<synchronous>, transform_indices = @transform_2, window_bounds = array<i64: 1, 128>}, {transform_indices = @transform_3, window_bounds = array<i64: 32, 128>}]} {
    %c0 = arith.constant 0 : index
    %c0_0 = arith.constant 0 : index
    %0 = vector.load %arg1[%c0, %c0_0] : memref<32x640xbf16, #tpu.memory_space<vmem>>, vector<32x640xbf16>
    %c0_1 = arith.constant 0 : index
    %c0_2 = arith.constant 0 : index
    %1 = vector.load %arg2[%c0_1, %c0_2] : memref<640x512xbf16, #tpu.memory_space<vmem>>, vector<640x512xbf16>
    %cst = arith.constant dense<0.000000e+00> : vector<32x512xf32>
    %2 = tpu.matmul %0, %1, %cst {dimension_numbers = #tpu.dot_dimension_numbers<[1], [0], [0], [1], [0, 0, 1, 1], [], []>} : vector<32x640xbf16>, vector<640x512xbf16>, vector<32x512xf32> -> vector<32x512xf32>
    %3 = vector.extract_strided_slice %2 {offsets = [0, 0], sizes = [32, 128], strides = [1, 1]} : vector<32x512xf32> to vector<32x128xf32>
    %4 = vector.extract_strided_slice %2 {offsets = [0, 128], sizes = [32, 128], strides = [1, 1]} : vector<32x512xf32> to vector<32x128xf32>
    %5 = arith.maximumf %3, %4 : vector<32x128xf32>
    %6 = vector.extract_strided_slice %2 {offsets = [0, 256], sizes = [32, 128], strides = [1, 1]} : vector<32x512xf32> to vector<32x128xf32>
    %7 = vector.extract_strided_slice %2 {offsets = [0, 384], sizes = [32, 128], strides = [1, 1]} : vector<32x512xf32> to vector<32x128xf32>
    %8 = arith.maximumf %6, %7 : vector<32x128xf32>
    %9 = arith.maximumf %5, %8 : vector<32x128xf32>
    %c0_3 = arith.constant 0 : index
    %c0_4 = arith.constant 0 : index
    %10 = vector.load %arg3[%c0_3, %c0_4] : memref<1x128xf32, #tpu.memory_space<vmem>>, vector<1x128xf32>
    %11 = vector.broadcast %10 : vector<1x128xf32> to vector<32x128xf32>
    %12 = arith.addf %9, %11 : vector<32x128xf32>
    %cst_5 = arith.constant 0.000000e+00 : f32
    %13 = vector.broadcast %cst_5 : f32 to vector<32x128xf32>
    %14 = arith.maximumf %12, %13 : vector<32x128xf32>
    %15 = arith.truncf %14 : vector<32x128xf32> to vector<32x128xbf16>
    %c0_6 = arith.constant 0 : index
    %c0_7 = arith.constant 0 : index
    %16 = vector.load %arg4[%c0_6, %c0_7] : memref<32x128xbf16, #tpu.memory_space<vmem>>, vector<32x128xbf16>
    tpu.vector_store %arg4[%c0_6, %c0_7], %15 {strides = array<i32>} : memref<32x128xbf16, #tpu.memory_space<vmem>>, vector<32x128xbf16>,
    return
  }
  func.func @transform_0(%arg0: i32) -> (i32, i32) {
    %c0_i32 = arith.constant 0 : i32
    %c0_i32_0 = arith.constant 0 : i32
    return %arg0, %c0_i32 : i32, i32
  }
  func.func @transform_1(%arg0: i32) -> (i32, i32) {
    %c0_i32 = arith.constant 0 : i32
    %c0_i32_0 = arith.constant 0 : i32
    %c0_i32_1 = arith.constant 0 : i32
    return %c0_i32, %c0_i32_0 : i32, i32
  }
  func.func @transform_2(%arg0: i32) -> (i32, i32) {
    %c0_i32 = arith.constant 0 : i32
    %c0_i32_0 = arith.constant 0 : i32
    %c0_i32_1 = arith.constant 0 : i32
    return %c0_i32, %c0_i32_0 : i32, i32
  }
  func.func @transform_3(%arg0: i32) -> (i32, i32) {
    %c0_i32 = arith.constant 0 : i32
    %c0_i32_0 = arith.constant 0 : i32
    return %arg0, %c0_i32 : i32, i32
  }
}

</mosaic_0001>

<llo_original>
// kernel: forward.3
$region0: #{forward.3}
  #allocation0 [shape = 'u32[]', space=smem, size = 0x4, offset = 0x4, fixed_abs, tag = 'smem constant byte address 0x4 - core index']
  #allocation1 [shape = 'u32[144,128]{1,0:T(1,128)}', space=vmem, size = 0x12000, scoped, tag = 'internal scratch']
  %s0 = inlined_call_operand.vmem [shape: bf16[400,128], index: 0, kind: input, shape index: {}]
  %s1 = inlined_call_operand.vmem [shape: bf16[128,512], index: 1, kind: input, shape index: {}]
  %s2 = inlined_call_operand.vmem [shape: f32[1,128], index: 2, kind: input, shape index: {}]
  %s3 = inlined_call_operand.vmem [shape: bf16[400,128], index: 3, kind: output, shape index: {}]
  %s4 = sld [smem:[#allocation0]]
  $region45: #{forward.3} parent=0
    _
  %s6 = ssub.s32 1, %s4
  %s7 = scalar_select 0, %s6, %s4
  loop: start=0, step=1, limit=4
  $region2: #{forward.3} parent=0 // loop_pre_header
    _
  $region3: #{forward.3} parent=0 // loop_header
    %s9 = sphi 0, %s13
    %p10 = scmp.ge.s32.totalorder %s9, 4
    %s19 = sphi 0, %s21
    %s22 = sphi 0, %s19
    %s23 = sphi 0, %s22
    %s39 = sphi 0, %s23
    %s43 = sphi 0, %s43
    %s45 = sphi 0, %s43
    %s46 = sphi 0, %s45
    %s60 = sphi 0, %s46
    %s64 = sphi 0, %s64
    %s66 = sphi 0, %s64
    %s67 = sphi 0, %s66
    %s81 = sphi 0, %s67
    %s87 = sphi 0, %s89
    %s90 = sphi 0, %s87
    %s91 = sphi 0, %s90
    %s107 = sphi 0, %s91
  $region4: #{forward.3} parent=0 // loop_header_branch
    %12 = sbr.rel (%p10) target = $region8
  $region5: #{forward.3} parent=0 // loop_body
    %s14 = ssub.s32 %s9, 1
    %s15 = ssub.s32 %s9, 2
    %s16 = sadd.s32 %s9, 1
    %s17 = ssub.s32 %s9, %s16
    %p18 = scmp.eq.s32.totalorder %s17, 0
    %s20 = sadd.s32 %s19, 1
    %s21 = scalar_select %p18, %s19, %s20
    %p24 = pneg %p18
    %p25 = scmp.eq.s32.totalorder %s9, 1
    %p26 = por %p24, %p25
    %p27 = scmp.ne.s32.totalorder %s19, %s22
    %p28 = scmp.eq.s32.totalorder %s9, 0
    %p29 = por %p27, %p28
    %p30 = scmp.ne.s32.totalorder %s19, %s22
    %p31 = scmp.eq.s32.totalorder %s14, 1
    %p32 = por %p30, %p31
    %p33 = scmp.ne.s32.totalorder %s22, %s23
    %p34 = scmp.eq.s32.totalorder %s14, 0
    %p35 = por %p33, %p34
    %p36 = scmp.ne.s32.totalorder %s22, %s23
    %p37 = scmp.eq.s32.totalorder %s15, 1
    %p38 = por %p36, %p37
    %p40 = scmp.ne.s32.totalorder %s23, %s39
    %p41 = scmp.eq.s32.totalorder %s15, 0
    %p42 = por %p40, %p41
    %s44 = sadd.s32 %s43, 1
    %p47 = scmp.eq.s32.totalorder %s9, 1
    %p48 = scmp.ne.s32.totalorder %s43, %s45
    %p49 = scmp.eq.s32.totalorder %s9, 0
    %p50 = por %p48, %p49
    %p51 = scmp.ne.s32.totalorder %s43, %s45
    %p52 = scmp.eq.s32.totalorder %s14, 1
    %p53 = por %p51, %p52
    %p54 = scmp.ne.s32.totalorder %s45, %s46
    %p55 = scmp.eq.s32.totalorder %s14, 0
    %p56 = por %p54, %p55
    %p57 = scmp.ne.s32.totalorder %s45, %s46
    %p58 = scmp.eq.s32.totalorder %s15, 1
    %p59 = por %p57, %p58
    %p61 = scmp.ne.s32.totalorder %s46, %s60
    %p62 = scmp.eq.s32.totalorder %s15, 0
    %p63 = por %p61, %p62
    %s65 = sadd.s32 %s64, 1
    %p68 = scmp.eq.s32.totalorder %s9, 1
    %p69 = scmp.ne.s32.totalorder %s64, %s66
    %p70 = scmp.eq.s32.totalorder %s9, 0
    %p71 = por %p69, %p70
    %p72 = scmp.ne.s32.totalorder %s64, %s66
    %p73 = scmp.eq.s32.totalorder %s14, 1
    %p74 = por %p72, %p73
    %p75 = scmp.ne.s32.totalorder %s66, %s67
    %p76 = scmp.eq.s32.totalorder %s14, 0
    %p77 = por %p75, %p76
    %p78 = scmp.ne.s32.totalorder %s66, %s67
    %p79 = scmp.eq.s32.totalorder %s15, 1
    %p80 = por %p78, %p79
    %p82 = scmp.ne.s32.totalorder %s67, %s81
    %p83 = scmp.eq.s32.totalorder %s15, 0
    %p84 = por %p82, %p83
    %s85 = ssub.s32 %s9, %s16
    %p86 = scmp.eq.s32.totalorder %s85, 0
    %s88 = sadd.s32 %s87, 1
    %s89 = scalar_select %p86, %s87, %s88
    %p92 = pneg %p86
    %p93 = scmp.eq.s32.totalorder %s9, 1
    %p94 = por %p92, %p93
    %p95 = scmp.ne.s32.totalorder %s87, %s90
    %p96 = scmp.eq.s32.totalorder %s9, 0
    %p97 = por %p95, %p96
    %p98 = scmp.ne.s32.totalorder %s87, %s90
    %p99 = scmp.eq.s32.totalorder %s14, 1
    %p100 = por %p98, %p99
    %p101 = scmp.ne.s32.totalorder %s90, %s91
    %p102 = scmp.eq.s32.totalorder %s14, 0
    %p103 = por %p101, %p102
    %p104 = scmp.ne.s32.totalorder %s90, %s91
    %p105 = scmp.eq.s32.totalorder %s15, 1
    %p106 = por %p104, %p105
    %p108 = scmp.ne.s32.totalorder %s91, %s107
    %p109 = scmp.eq.s32.totalorder %s15, 0
    %p110 = por %p108, %p109
    %p111 = scmp.le.s32.totalorder 1, %s9
    %p112 = scmp.lt.s32.totalorder %s9, 3
    %p113 = pnand %p111, %p112
    %p114 = pneg %p113
    // Predicated region
    $region9: #{forward.3} parent=5 // pred_check
      _
    $region10: #{forward.3} parent=5 // pred_check_branch
      %116 = sbr.rel (%p113) target = $region12
    $region11: #{forward.3} parent=5 // pred_region
      %s117 = ssub.s32 %s9, 1
      // Predicated region
      $region13: #{forward.3} parent=11 // pred_check
        %p118 = pneg %p56
      $region14: #{forward.3} parent=11 // pred_check_branch
        %120 = sbr.rel (%p118) target = $region16
      $region15: #{forward.3} parent=11 // pred_region
        _
      $region16: #{forward.3} parent=11 // pred_fallthru
        _
      // Predicated region
      $region17: #{forward.3} parent=11 // pred_check
        %p121 = pneg %p77
      $region18: #{forward.3} parent=11 // pred_check_branch
        %123 = sbr.rel (%p121) target = $region20
      $region19: #{forward.3} parent=11 // pred_region
        _
      $region20: #{forward.3} parent=11 // pred_fallthru
        _
    $region12: #{forward.3} parent=5 // pred_fallthru
      _
    %p124 = scmp.lt.s32.totalorder %s9, 2
    // Predicated region
    $region21: #{forward.3} parent=5 // pred_check
      %p125 = pneg %p124
    $region22: #{forward.3} parent=5 // pred_check_branch
      %127 = sbr.rel (%p125) target = $region24
    $region23: #{forward.3} parent=5 // pred_region
      // Predicated region
      $region25: #{forward.3} parent=23 // pred_check
        %p128 = pneg %p29
      $region26: #{forward.3} parent=23 // pred_check_branch
        %130 = sbr.rel (%p128) target = $region28
      $region27: #{forward.3} parent=23 // pred_region
        %s131 = smul.u32 25, %s9
        %p132 = scmp.lt.s32.totalorder %s131, 49
        %s133 = scalar_select %p132, %s131, 49
        %s134 = smul.addr %s133, 4
        %s135 = scalar_lea.vmem %s0, %s134
        %s136 = smul.u32 25, %s9
      $region28: #{forward.3} parent=23 // pred_fallthru
        _
    $region24: #{forward.3} parent=5 // pred_fallthru
      _
    %p137 = scmp.le.s32.totalorder 1, %s9
    %p138 = scmp.lt.s32.totalorder %s9, 3
    %p139 = pnand %p137, %p138
    %p140 = pneg %p139
    // Predicated region
    $region29: #{forward.3} parent=5 // pred_check
      _
    $region30: #{forward.3} parent=5 // pred_check_branch
      %142 = sbr.rel (%p139) target = $region32
    $region31: #{forward.3} parent=5 // pred_region
      %s143 = ssub.s32 %s9, 1
      %s144 = smul.u32 25, %s14
      %p145 = scmp.lt.s32.totalorder %s144, 49
      %s146 = scalar_select %p145, %s144, 49
      %s147 = smul.addr %s146, 4
      %s148 = scalar_lea.vmem %s0, %s147
      %p149 = pneg %p35
      %p150 = pneg %p32
      %p151 = pneg %p56
      %p152 = pneg %p53
      %p153 = pneg %p77
      %p154 = pneg %p74
      %p155 = pneg %p103
      %p156 = pneg %p100
      %s157 = smul.u32 25, %s14
      %p158 = scmp.lt.s32.totalorder %s157, 49
      %s159 = scalar_select %p158, %s157, 49
      %s160 = smul.addr %s159, 4
      %s161 = scalar_lea.vmem %s3, %s160
      %s162 = smul.u32 25, %s14
      %p163 = scmp.lt.s32.totalorder %s162, 49
      %s164 = scalar_select %p163, %s162, 49
      %s165 = smul.addr %s164, 4
      %s166 = scalar_lea.vmem %s0, %s165
      %s167 = smul.u32 25, %s14
      %s168 = smul.u32 25, %s14
      %p169 = scmp.lt.s32.totalorder %s168, 49
      %s170 = scalar_select %p169, %s168, 49
      %s171 = smul.addr %s170, 4
      %s172 = scalar_lea.vmem %s3, %s171
      %s173 = smul.u32 25, %s14
      %v175 = vld [vmem:[%s166] sm:$0xf]
      %v176 = vld [vmem:[%s166 + $0x4] sm:$0xf]
      %v177 = vld [vmem:[%s166 + $0x8] sm:$0xf]
      %v178 = vld [vmem:[%s166 + $0xc] sm:$0xf]
      %v179 = vld [vmem:[%s166 + $0x10] sm:$0xf]
      %v180 = vld [vmem:[%s166 + $0x14] sm:$0xf]
      %v181 = vld [vmem:[%s166 + $0x18] sm:$0xf]
      %v182 = vld [vmem:[%s166 + $0x1c] sm:$0xf]
      %v183 = vld [vmem:[%s166 + $0x20] sm:$0xf]
      %v184 = vld [vmem:[%s166 + $0x24] sm:$0xf]
      %v185 = vld [vmem:[%s166 + $0x28] sm:$0xf]
      %v186 = vld [vmem:[%s166 + $0x2c] sm:$0xf]
      %v187 = vld [vmem:[%s166 + $0x30] sm:$0xf]
      %v188 = vld [vmem:[%s166 + $0x34] sm:$0xf]
      %v189 = vld [vmem:[%s166 + $0x38] sm:$0xf]
      %v190 = vld [vmem:[%s166 + $0x3c] sm:$0xf]
      %v191 = vld [vmem:[%s166 + $0x40] sm:$0xf]
      %v192 = vld [vmem:[%s166 + $0x44] sm:$0xf]
      %v193 = vld [vmem:[%s166 + $0x48] sm:$0xf]
      %v194 = vld [vmem:[%s166 + $0x4c] sm:$0xf]
      %v195 = vld [vmem:[%s166 + $0x50] sm:$0xf]
      %v196 = vld [vmem:[%s166 + $0x54] sm:$0xf]
      %v197 = vld [vmem:[%s166 + $0x58] sm:$0xf]
      %v198 = vld [vmem:[%s166 + $0x5c] sm:$0xf]
      %v199 = vld [vmem:[%s166 + $0x60] sm:$0xf]
      %v200 = vld [vmem:[%s1] sm:$0xff]
      %v201 = vld [vmem:[%s1 + $0x8] sm:$0xff]
      %v202 = vld [vmem:[%s1 + $0x10] sm:$0xff]
      %v203 = vld [vmem:[%s1 + $0x18] sm:$0xff]
      %v204 = vld [vmem:[%s1 + $0x20] sm:$0xff]
      %v205 = vld [vmem:[%s1 + $0x28] sm:$0xff]
      %v206 = vld [vmem:[%s1 + $0x30] sm:$0xff]
      %v207 = vld [vmem:[%s1 + $0x38] sm:$0xff]
      %v208 = vld [vmem:[%s1 + $0x40] sm:$0xff]
      %v209 = vld [vmem:[%s1 + $0x48] sm:$0xff]
      %v210 = vld [vmem:[%s1 + $0x50] sm:$0xff]
      %v211 = vld [vmem:[%s1 + $0x58] sm:$0xff]
      %v212 = vld [vmem:[%s1 + $0x60] sm:$0xff]
      %v213 = vld [vmem:[%s1 + $0x68] sm:$0xff]
      %v214 = vld [vmem:[%s1 + $0x70] sm:$0xff]
      %v215 = vld [vmem:[%s1 + $0x78] sm:$0xff]
      %v216 = vld [vmem:[%s1 + $0x80] sm:$0xff]
      %v217 = vld [vmem:[%s1 + $0x88] sm:$0xff]
      %v218 = vld [vmem:[%s1 + $0x90] sm:$0xff]
      %v219 = vld [vmem:[%s1 + $0x98] sm:$0xff]
      %v220 = vld [vmem:[%s1 + $0xa0] sm:$0xff]
      %v221 = vld [vmem:[%s1 + $0xa8] sm:$0xff]
      %v222 = vld [vmem:[%s1 + $0xb0] sm:$0xff]
      %v223 = vld [vmem:[%s1 + $0xb8] sm:$0xff]
      %v224 = vld [vmem:[%s1 + $0xc0] sm:$0xff]
      %v225 = vld [vmem:[%s1 + $0xc8] sm:$0xff]
      %v226 = vld [vmem:[%s1 + $0xd0] sm:$0xff]
      %v227 = vld [vmem:[%s1 + $0xd8] sm:$0xff]
      %v228 = vld [vmem:[%s1 + $0xe0] sm:$0xff]
      %v229 = vld [vmem:[%s1 + $0xe8] sm:$0xff]
      %v230 = vld [vmem:[%s1 + $0xf0] sm:$0xff]
      %v231 = vld [vmem:[%s1 + $0xf8] sm:$0xff]
      %v257 = vunpack.c.l.b16 %v175
      %v258 = vunpack.c.l.b16 %v176
      %v259 = vunpack.c.l.b16 %v177
      %v260 = vunpack.c.l.b16 %v178
      %v261 = vunpack.c.l.b16 %v179
      %v262 = vunpack.c.l.b16 %v180
      %v263 = vunpack.c.l.b16 %v181
      %v264 = vunpack.c.l.b16 %v182
      %v265 = vunpack.c.l.b16 %v183
      %v266 = vunpack.c.l.b16 %v184
      %v267 = vunpack.c.l.b16 %v185
      %v268 = vunpack.c.l.b16 %v186
      %v269 = vunpack.c.l.b16 %v187
      %v270 = vunpack.c.l.b16 %v188
      %v271 = vunpack.c.l.b16 %v189
      %v272 = vunpack.c.l.b16 %v190
      %v273 = vunpack.c.l.b16 %v191
      %v274 = vunpack.c.l.b16 %v192
      %v275 = vunpack.c.l.b16 %v193
      %v276 = vunpack.c.l.b16 %v194
      %v277 = vunpack.c.l.b16 %v195
      %v278 = vunpack.c.l.b16 %v196
      %v279 = vunpack.c.l.b16 %v197
      %v280 = vunpack.c.l.b16 %v198
      %v281 = vunpack.c.l.b16 %v199
      %v282 = vpack.c.b16 %v258, %v257
      %v283 = vpack.c.b16 %v260, %v259
      %v284 = vpack.c.b16 %v262, %v261
      %v285 = vpack.c.b16 %v264, %v263
      %v286 = vpack.c.b16 %v266, %v265
      %v287 = vpack.c.b16 %v268, %v267
      %v288 = vpack.c.b16 %v270, %v269
      %v289 = vpack.c.b16 %v272, %v271
      %v290 = vpack.c.b16 %v274, %v273
      %v291 = vpack.c.b16 %v276, %v275
      %v292 = vpack.c.b16 %v278, %v277
      %v293 = vpack.c.b16 %v280, %v279
      %v294 = vpack.c.b16 %v281, %v281
      %v340 = vunpack.c.l.b16 %v200
      %v341 = vunpack.c.h.b16 %v200
      %v342 = vunpack.c.l.b16 %v201
      %v343 = vunpack.c.h.b16 %v201
      %v344 = vunpack.c.l.b16 %v202
      %v345 = vunpack.c.h.b16 %v202
      %v346 = vunpack.c.l.b16 %v203
      %v347 = vunpack.c.h.b16 %v203
      %v348 = vunpack.c.l.b16 %v204
      %v349 = vunpack.c.h.b16 %v204
      %v350 = vunpack.c.l.b16 %v205
      %v351 = vunpack.c.h.b16 %v205
      %v352 = vunpack.c.l.b16 %v206
      %v353 = vunpack.c.h.b16 %v206
      %v354 = vunpack.c.l.b16 %v207
      %v355 = vunpack.c.h.b16 %v207
      %v356 = vunpack.c.l.b16 %v208
      %v357 = vunpack.c.h.b16 %v208
      %v358 = vunpack.c.l.b16 %v209
      %v359 = vunpack.c.h.b16 %v209
      %v360 = vunpack.c.l.b16 %v210
      %v361 = vunpack.c.h.b16 %v210
      %v362 = vunpack.c.l.b16 %v211
      %v363 = vunpack.c.h.b16 %v211
      %v364 = vunpack.c.l.b16 %v212
      %v365 = vunpack.c.h.b16 %v212
      %v366 = vunpack.c.l.b16 %v213
      %v367 = vunpack.c.h.b16 %v213
      %v368 = vunpack.c.l.b16 %v214
      %v369 = vunpack.c.h.b16 %v214
      %v370 = vunpack.c.l.b16 %v215
      %v371 = vunpack.c.h.b16 %v215
      %v372 = vunpack.c.l.b16 %v216
      %v373 = vunpack.c.h.b16 %v216
      %v374 = vunpack.c.l.b16 %v217
      %v375 = vunpack.c.h.b16 %v217
      %v376 = vunpack.c.l.b16 %v218
      %v377 = vunpack.c.h.b16 %v218
      %v378 = vunpack.c.l.b16 %v219
      %v379 = vunpack.c.h.b16 %v219
      %v380 = vunpack.c.l.b16 %v220
      %v381 = vunpack.c.h.b16 %v220
      %v382 = vunpack.c.l.b16 %v221
      %v383 = vunpack.c.h.b16 %v221
      %v384 = vunpack.c.l.b16 %v222
      %v385 = vunpack.c.h.b16 %v222
      %v386 = vunpack.c.l.b16 %v223
      %v387 = vunpack.c.h.b16 %v223
      %v388 = vunpack.c.l.b16 %v224
      %v389 = vunpack.c.h.b16 %v224
      %v390 = vunpack.c.l.b16 %v225
      %v391 = vunpack.c.h.b16 %v225
      %v392 = vunpack.c.l.b16 %v226
      %v393 = vunpack.c.h.b16 %v226
      %v394 = vunpack.c.l.b16 %v227
      %v395 = vunpack.c.h.b16 %v227
      %v396 = vunpack.c.l.b16 %v228
      %v397 = vunpack.c.h.b16 %v228
      %v398 = vunpack.c.l.b16 %v229
      %v399 = vunpack.c.h.b16 %v229
      %v400 = vunpack.c.l.b16 %v230
      %v401 = vunpack.c.h.b16 %v230
      %v402 = vunpack.c.l.b16 %v231
      %v403 = vunpack.c.h.b16 %v231
      %v404 = vpack.c.b16 %v344, %v340
      %v405 = vpack.c.b16 %v345, %v341
      %v406 = vpack.c.b16 %v346, %v342
      %v407 = vpack.c.b16 %v347, %v343
      %v408 = vpack.c.b16 %v352, %v348
      %v409 = vpack.c.b16 %v353, %v349
      %v410 = vpack.c.b16 %v354, %v350
      %v411 = vpack.c.b16 %v355, %v351
      %v412 = vpack.c.b16 %v360, %v356
      %v413 = vpack.c.b16 %v361, %v357
      %v414 = vpack.c.b16 %v362, %v358
      %v415 = vpack.c.b16 %v363, %v359
      %v416 = vpack.c.b16 %v368, %v364
      %v417 = vpack.c.b16 %v369, %v365
      %v418 = vpack.c.b16 %v370, %v366
      %v419 = vpack.c.b16 %v371, %v367
      %v420 = vpack.c.b16 %v376, %v372
      %v421 = vpack.c.b16 %v377, %v373
      %v422 = vpack.c.b16 %v378, %v374
      %v423 = vpack.c.b16 %v379, %v375
      %v424 = vpack.c.b16 %v384, %v380
      %v425 = vpack.c.b16 %v385, %v381
      %v426 = vpack.c.b16 %v386, %v382
      %v427 = vpack.c.b16 %v387, %v383
      %v428 = vpack.c.b16 %v392, %v388
      %v429 = vpack.c.b16 %v393, %v389
      %v430 = vpack.c.b16 %v394, %v390
      %v431 = vpack.c.b16 %v395, %v391
      %v432 = vpack.c.b16 %v400, %v396
      %v433 = vpack.c.b16 %v401, %v397
      %v434 = vpack.c.b16 %v402, %v398
      %v435 = vpack.c.b16 %v403, %v399
      %468 = vmatprep.subr.bf16.mxu0 %v405
      %469 = vmatpush1.bf16.msra.mxu0 %v404
      %470 = vmatprep.subr.bf16.mxu0 %v409
      %471 = vmatpush1.bf16.msra.mxu0 %v408
      %472 = vmatprep.subr.bf16.mxu0 %v413
      %473 = vmatpush1.bf16.msra.mxu0 %v412
      %474 = vmatprep.subr.bf16.mxu0 %v417
      %475 = vmatpush1.bf16.msra.mxu0 %v416
      %476 = vmatprep.subr.bf16.mxu0 %v421
      %477 = vmatpush1.bf16.msra.mxu0 %v420
      %478 = vmatprep.subr.bf16.mxu0 %v425
      %479 = vmatpush1.bf16.msra.mxu0 %v424
      %480 = vmatprep.subr.bf16.mxu0 %v429
      %481 = vmatpush1.bf16.msra.mxu0 %v428
      %482 = vmatprep.subr.bf16.mxu0 %v433
      %483 = vmatpush1.bf16.msra.mxu0 %v432
      %484 = vmatprep.subr.bf16.mxu0 0
      %485 = vmatpush1.bf16.msra.mxu0 0
      %486 = vmatprep.subr.bf16.mxu0 0
      %487 = vmatpush1.bf16.msra.mxu0 0
      %488 = vmatprep.subr.bf16.mxu0 0
      %489 = vmatpush1.bf16.msra.mxu0 0
      %490 = vmatprep.subr.bf16.mxu0 0
      %491 = vmatpush1.bf16.msra.mxu0 0
      %492 = vmatprep.subr.bf16.mxu0 0
      %493 = vmatpush1.bf16.msra.mxu0 0
      %494 = vmatprep.subr.bf16.mxu0 0
      %495 = vmatpush1.bf16.msra.mxu0 0
      %496 = vmatprep.subr.bf16.mxu0 0
      %497 = vmatpush1.bf16.msra.mxu0 0
      %498 = vmatprep.subr.bf16.mxu0 0
      %499 = vmatpush1.bf16.msra.mxu0 0
      %500 = vmatprep.mubr.bf16.mxu0 0
      %501 = vmatmul.mubr.bf16.gmra.mrb[0].mxu0 %v282
      %v502 = vpop.f32.mrb[0].mxu0
      %v503 = vadd.f32 0.0, %v502
      %v504 = vpop.f32.mrb[0].mxu0
      %v505 = vadd.f32 0.0, %v504
      %v506 = vpop.f32.mrb[0].mxu0
      %v507 = vadd.f32 0.0, %v506
      %v508 = vpop.f32.mrb[0].mxu0
      %v509 = vadd.f32 0.0, %v508
      %510 = vmatprep.mubr.bf16.mxu0 0
      %511 = vmatmul.mubr.bf16.gmra.mrb[0].mxu0 %v283
      %v512 = vpop.f32.mrb[0].mxu0
      %v513 = vadd.f32 0.0, %v512
      %v514 = vpop.f32.mrb[0].mxu0
      %v515 = vadd.f32 0.0, %v514
      %v516 = vpop.f32.mrb[0].mxu0
      %v517 = vadd.f32 0.0, %v516
      %v518 = vpop.f32.mrb[0].mxu0
      %v519 = vadd.f32 0.0, %v518
      %520 = vmatprep.mubr.bf16.mxu0 0
      %521 = vmatmul.mubr.bf16.gmra.mrb[0].mxu0 %v284
      %v522 = vpop.f32.mrb[0].mxu0
      %v523 = vadd.f32 0.0, %v522
      %v524 = vpop.f32.mrb[0].mxu0
      %v525 = vadd.f32 0.0, %v524
      %v526 = vpop.f32.mrb[0].mxu0
      %v527 = vadd.f32 0.0, %v526
      %v528 = vpop.f32.mrb[0].mxu0
      %v529 = vadd.f32 0.0, %v528
      %530 = vmatprep.mubr.bf16.mxu0 0
      %531 = vmatmul.mubr.bf16.gmra.mrb[0].mxu0 %v285
      %v532 = vpop.f32.mrb[0].mxu0
      %v533 = vadd.f32 0.0, %v532
      %v534 = vpop.f32.mrb[0].mxu0
      %v535 = vadd.f32 0.0, %v534
      %v536 = vpop.f32.mrb[0].mxu0
      %v537 = vadd.f32 0.0, %v536
      %v538 = vpop.f32.mrb[0].mxu0
      %v539 = vadd.f32 0.0, %v538
      %540 = vmatprep.mubr.bf16.mxu0 0
      %541 = vmatmul.mubr.bf16.gmra.mrb[0].mxu0 %v286
      %v542 = vpop.f32.mrb[0].mxu0
      %v543 = vadd.f32 0.0, %v542
      %v544 = vpop.f32.mrb[0].mxu0
      %v545 = vadd.f32 0.0, %v544
      %v546 = vpop.f32.mrb[0].mxu0
      %v547 = vadd.f32 0.0, %v546
      %v548 = vpop.f32.mrb[0].mxu0
      %v549 = vadd.f32 0.0, %v548
      %550 = vmatprep.mubr.bf16.mxu0 0
      %551 = vmatmul.mubr.bf16.gmra.mrb[0].mxu0 %v287
      %v552 = vpop.f32.mrb[0].mxu0
      %v553 = vadd.f32 0.0, %v552
      %v554 = vpop.f32.mrb[0].mxu0
      %v555 = vadd.f32 0.0, %v554
      %v556 = vpop.f32.mrb[0].mxu0
      %v557 = vadd.f32 0.0, %v556
      %v558 = vpop.f32.mrb[0].mxu0
      %v559 = vadd.f32 0.0, %v558
      %560 = vmatprep.mubr.bf16.mxu0 0
      %561 = vmatmul.mubr.bf16.gmra.mrb[0].mxu0 %v288
      %v562 = vpop.f32.mrb[0].mxu0
      %v563 = vadd.f32 0.0, %v562
      %v564 = vpop.f32.mrb[0].mxu0
      %v565 = vadd.f32 0.0, %v564
      %v566 = vpop.f32.mrb[0].mxu0
      %v567 = vadd.f32 0.0, %v566
      %v568 = vpop.f32.mrb[0].mxu0
      %v569 = vadd.f32 0.0, %v568
      %570 = vmatprep.mubr.bf16.mxu0 0
      %571 = vmatmul.mubr.bf16.gmra.mrb[0].mxu0 %v289
      %v572 = vpop.f32.mrb[0].mxu0
      %v573 = vadd.f32 0.0, %v572
      %v574 = vpop.f32.mrb[0].mxu0
      %v575 = vadd.f32 0.0, %v574
      %v576 = vpop.f32.mrb[0].mxu0
      %v577 = vadd.f32 0.0, %v576
      %v578 = vpop.f32.mrb[0].mxu0
      %v579 = vadd.f32 0.0, %v578
      %580 = vmatprep.mubr.bf16.mxu0 0
      %581 = vmatmul.mubr.bf16.gmra.mrb[0].mxu0 %v290
      %v582 = vpop.f32.mrb[0].mxu0
      %v583 = vadd.f32 0.0, %v582
      %v584 = vpop.f32.mrb[0].mxu0
      %v585 = vadd.f32 0.0, %v584
      %v586 = vpop.f32.mrb[0].mxu0
      %v587 = vadd.f32 0.0, %v586
      %v588 = vpop.f32.mrb[0].mxu0
      %v589 = vadd.f32 0.0, %v588
      %590 = vmatprep.mubr.bf16.mxu0 0
      %591 = vmatmul.mubr.bf16.gmra.mrb[0].mxu0 %v291
      %v592 = vpop.f32.mrb[0].mxu0
      %v593 = vadd.f32 0.0, %v592
      %v594 = vpop.f32.mrb[0].mxu0
      %v595 = vadd.f32 0.0, %v594
      %v596 = vpop.f32.mrb[0].mxu0
      %v597 = vadd.f32 0.0, %v596
      %v598 = vpop.f32.mrb[0].mxu0
      %v599 = vadd.f32 0.0, %v598
      %600 = vmatprep.mubr.bf16.mxu0 0
      %601 = vmatmul.mubr.bf16.gmra.mrb[0].mxu0 %v292
      %v602 = vpop.f32.mrb[0].mxu0
      %v603 = vadd.f32 0.0, %v602
      %v604 = vpop.f32.mrb[0].mxu0
      %v605 = vadd.f32 0.0, %v604
      %v606 = vpop.f32.mrb[0].mxu0
      %v607 = vadd.f32 0.0, %v606
      %v608 = vpop.f32.mrb[0].mxu0
      %v609 = vadd.f32 0.0, %v608
      %610 = vmatprep.mubr.bf16.mxu0 0
      %611 = vmatmul.mubr.bf16.gmra.mrb[0].mxu0 %v293
      %v612 = vpop.f32.mrb[0].mxu0
      %v613 = vadd.f32 0.0, %v612
      %v614 = vpop.f32.mrb[0].mxu0
      %v615 = vadd.f32 0.0, %v614
      %v616 = vpop.f32.mrb[0].mxu0
      %v617 = vadd.f32 0.0, %v616
      %v618 = vpop.f32.mrb[0].mxu0
      %v619 = vadd.f32 0.0, %v618
      %620 = vmatprep.mubr.bf16.mxu0 0
      %621 = vmatmul.mubr.bf16.gmra.mrb[0].mxu0 %v294
      %v622 = vpop.f32.mrb[0].mxu0
      %v623 = vadd.f32 0.0, %v622
      %v624 = vpop.f32.mrb[0].mxu0
      %v625 = vadd.f32 0.0, %v624
      %v626 = vpop.f32.mrb[0].mxu0
      %v627 = vpop.f32.mrb[0].mxu0
      %628 = vdwg.mxu0
      %629 = vmatprep.subr.bf16.mxu0 %v407
      %630 = vmatpush1.bf16.msra.mxu0 %v406
      %631 = vmatprep.subr.bf16.mxu0 %v411
      %632 = vmatpush1.bf16.msra.mxu0 %v410
      %633 = vmatprep.subr.bf16.mxu0 %v415
      %634 = vmatpush1.bf16.msra.mxu0 %v414
      %635 = vmatprep.subr.bf16.mxu0 %v419
      %636 = vmatpush1.bf16.msra.mxu0 %v418
      %637 = vmatprep.subr.bf16.mxu0 %v423
      %638 = vmatpush1.bf16.msra.mxu0 %v422
      %639 = vmatprep.subr.bf16.mxu0 %v427
      %640 = vmatpush1.bf16.msra.mxu0 %v426
      %641 = vmatprep.subr.bf16.mxu0 %v431
      %642 = vmatpush1.bf16.msra.mxu0 %v430
      %643 = vmatprep.subr.bf16.mxu0 %v435
      %644 = vmatpush1.bf16.msra.mxu0 %v434
      %645 = vmatprep.subr.bf16.mxu0 0
      %646 = vmatpush1.bf16.msra.mxu0 0
      %647 = vmatprep.subr.bf16.mxu0 0
      %648 = vmatpush1.bf16.msra.mxu0 0
      %649 = vmatprep.subr.bf16.mxu0 0
      %650 = vmatpush1.bf16.msra.mxu0 0
      %651 = vmatprep.subr.bf16.mxu0 0
      %652 = vmatpush1.bf16.msra.mxu0 0
      %653 = vmatprep.subr.bf16.mxu0 0
      %654 = vmatpush1.bf16.msra.mxu0 0
      %655 = vmatprep.subr.bf16.mxu0 0
      %656 = vmatpush1.bf16.msra.mxu0 0
      %657 = vmatprep.subr.bf16.mxu0 0
      %658 = vmatpush1.bf16.msra.mxu0 0
      %659 = vmatprep.subr.bf16.mxu0 0
      %660 = vmatpush1.bf16.msra.mxu0 0
      %661 = vmatprep.mubr.bf16.mxu0 0
      %662 = vmatmul.mubr.bf16.gmra.mrb[0].mxu0 %v282
      %v663 = vpop.f32.mrb[0].mxu0
      %v664 = vadd.f32 0.0, %v663
      %v665 = vpop.f32.mrb[0].mxu0
      %v666 = vadd.f32 0.0, %v665
      %v667 = vpop.f32.mrb[0].mxu0
      %v668 = vadd.f32 0.0, %v667
      %v669 = vpop.f32.mrb[0].mxu0
      %v670 = vadd.f32 0.0, %v669
      %671 = vmatprep.mubr.bf16.mxu0 0
      %672 = vmatmul.mubr.bf16.gmra.mrb[0].mxu0 %v283
      %v673 = vpop.f32.mrb[0].mxu0
      %v674 = vadd.f32 0.0, %v673
      %v675 = vpop.f32.mrb[0].mxu0
      %v676 = vadd.f32 0.0, %v675
      %v677 = vpop.f32.mrb[0].mxu0
      %v678 = vadd.f32 0.0, %v677
      %v679 = vpop.f32.mrb[0].mxu0
      %v680 = vadd.f32 0.0, %v679
      %681 = vmatprep.mubr.bf16.mxu0 0
      %682 = vmatmul.mubr.bf16.gmra.mrb[0].mxu0 %v284
      %v683 = vpop.f32.mrb[0].mxu0
      %v684 = vadd.f32 0.0, %v683
      %v685 = vpop.f32.mrb[0].mxu0
      %v686 = vadd.f32 0.0, %v685
      %v687 = vpop.f32.mrb[0].mxu0
      %v688 = vadd.f32 0.0, %v687
      %v689 = vpop.f32.mrb[0].mxu0
      %v690 = vadd.f32 0.0, %v689
      %691 = vmatprep.mubr.bf16.mxu0 0
      %692 = vmatmul.mubr.bf16.gmra.mrb[0].mxu0 %v285
      %v693 = vpop.f32.mrb[0].mxu0
      %v694 = vadd.f32 0.0, %v693
      %v695 = vpop.f32.mrb[0].mxu0
      %v696 = vadd.f32 0.0, %v695
      %v697 = vpop.f32.mrb[0].mxu0
      %v698 = vadd.f32 0.0, %v697
      %v699 = vpop.f32.mrb[0].mxu0
      %v700 = vadd.f32 0.0, %v699
      %701 = vmatprep.mubr.bf16.mxu0 0
      %702 = vmatmul.mubr.bf16.gmra.mrb[0].mxu0 %v286
      %v703 = vpop.f32.mrb[0].mxu0
      %v704 = vadd.f32 0.0, %v703
      %v705 = vpop.f32.mrb[0].mxu0
      %v706 = vadd.f32 0.0, %v705
      %v707 = vpop.f32.mrb[0].mxu0
      %v708 = vadd.f32 0.0, %v707
      %v709 = vpop.f32.mrb[0].mxu0
      %v710 = vadd.f32 0.0, %v709
      %711 = vmatprep.mubr.bf16.mxu0 0
      %712 = vmatmul.mubr.bf16.gmra.mrb[0].mxu0 %v287
      %v713 = vpop.f32.mrb[0].mxu0
      %v714 = vadd.f32 0.0, %v713
      %v715 = vpop.f32.mrb[0].mxu0
      %v716 = vadd.f32 0.0, %v715
      %v717 = vpop.f32.mrb[0].mxu0
      %v718 = vadd.f32 0.0, %v717
      %v719 = vpop.f32.mrb[0].mxu0
      %v720 = vadd.f32 0.0, %v719
      %721 = vmatprep.mubr.bf16.mxu0 0
      %722 = vmatmul.mubr.bf16.gmra.mrb[0].mxu0 %v288
      %v723 = vpop.f32.mrb[0].mxu0
      %v724 = vadd.f32 0.0, %v723
      %v725 = vpop.f32.mrb[0].mxu0
      %v726 = vadd.f32 0.0, %v725
      %v727 = vpop.f32.mrb[0].mxu0
      %v728 = vadd.f32 0.0, %v727
      %v729 = vpop.f32.mrb[0].mxu0
      %v730 = vadd.f32 0.0, %v729
      %731 = vmatprep.mubr.bf16.mxu0 0
      %732 = vmatmul.mubr.bf16.gmra.mrb[0].mxu0 %v289
      %v733 = vpop.f32.mrb[0].mxu0
      %v734 = vadd.f32 0.0, %v733
      %v735 = vpop.f32.mrb[0].mxu0
      %v736 = vadd.f32 0.0, %v735
      %v737 = vpop.f32.mrb[0].mxu0
      %v738 = vadd.f32 0.0, %v737
      %v739 = vpop.f32.mrb[0].mxu0
      %v740 = vadd.f32 0.0, %v739
      %741 = vmatprep.mubr.bf16.mxu0 0
      %742 = vmatmul.mubr.bf16.gmra.mrb[0].mxu0 %v290
      %v743 = vpop.f32.mrb[0].mxu0
      %v744 = vadd.f32 0.0, %v743
      %v745 = vpop.f32.mrb[0].mxu0
      %v746 = vadd.f32 0.0, %v745
      %v747 = vpop.f32.mrb[0].mxu0
      %v748 = vadd.f32 0.0, %v747
      %v749 = vpop.f32.mrb[0].mxu0
      %v750 = vadd.f32 0.0, %v749
      %751 = vmatprep.mubr.bf16.mxu0 0
      %752 = vmatmul.mubr.bf16.gmra.mrb[0].mxu0 %v291
      %v753 = vpop.f32.mrb[0].mxu0
      %v754 = vadd.f32 0.0, %v753
      %v755 = vpop.f32.mrb[0].mxu0
      %v756 = vadd.f32 0.0, %v755
      %v757 = vpop.f32.mrb[0].mxu0
      %v758 = vadd.f32 0.0, %v757
      %v759 = vpop.f32.mrb[0].mxu0
      %v760 = vadd.f32 0.0, %v759
      %761 = vmatprep.mubr.bf16.mxu0 0
      %762 = vmatmul.mubr.bf16.gmra.mrb[0].mxu0 %v292
      %v763 = vpop.f32.mrb[0].mxu0
      %v764 = vadd.f32 0.0, %v763
      %v765 = vpop.f32.mrb[0].mxu0
      %v766 = vadd.f32 0.0, %v765
      %v767 = vpop.f32.mrb[0].mxu0
      %v768 = vadd.f32 0.0, %v767
      %v769 = vpop.f32.mrb[0].mxu0
      %v770 = vadd.f32 0.0, %v769
      %771 = vmatprep.mubr.bf16.mxu0 0
      %772 = vmatmul.mubr.bf16.gmra.mrb[0].mxu0 %v293
      %v773 = vpop.f32.mrb[0].mxu0
      %v774 = vadd.f32 0.0, %v773
      %v775 = vpop.f32.mrb[0].mxu0
      %v776 = vadd.f32 0.0, %v775
      %v777 = vpop.f32.mrb[0].mxu0
      %v778 = vadd.f32 0.0, %v777
      %v779 = vpop.f32.mrb[0].mxu0
      %v780 = vadd.f32 0.0, %v779
      %781 = vmatprep.mubr.bf16.mxu0 0
      %782 = vmatmul.mubr.bf16.gmra.mrb[0].mxu0 %v294
      %v783 = vpop.f32.mrb[0].mxu0
      %v784 = vadd.f32 0.0, %v783
      %v785 = vpop.f32.mrb[0].mxu0
      %v786 = vadd.f32 0.0, %v785
      %v787 = vpop.f32.mrb[0].mxu0
      %v788 = vpop.f32.mrb[0].mxu0
      %789 = vdwg.mxu0
      %v790 = vmax.f32 %v503, %v505
      %v791 = vmax.f32 %v507, %v509
      %v792 = vmax.f32 %v513, %v515
      %v793 = vmax.f32 %v517, %v519
      %v794 = vmax.f32 %v523, %v525
      %v795 = vmax.f32 %v527, %v529
      %v796 = vmax.f32 %v533, %v535
      %v797 = vmax.f32 %v537, %v539
      %v798 = vmax.f32 %v543, %v545
      %v799 = vmax.f32 %v547, %v549
      %v800 = vmax.f32 %v553, %v555
      %v801 = vmax.f32 %v557, %v559
      %v802 = vmax.f32 %v563, %v565
      %v803 = vmax.f32 %v567, %v569
      %v804 = vmax.f32 %v573, %v575
      %v805 = vmax.f32 %v577, %v579
      %v806 = vmax.f32 %v583, %v585
      %v807 = vmax.f32 %v587, %v589
      %v808 = vmax.f32 %v593, %v595
      %v809 = vmax.f32 %v597, %v599
      %v810 = vmax.f32 %v603, %v605
      %v811 = vmax.f32 %v607, %v609
      %v812 = vmax.f32 %v613, %v615
      %v813 = vmax.f32 %v617, %v619
      %v814 = vmax.f32 %v623, %v625
      %v815 = vmax.f32 %v664, %v666
      %v816 = vmax.f32 %v668, %v670
      %v817 = vmax.f32 %v674, %v676
      %v818 = vmax.f32 %v678, %v680
      %v819 = vmax.f32 %v684, %v686
      %v820 = vmax.f32 %v688, %v690
      %v821 = vmax.f32 %v694, %v696
      %v822 = vmax.f32 %v698, %v700
      %v823 = vmax.f32 %v704, %v706
      %v824 = vmax.f32 %v708, %v710
      %v825 = vmax.f32 %v714, %v716
      %v826 = vmax.f32 %v718, %v720
      %v827 = vmax.f32 %v724, %v726
      %v828 = vmax.f32 %v728, %v730
      %v829 = vmax.f32 %v734, %v736
      %v830 = vmax.f32 %v738, %v740
      %v831 = vmax.f32 %v744, %v746
      %v832 = vmax.f32 %v748, %v750
      %v833 = vmax.f32 %v754, %v756
      %v834 = vmax.f32 %v758, %v760
      %v835 = vmax.f32 %v764, %v766
      %v836 = vmax.f32 %v768, %v770
      %v837 = vmax.f32 %v774, %v776
      %v838 = vmax.f32 %v778, %v780
      %v839 = vmax.f32 %v784, %v786
      %v840 = vmax.f32 %v790, %v815
      %v841 = vmax.f32 %v791, %v816
      %v842 = vmax.f32 %v792, %v817
      %v843 = vmax.f32 %v793, %v818
      %v844 = vmax.f32 %v794, %v819
      %v845 = vmax.f32 %v795, %v820
      %v846 = vmax.f32 %v796, %v821
      %v847 = vmax.f32 %v797, %v822
      %v848 = vmax.f32 %v798, %v823
      %v849 = vmax.f32 %v799, %v824
      %v850 = vmax.f32 %v800, %v825
      %v851 = vmax.f32 %v801, %v826
      %v852 = vmax.f32 %v802, %v827
      %v853 = vmax.f32 %v803, %v828
      %v854 = vmax.f32 %v804, %v829
      %v855 = vmax.f32 %v805, %v830
      %v856 = vmax.f32 %v806, %v831
      %v857 = vmax.f32 %v807, %v832
      %v858 = vmax.f32 %v808, %v833
      %v859 = vmax.f32 %v809, %v834
      %v860 = vmax.f32 %v810, %v835
      %v861 = vmax.f32 %v811, %v836
      %v862 = vmax.f32 %v812, %v837
      %v863 = vmax.f32 %v813, %v838
      %v864 = vmax.f32 %v814, %v839
      %v865 = vld [vmem:[%s2] sm:$0x1]
      %v867 = vlaneseq
      %v868 = vshrl.u32 %v867, 7
      %v869 = vsub.s32 0, %v868
      %v870 = vrot.slane %v865, %v869
      %v872 = vadd.f32 %v840, %v870
      %v873 = vadd.f32 %v841, %v870
      %v874 = vadd.f32 %v842, %v870
      %v875 = vadd.f32 %v843, %v870
      %v876 = vadd.f32 %v844, %v870
      %v877 = vadd.f32 %v845, %v870
      %v878 = vadd.f32 %v846, %v870
      %v879 = vadd.f32 %v847, %v870
      %v880 = vadd.f32 %v848, %v870
      %v881 = vadd.f32 %v849, %v870
      %v882 = vadd.f32 %v850, %v870
      %v883 = vadd.f32 %v851, %v870
      %v884 = vadd.f32 %v852, %v870
      %v885 = vadd.f32 %v853, %v870
      %v886 = vadd.f32 %v854, %v870
      %v887 = vadd.f32 %v855, %v870
      %v888 = vadd.f32 %v856, %v870
      %v889 = vadd.f32 %v857, %v870
      %v890 = vadd.f32 %v858, %v870
      %v891 = vadd.f32 %v859, %v870
      %v892 = vadd.f32 %v860, %v870
      %v893 = vadd.f32 %v861, %v870
      %v894 = vadd.f32 %v862, %v870
      %v895 = vadd.f32 %v863, %v870
      %v896 = vadd.f32 %v864, %v870
      %v897 = vmax.f32 %v872, 0.0
      %v898 = vmax.f32 %v873, 0.0
      %v899 = vmax.f32 %v874, 0.0
      %v900 = vmax.f32 %v875, 0.0
      %v901 = vmax.f32 %v876, 0.0
      %v902 = vmax.f32 %v877, 0.0
      %v903 = vmax.f32 %v878, 0.0
      %v904 = vmax.f32 %v879, 0.0
      %v905 = vmax.f32 %v880, 0.0
      %v906 = vmax.f32 %v881, 0.0
      %v907 = vmax.f32 %v882, 0.0
      %v908 = vmax.f32 %v883, 0.0
      %v909 = vmax.f32 %v884, 0.0
      %v910 = vmax.f32 %v885, 0.0
      %v911 = vmax.f32 %v886, 0.0
      %v912 = vmax.f32 %v887, 0.0
      %v913 = vmax.f32 %v888, 0.0
      %v914 = vmax.f32 %v889, 0.0
      %v915 = vmax.f32 %v890, 0.0
      %v916 = vmax.f32 %v891, 0.0
      %v917 = vmax.f32 %v892, 0.0
      %v918 = vmax.f32 %v893, 0.0
      %v919 = vmax.f32 %v894, 0.0
      %v920 = vmax.f32 %v895, 0.0
      %v921 = vmax.f32 %v896, 0.0
      %v922 = vpack.c.bf16 %v898, %v897
      %v923 = vpack.c.bf16 %v900, %v899
      %v924 = vpack.c.bf16 %v902, %v901
      %v925 = vpack.c.bf16 %v904, %v903
      %v926 = vpack.c.bf16 %v906, %v905
      %v927 = vpack.c.bf16 %v908, %v907
      %v928 = vpack.c.bf16 %v910, %v909
      %v929 = vpack.c.bf16 %v912, %v911
      %v930 = vpack.c.bf16 %v914, %v913
      %v931 = vpack.c.bf16 %v916, %v915
      %v932 = vpack.c.bf16 %v918, %v917
      %v933 = vpack.c.bf16 %v920, %v919
      %v934 = vpack.c.bf16 %v921, %v921
      %v948 = vunpack.c.l.b16 %v922
      %v949 = vunpack.c.h.b16 %v922
      %v950 = vunpack.c.l.b16 %v923
      %v951 = vunpack.c.h.b16 %v923
      %v952 = vunpack.c.l.b16 %v924
      %v953 = vunpack.c.h.b16 %v924
      %v954 = vunpack.c.l.b16 %v925
      %v955 = vunpack.c.h.b16 %v925
      %v956 = vunpack.c.l.b16 %v926
      %v957 = vunpack.c.h.b16 %v926
      %v958 = vunpack.c.l.b16 %v927
      %v959 = vunpack.c.h.b16 %v927
      %v960 = vunpack.c.l.b16 %v928
      %v961 = vunpack.c.h.b16 %v928
      %v962 = vunpack.c.l.b16 %v929
      %v963 = vunpack.c.h.b16 %v929
      %v964 = vunpack.c.l.b16 %v930
      %v965 = vunpack.c.h.b16 %v930
      %v966 = vunpack.c.l.b16 %v931
      %v967 = vunpack.c.h.b16 %v931
      %v968 = vunpack.c.l.b16 %v932
      %v969 = vunpack.c.h.b16 %v932
      %v970 = vunpack.c.l.b16 %v933
      %v971 = vunpack.c.h.b16 %v933
      %v972 = vunpack.c.l.b16 %v934
      %v973 = vpack.c.b16 %v948, %v948
      %v974 = vpack.c.b16 %v949, %v949
      %v975 = vpack.c.b16 %v950, %v950
      %v976 = vpack.c.b16 %v951, %v951
      %v977 = vpack.c.b16 %v952, %v952
      %v978 = vpack.c.b16 %v953, %v953
      %v979 = vpack.c.b16 %v954, %v954
      %v980 = vpack.c.b16 %v955, %v955
      %v981 = vpack.c.b16 %v956, %v956
      %v982 = vpack.c.b16 %v957, %v957
      %v983 = vpack.c.b16 %v958, %v958
      %v984 = vpack.c.b16 %v959, %v959
      %v985 = vpack.c.b16 %v960, %v960
      %v986 = vpack.c.b16 %v961, %v961
      %v987 = vpack.c.b16 %v962, %v962
      %v988 = vpack.c.b16 %v963, %v963
      %v989 = vpack.c.b16 %v964, %v964
      %v990 = vpack.c.b16 %v965, %v965
      %v991 = vpack.c.b16 %v966, %v966
      %v992 = vpack.c.b16 %v967, %v967
      %v993 = vpack.c.b16 %v968, %v968
      %v994 = vpack.c.b16 %v969, %v969
      %v995 = vpack.c.b16 %v970, %v970
      %v996 = vpack.c.b16 %v971, %v971
      %v997 = vpack.c.b16 %v972, %v972
      %1023 = vst [vmem:[%s172] sm:$0xf] %v973
      %1024 = vst [vmem:[%s172 + $0x4] sm:$0xf] %v974
      %1025 = vst [vmem:[%s172 + $0x8] sm:$0xf] %v975
      %1026 = vst [vmem:[%s172 + $0xc] sm:$0xf] %v976
      %1027 = vst [vmem:[%s172 + $0x10] sm:$0xf] %v977
      %1028 = vst [vmem:[%s172 + $0x14] sm:$0xf] %v978
      %1029 = vst [vmem:[%s172 + $0x18] sm:$0xf] %v979
      %1030 = vst [vmem:[%s172 + $0x1c] sm:$0xf] %v980
      %1031 = vst [vmem:[%s172 + $0x20] sm:$0xf] %v981
      %1032 = vst [vmem:[%s172 + $0x24] sm:$0xf] %v982
      %1033 = vst [vmem:[%s172 + $0x28] sm:$0xf] %v983
      %1034 = vst [vmem:[%s172 + $0x2c] sm:$0xf] %v984
      %1035 = vst [vmem:[%s172 + $0x30] sm:$0xf] %v985
      %1036 = vst [vmem:[%s172 + $0x34] sm:$0xf] %v986
      %1037 = vst [vmem:[%s172 + $0x38] sm:$0xf] %v987
      %1038 = vst [vmem:[%s172 + $0x3c] sm:$0xf] %v988
      %1039 = vst [vmem:[%s172 + $0x40] sm:$0xf] %v989
      %1040 = vst [vmem:[%s172 + $0x44] sm:$0xf] %v990
      %1041 = vst [vmem:[%s172 + $0x48] sm:$0xf] %v991
      %1042 = vst [vmem:[%s172 + $0x4c] sm:$0xf] %v992
      %1043 = vst [vmem:[%s172 + $0x50] sm:$0xf] %v993
      %1044 = vst [vmem:[%s172 + $0x54] sm:$0xf] %v994
      %1045 = vst [vmem:[%s172 + $0x58] sm:$0xf] %v995
      %1046 = vst [vmem:[%s172 + $0x5c] sm:$0xf] %v996
      %1047 = vst [vmem:[%s172 + $0x60] sm:$0xf] %v997
      %s1048 = smul.u32 25, %s14
      %p1049 = scmp.lt.s32.totalorder %s1048, 49
      %s1050 = scalar_select %p1049, %s1048, 49
      %s1051 = smul.addr %s1050, 4
      %s1052 = scalar_lea.vmem %s3, %s1051
      // Predicated region
      $region33: #{forward.3} parent=31 // pred_check
        %p1053 = pneg %p100
      $region34: #{forward.3} parent=31 // pred_check_branch
        %1055 = sbr.rel (%p1053) target = $region36
      $region35: #{forward.3} parent=31 // pred_region
        %s1056 = smul.u32 25, %s14
      $region36: #{forward.3} parent=31 // pred_fallthru
        _
    $region32: #{forward.3} parent=5 // pred_fallthru
      _
    %p1057 = scmp.le.s32.totalorder 2, %s9
    // Predicated region
    $region37: #{forward.3} parent=5 // pred_check
      %p1058 = pneg %p1057
    $region38: #{forward.3} parent=5 // pred_check_branch
      %1060 = sbr.rel (%p1058) target = $region40
    $region39: #{forward.3} parent=5 // pred_region
      %s1061 = ssub.s32 %s9, 2
      // Predicated region
      $region41: #{forward.3} parent=39 // pred_check
        %p1062 = pneg %p106
      $region42: #{forward.3} parent=39 // pred_check_branch
        %1064 = sbr.rel (%p1062) target = $region44
      $region43: #{forward.3} parent=39 // pred_region
        %s1065 = smul.u32 25, %s15
        %p1066 = scmp.lt.s32.totalorder %s1065, 49
        %s1067 = scalar_select %p1066, %s1065, 49
        %s1068 = smul.addr %s1067, 4
        %s1069 = scalar_lea.vmem %s3, %s1068
      $region44: #{forward.3} parent=39 // pred_fallthru
        _
    $region40: #{forward.3} parent=5 // pred_fallthru
      _
  $region6: #{forward.3} parent=0 // loop_footer
    %s13 = sadd.s32 1, %s9
  $region7: #{forward.3} parent=0 // loop_footer_branch
    %8 = sbr.rel target = $region3
  $region8: #{forward.3} parent=0 // loop_exit
    _

// kernel: forward.4
$region0: #{forward.4}
  #allocation0 [shape = 'u32[]', space=smem, size = 0x4, offset = 0x4, fixed_abs, tag = 'smem constant byte address 0x4 - core index']
  #allocation1 [shape = 'u32[144,128]{1,0:T(1,128)}', space=vmem, size = 0x12000, scoped, tag = 'internal scratch']
  %s0 = inlined_call_operand.vmem [shape: bf16[64,640], index: 0, kind: input, shape index: {}]
  %s1 = inlined_call_operand.vmem [shape: bf16[640,512], index: 1, kind: input, shape index: {}]
  %s2 = inlined_call_operand.vmem [shape: f32[1,128], index: 2, kind: input, shape index: {}]
  %s3 = inlined_call_operand.vmem [shape: bf16[64,128], index: 3, kind: output, shape index: {}]
  %s4 = sld [smem:[#allocation0]]
  $region45: #{forward.4} parent=0
    _
  %s6 = ssub.s32 1, %s4
  %s7 = scalar_select 0, %s6, %s4
  loop: start=0, step=1, limit=4
  $region2: #{forward.4} parent=0 // loop_pre_header
    _
  $region3: #{forward.4} parent=0 // loop_header
    %s9 = sphi 0, %s13
    %p10 = scmp.ge.s32.totalorder %s9, 4
    %s19 = sphi 0, %s21
    %s22 = sphi 0, %s19
    %s23 = sphi 0, %s22
    %s39 = sphi 0, %s23
    %s43 = sphi 0, %s43
    %s45 = sphi 0, %s43
    %s46 = sphi 0, %s45
    %s60 = sphi 0, %s46
    %s64 = sphi 0, %s64
    %s66 = sphi 0, %s64
    %s67 = sphi 0, %s66
    %s81 = sphi 0, %s67
    %s87 = sphi 0, %s89
    %s90 = sphi 0, %s87
    %s91 = sphi 0, %s90
    %s107 = sphi 0, %s91
  $region4: #{forward.4} parent=0 // loop_header_branch
    %12 = sbr.rel (%p10) target = $region8
  $region5: #{forward.4} parent=0 // loop_body
    %s14 = ssub.s32 %s9, 1
    %s15 = ssub.s32 %s9, 2
    %s16 = sadd.s32 %s9, 1
    %s17 = ssub.s32 %s9, %s16
    %p18 = scmp.eq.s32.totalorder %s17, 0
    %s20 = sadd.s32 %s19, 1
    %s21 = scalar_select %p18, %s19, %s20
    %p24 = pneg %p18
    %p25 = scmp.eq.s32.totalorder %s9, 1
    %p26 = por %p24, %p25
    %p27 = scmp.ne.s32.totalorder %s19, %s22
    %p28 = scmp.eq.s32.totalorder %s9, 0
    %p29 = por %p27, %p28
    %p30 = scmp.ne.s32.totalorder %s19, %s22
    %p31 = scmp.eq.s32.totalorder %s14, 1
    %p32 = por %p30, %p31
    %p33 = scmp.ne.s32.totalorder %s22, %s23
    %p34 = scmp.eq.s32.totalorder %s14, 0
    %p35 = por %p33, %p34
    %p36 = scmp.ne.s32.totalorder %s22, %s23
    %p37 = scmp.eq.s32.totalorder %s15, 1
    %p38 = por %p36, %p37
    %p40 = scmp.ne.s32.totalorder %s23, %s39
    %p41 = scmp.eq.s32.totalorder %s15, 0
    %p42 = por %p40, %p41
    %s44 = sadd.s32 %s43, 1
    %p47 = scmp.eq.s32.totalorder %s9, 1
    %p48 = scmp.ne.s32.totalorder %s43, %s45
    %p49 = scmp.eq.s32.totalorder %s9, 0
    %p50 = por %p48, %p49
    %p51 = scmp.ne.s32.totalorder %s43, %s45
    %p52 = scmp.eq.s32.totalorder %s14, 1
    %p53 = por %p51, %p52
    %p54 = scmp.ne.s32.totalorder %s45, %s46
    %p55 = scmp.eq.s32.totalorder %s14, 0
    %p56 = por %p54, %p55
    %p57 = scmp.ne.s32.totalorder %s45, %s46
    %p58 = scmp.eq.s32.totalorder %s15, 1
    %p59 = por %p57, %p58
    %p61 = scmp.ne.s32.totalorder %s46, %s60
    %p62 = scmp.eq.s32.totalorder %s15, 0
    %p63 = por %p61, %p62
    %s65 = sadd.s32 %s64, 1
    %p68 = scmp.eq.s32.totalorder %s9, 1
    %p69 = scmp.ne.s32.totalorder %s64, %s66
    %p70 = scmp.eq.s32.totalorder %s9, 0
    %p71 = por %p69, %p70
    %p72 = scmp.ne.s32.totalorder %s64, %s66
    %p73 = scmp.eq.s32.totalorder %s14, 1
    %p74 = por %p72, %p73
    %p75 = scmp.ne.s32.totalorder %s66, %s67
    %p76 = scmp.eq.s32.totalorder %s14, 0
    %p77 = por %p75, %p76
    %p78 = scmp.ne.s32.totalorder %s66, %s67
    %p79 = scmp.eq.s32.totalorder %s15, 1
    %p80 = por %p78, %p79
    %p82 = scmp.ne.s32.totalorder %s67, %s81
    %p83 = scmp.eq.s32.totalorder %s15, 0
    %p84 = por %p82, %p83
    %s85 = ssub.s32 %s9, %s16
    %p86 = scmp.eq.s32.totalorder %s85, 0
    %s88 = sadd.s32 %s87, 1
    %s89 = scalar_select %p86, %s87, %s88
    %p92 = pneg %p86
    %p93 = scmp.eq.s32.totalorder %s9, 1
    %p94 = por %p92, %p93
    %p95 = scmp.ne.s32.totalorder %s87, %s90
    %p96 = scmp.eq.s32.totalorder %s9, 0
    %p97 = por %p95, %p96
    %p98 = scmp.ne.s32.totalorder %s87, %s90
    %p99 = scmp.eq.s32.totalorder %s14, 1
    %p100 = por %p98, %p99
    %p101 = scmp.ne.s32.totalorder %s90, %s91
    %p102 = scmp.eq.s32.totalorder %s14, 0
    %p103 = por %p101, %p102
    %p104 = scmp.ne.s32.totalorder %s90, %s91
    %p105 = scmp.eq.s32.totalorder %s15, 1
    %p106 = por %p104, %p105
    %p108 = scmp.ne.s32.totalorder %s91, %s107
    %p109 = scmp.eq.s32.totalorder %s15, 0
    %p110 = por %p108, %p109
    %p111 = scmp.le.s32.totalorder 1, %s9
    %p112 = scmp.lt.s32.totalorder %s9, 3
    %p113 = pnand %p111, %p112
    %p114 = pneg %p113
    // Predicated region
    $region9: #{forward.4} parent=5 // pred_check
      _
    $region10: #{forward.4} parent=5 // pred_check_branch
      %116 = sbr.rel (%p113) target = $region12
    $region11: #{forward.4} parent=5 // pred_region
      %s117 = ssub.s32 %s9, 1
      // Predicated region
      $region13: #{forward.4} parent=11 // pred_check
        %p118 = pneg %p56
      $region14: #{forward.4} parent=11 // pred_check_branch
        %120 = sbr.rel (%p118) target = $region16
      $region15: #{forward.4} parent=11 // pred_region
        _
      $region16: #{forward.4} parent=11 // pred_fallthru
        _
      // Predicated region
      $region17: #{forward.4} parent=11 // pred_check
        %p121 = pneg %p77
      $region18: #{forward.4} parent=11 // pred_check_branch
        %123 = sbr.rel (%p121) target = $region20
      $region19: #{forward.4} parent=11 // pred_region
        _
      $region20: #{forward.4} parent=11 // pred_fallthru
        _
    $region12: #{forward.4} parent=5 // pred_fallthru
      _
    %p124 = scmp.lt.s32.totalorder %s9, 2
    // Predicated region
    $region21: #{forward.4} parent=5 // pred_check
      %p125 = pneg %p124
    $region22: #{forward.4} parent=5 // pred_check_branch
      %127 = sbr.rel (%p125) target = $region24
    $region23: #{forward.4} parent=5 // pred_region
      // Predicated region
      $region25: #{forward.4} parent=23 // pred_check
        %p128 = pneg %p29
      $region26: #{forward.4} parent=23 // pred_check_branch
        %130 = sbr.rel (%p128) target = $region28
      $region27: #{forward.4} parent=23 // pred_region
        %s131 = smul.u32 4, %s9
        %p132 = scmp.lt.s32.totalorder %s131, 7
        %s133 = scalar_select %p132, %s131, 7
        %s134 = smul.addr %s133, 5
        %s135 = smul.addr %s134, 4
        %s136 = scalar_lea.vmem %s0, %s135
        %s137 = smul.u32 4, %s9
      $region28: #{forward.4} parent=23 // pred_fallthru
        _
    $region24: #{forward.4} parent=5 // pred_fallthru
      _
    %p138 = scmp.le.s32.totalorder 1, %s9
    %p139 = scmp.lt.s32.totalorder %s9, 3
    %p140 = pnand %p138, %p139
    %p141 = pneg %p140
    // Predicated region
    $region29: #{forward.4} parent=5 // pred_check
      _
    $region30: #{forward.4} parent=5 // pred_check_branch
      %143 = sbr.rel (%p140) target = $region32
    $region31: #{forward.4} parent=5 // pred_region
      %s144 = ssub.s32 %s9, 1
      %s145 = smul.u32 4, %s14
      %p146 = scmp.lt.s32.totalorder %s145, 7
      %s147 = scalar_select %p146, %s145, 7
      %s148 = smul.addr %s147, 5
      %s149 = smul.addr %s148, 4
      %s150 = scalar_lea.vmem %s0, %s149
      %p151 = pneg %p35
      %p152 = pneg %p32
      %p153 = pneg %p56
      %p154 = pneg %p53
      %p155 = pneg %p77
      %p156 = pneg %p74
      %p157 = pneg %p103
      %p158 = pneg %p100
      %s159 = smul.u32 4, %s14
      %p160 = scmp.lt.s32.totalorder %s159, 7
      %s161 = scalar_select %p160, %s159, 7
      %s162 = smul.addr %s161, 4
      %s163 = scalar_lea.vmem %s3, %s162
      %s164 = smul.u32 4, %s14
      %p165 = scmp.lt.s32.totalorder %s164, 7
      %s166 = scalar_select %p165, %s164, 7
      %s167 = smul.addr %s166, 5
      %s168 = smul.addr %s167, 4
      %s169 = scalar_lea.vmem %s0, %s168
      %s170 = smul.u32 4, %s14
      %s171 = smul.u32 4, %s14
      %p172 = scmp.lt.s32.totalorder %s171, 7
      %s173 = scalar_select %p172, %s171, 7
      %s174 = smul.addr %s173, 4
      %s175 = scalar_lea.vmem %s3, %s174
      %s176 = smul.u32 4, %s14
      %v178 = vld [vmem:[%s169] sm:$0xff]
      %v179 = vld [vmem:[%s169 + $0x8] sm:$0xff]
      %v180 = vld [vmem:[%s169 + $0x10] sm:$0xf]
      %v181 = vld [vmem:[%s169 + $0x14] sm:$0xff]
      %v182 = vld [vmem:[%s169 + $0x1c] sm:$0xff]
      %v183 = vld [vmem:[%s169 + $0x24] sm:$0xf]
      %v184 = vld [vmem:[%s169 + $0x28] sm:$0xff]
      %v185 = vld [vmem:[%s169 + $0x30] sm:$0xff]
      %v186 = vld [vmem:[%s169 + $0x38] sm:$0xf]
      %v187 = vld [vmem:[%s169 + $0x3c] sm:$0xff]
      %v188 = vld [vmem:[%s169 + $0x44] sm:$0xff]
      %v189 = vld [vmem:[%s169 + $0x4c] sm:$0xf]
      %v190 = vld [vmem:[%s1] sm:$0xff]
      %v191 = vld [vmem:[%s1 + $0x8] sm:$0xff]
      %v192 = vld [vmem:[%s1 + $0x10] sm:$0xff]
      %v193 = vld [vmem:[%s1 + $0x18] sm:$0xff]
      %v194 = vld [vmem:[%s1 + $0x20] sm:$0xff]
      %v195 = vld [vmem:[%s1 + $0x28] sm:$0xff]
      %v196 = vld [vmem:[%s1 + $0x30] sm:$0xff]
      %v197 = vld [vmem:[%s1 + $0x38] sm:$0xff]
      %v198 = vld [vmem:[%s1 + $0x40] sm:$0xff]
      %v199 = vld [vmem:[%s1 + $0x48] sm:$0xff]
      %v200 = vld [vmem:[%s1 + $0x50] sm:$0xff]
      %v201 = vld [vmem:[%s1 + $0x58] sm:$0xff]
      %v202 = vld [vmem:[%s1 + $0x60] sm:$0xff]
      %v203 = vld [vmem:[%s1 + $0x68] sm:$0xff]
      %v204 = vld [vmem:[%s1 + $0x70] sm:$0xff]
      %v205 = vld [vmem:[%s1 + $0x78] sm:$0xff]
      %v206 = vld [vmem:[%s1 + $0x80] sm:$0xff]
      %v207 = vld [vmem:[%s1 + $0x88] sm:$0xff]
      %v208 = vld [vmem:[%s1 + $0x90] sm:$0xff]
      %v209 = vld [vmem:[%s1 + $0x98] sm:$0xff]
      %v210 = vld [vmem:[%s1 + $0xa0] sm:$0xff]
      %v211 = vld [vmem:[%s1 + $0xa8] sm:$0xff]
      %v212 = vld [vmem:[%s1 + $0xb0] sm:$0xff]
      %v213 = vld [vmem:[%s1 + $0xb8] sm:$0xff]
      %v214 = vld [vmem:[%s1 + $0xc0] sm:$0xff]
      %v215 = vld [vmem:[%s1 + $0xc8] sm:$0xff]
      %v216 = vld [vmem:[%s1 + $0xd0] sm:$0xff]
      %v217 = vld [vmem:[%s1 + $0xd8] sm:$0xff]
      %v218 = vld [vmem:[%s1 + $0xe0] sm:$0xff]
      %v219 = vld [vmem:[%s1 + $0xe8] sm:$0xff]
      %v220 = vld [vmem:[%s1 + $0xf0] sm:$0xff]
      %v221 = vld [vmem:[%s1 + $0xf8] sm:$0xff]
      %v222 = vld [vmem:[%s1 + $0x100] sm:$0xff]
      %v223 = vld [vmem:[%s1 + $0x108] sm:$0xff]
      %v224 = vld [vmem:[%s1 + $0x110] sm:$0xff]
      %v225 = vld [vmem:[%s1 + $0x118] sm:$0xff]
      %v226 = vld [vmem:[%s1 + $0x120] sm:$0xff]
      %v227 = vld [vmem:[%s1 + $0x128] sm:$0xff]
      %v228 = vld [vmem:[%s1 + $0x130] sm:$0xff]
      %v229 = vld [vmem:[%s1 + $0x138] sm:$0xff]
      %v230 = vld [vmem:[%s1 + $0x140] sm:$0xff]
      %v231 = vld [vmem:[%s1 + $0x148] sm:$0xff]
      %v232 = vld [vmem:[%s1 + $0x150] sm:$0xff]
      %v233 = vld [vmem:[%s1 + $0x158] sm:$0xff]
      %v234 = vld [vmem:[%s1 + $0x160] sm:$0xff]
      %v235 = vld [vmem:[%s1 + $0x168] sm:$0xff]
      %v236 = vld [vmem:[%s1 + $0x170] sm:$0xff]
      %v237 = vld [vmem:[%s1 + $0x178] sm:$0xff]
      %v238 = vld [vmem:[%s1 + $0x180] sm:$0xff]
      %v239 = vld [vmem:[%s1 + $0x188] sm:$0xff]
      %v240 = vld [vmem:[%s1 + $0x190] sm:$0xff]
      %v241 = vld [vmem:[%s1 + $0x198] sm:$0xff]
      %v242 = vld [vmem:[%s1 + $0x1a0] sm:$0xff]
      %v243 = vld [vmem:[%s1 + $0x1a8] sm:$0xff]
      %v244 = vld [vmem:[%s1 + $0x1b0] sm:$0xff]
      %v245 = vld [vmem:[%s1 + $0x1b8] sm:$0xff]
      %v246 = vld [vmem:[%s1 + $0x1c0] sm:$0xff]
      %v247 = vld [vmem:[%s1 + $0x1c8] sm:$0xff]
      %v248 = vld [vmem:[%s1 + $0x1d0] sm:$0xff]
      %v249 = vld [vmem:[%s1 + $0x1d8] sm:$0xff]
      %v250 = vld [vmem:[%s1 + $0x1e0] sm:$0xff]
      %v251 = vld [vmem:[%s1 + $0x1e8] sm:$0xff]
      %v252 = vld [vmem:[%s1 + $0x1f0] sm:$0xff]
      %v253 = vld [vmem:[%s1 + $0x1f8] sm:$0xff]
      %v254 = vld [vmem:[%s1 + $0x200] sm:$0xff]
      %v255 = vld [vmem:[%s1 + $0x208] sm:$0xff]
      %v256 = vld [vmem:[%s1 + $0x210] sm:$0xff]
      %v257 = vld [vmem:[%s1 + $0x218] sm:$0xff]
      %v258 = vld [vmem:[%s1 + $0x220] sm:$0xff]
      %v259 = vld [vmem:[%s1 + $0x228] sm:$0xff]
      %v260 = vld [vmem:[%s1 + $0x230] sm:$0xff]
      %v261 = vld [vmem:[%s1 + $0x238] sm:$0xff]
      %v262 = vld [vmem:[%s1 + $0x240] sm:$0xff]
      %v263 = vld [vmem:[%s1 + $0x248] sm:$0xff]
      %v264 = vld [vmem:[%s1 + $0x250] sm:$0xff]
      %v265 = vld [vmem:[%s1 + $0x258] sm:$0xff]
      %v266 = vld [vmem:[%s1 + $0x260] sm:$0xff]
      %v267 = vld [vmem:[%s1 + $0x268] sm:$0xff]
      %v268 = vld [vmem:[%s1 + $0x270] sm:$0xff]
      %v269 = vld [vmem:[%s1 + $0x278] sm:$0xff]
      %v270 = vld [vmem:[%s1 + $0x280] sm:$0xff]
      %v271 = vld [vmem:[%s1 + $0x288] sm:$0xff]
      %v272 = vld [vmem:[%s1 + $0x290] sm:$0xff]
      %v273 = vld [vmem:[%s1 + $0x298] sm:$0xff]
      %v274 = vld [vmem:[%s1 + $0x2a0] sm:$0xff]
      %v275 = vld [vmem:[%s1 + $0x2a8] sm:$0xff]
      %v276 = vld [vmem:[%s1 + $0x2b0] sm:$0xff]
      %v277 = vld [vmem:[%s1 + $0x2b8] sm:$0xff]
      %v278 = vld [vmem:[%s1 + $0x2c0] sm:$0xff]
      %v279 = vld [vmem:[%s1 + $0x2c8] sm:$0xff]
      %v280 = vld [vmem:[%s1 + $0x2d0] sm:$0xff]
      %v281 = vld [vmem:[%s1 + $0x2d8] sm:$0xff]
      %v282 = vld [vmem:[%s1 + $0x2e0] sm:$0xff]
      %v283 = vld [vmem:[%s1 + $0x2e8] sm:$0xff]
      %v284 = vld [vmem:[%s1 + $0x2f0] sm:$0xff]
      %v285 = vld [vmem:[%s1 + $0x2f8] sm:$0xff]
      %v286 = vld [vmem:[%s1 + $0x300] sm:$0xff]
      %v287 = vld [vmem:[%s1 + $0x308] sm:$0xff]
      %v288 = vld [vmem:[%s1 + $0x310] sm:$0xff]
      %v289 = vld [vmem:[%s1 + $0x318] sm:$0xff]
      %v290 = vld [vmem:[%s1 + $0x320] sm:$0xff]
      %v291 = vld [vmem:[%s1 + $0x328] sm:$0xff]
      %v292 = vld [vmem:[%s1 + $0x330] sm:$0xff]
      %v293 = vld [vmem:[%s1 + $0x338] sm:$0xff]
      %v294 = vld [vmem:[%s1 + $0x340] sm:$0xff]
      %v295 = vld [vmem:[%s1 + $0x348] sm:$0xff]
      %v296 = vld [vmem:[%s1 + $0x350] sm:$0xff]
      %v297 = vld [vmem:[%s1 + $0x358] sm:$0xff]
      %v298 = vld [vmem:[%s1 + $0x360] sm:$0xff]
      %v299 = vld [vmem:[%s1 + $0x368] sm:$0xff]
      %v300 = vld [vmem:[%s1 + $0x370] sm:$0xff]
      %v301 = vld [vmem:[%s1 + $0x378] sm:$0xff]
      %v302 = vld [vmem:[%s1 + $0x380] sm:$0xff]
      %v303 = vld [vmem:[%s1 + $0x388] sm:$0xff]
      %v304 = vld [vmem:[%s1 + $0x390] sm:$0xff]
      %v305 = vld [vmem:[%s1 + $0x398] sm:$0xff]
      %v306 = vld [vmem:[%s1 + $0x3a0] sm:$0xff]
      %v307 = vld [vmem:[%s1 + $0x3a8] sm:$0xff]
      %v308 = vld [vmem:[%s1 + $0x3b0] sm:$0xff]
      %v309 = vld [vmem:[%s1 + $0x3b8] sm:$0xff]
      %v310 = vld [vmem:[%s1 + $0x3c0] sm:$0xff]
      %v311 = vld [vmem:[%s1 + $0x3c8] sm:$0xff]
      %v312 = vld [vmem:[%s1 + $0x3d0] sm:$0xff]
      %v313 = vld [vmem:[%s1 + $0x3d8] sm:$0xff]
      %v314 = vld [vmem:[%s1 + $0x3e0] sm:$0xff]
      %v315 = vld [vmem:[%s1 + $0x3e8] sm:$0xff]
      %v316 = vld [vmem:[%s1 + $0x3f0] sm:$0xff]
      %v317 = vld [vmem:[%s1 + $0x3f8] sm:$0xff]
      %v318 = vld [vmem:[%s1 + $0x400] sm:$0xff]
      %v319 = vld [vmem:[%s1 + $0x408] sm:$0xff]
      %v320 = vld [vmem:[%s1 + $0x410] sm:$0xff]
      %v321 = vld [vmem:[%s1 + $0x418] sm:$0xff]
      %v322 = vld [vmem:[%s1 + $0x420] sm:$0xff]
      %v323 = vld [vmem:[%s1 + $0x428] sm:$0xff]
      %v324 = vld [vmem:[%s1 + $0x430] sm:$0xff]
      %v325 = vld [vmem:[%s1 + $0x438] sm:$0xff]
      %v326 = vld [vmem:[%s1 + $0x440] sm:$0xff]
      %v327 = vld [vmem:[%s1 + $0x448] sm:$0xff]
      %v328 = vld [vmem:[%s1 + $0x450] sm:$0xff]
      %v329 = vld [vmem:[%s1 + $0x458] sm:$0xff]
      %v330 = vld [vmem:[%s1 + $0x460] sm:$0xff]
      %v331 = vld [vmem:[%s1 + $0x468] sm:$0xff]
      %v332 = vld [vmem:[%s1 + $0x470] sm:$0xff]
      %v333 = vld [vmem:[%s1 + $0x478] sm:$0xff]
      %v334 = vld [vmem:[%s1 + $0x480] sm:$0xff]
      %v335 = vld [vmem:[%s1 + $0x488] sm:$0xff]
      %v336 = vld [vmem:[%s1 + $0x490] sm:$0xff]
      %v337 = vld [vmem:[%s1 + $0x498] sm:$0xff]
      %v338 = vld [vmem:[%s1 + $0x4a0] sm:$0xff]
      %v339 = vld [vmem:[%s1 + $0x4a8] sm:$0xff]
      %v340 = vld [vmem:[%s1 + $0x4b0] sm:$0xff]
      %v341 = vld [vmem:[%s1 + $0x4b8] sm:$0xff]
      %v342 = vld [vmem:[%s1 + $0x4c0] sm:$0xff]
      %v343 = vld [vmem:[%s1 + $0x4c8] sm:$0xff]
      %v344 = vld [vmem:[%s1 + $0x4d0] sm:$0xff]
      %v345 = vld [vmem:[%s1 + $0x4d8] sm:$0xff]
      %v346 = vld [vmem:[%s1 + $0x4e0] sm:$0xff]
      %v347 = vld [vmem:[%s1 + $0x4e8] sm:$0xff]
      %v348 = vld [vmem:[%s1 + $0x4f0] sm:$0xff]
      %v349 = vld [vmem:[%s1 + $0x4f8] sm:$0xff]
      %v362 = vunpack.c.l.b16 %v178
      %v363 = vunpack.c.h.b16 %v178
      %v364 = vunpack.c.l.b16 %v179
      %v365 = vunpack.c.h.b16 %v179
      %v366 = vunpack.c.l.b16 %v180
      %v367 = vunpack.c.l.b16 %v181
      %v368 = vunpack.c.h.b16 %v181
      %v369 = vunpack.c.l.b16 %v182
      %v370 = vunpack.c.h.b16 %v182
      %v371 = vunpack.c.l.b16 %v183
      %v372 = vunpack.c.l.b16 %v184
      %v373 = vunpack.c.h.b16 %v184
      %v374 = vunpack.c.l.b16 %v185
      %v375 = vunpack.c.h.b16 %v185
      %v376 = vunpack.c.l.b16 %v186
      %v377 = vunpack.c.l.b16 %v187
      %v378 = vunpack.c.h.b16 %v187
      %v379 = vunpack.c.l.b16 %v188
      %v380 = vunpack.c.h.b16 %v188
      %v381 = vunpack.c.l.b16 %v189
      %v382 = vpack.c.b16 %v367, %v362
      %v383 = vpack.c.b16 %v368, %v363
      %v384 = vpack.c.b16 %v369, %v364
      %v385 = vpack.c.b16 %v370, %v365
      %v386 = vpack.c.b16 %v371, %v366
      %v387 = vpack.c.b16 %v377, %v372
      %v388 = vpack.c.b16 %v378, %v373
      %v389 = vpack.c.b16 %v379, %v374
      %v390 = vpack.c.b16 %v380, %v375
      %v391 = vpack.c.b16 %v381, %v376
      %v562 = vunpack.c.l.b16 %v190
      %v563 = vunpack.c.h.b16 %v190
      %v564 = vunpack.c.l.b16 %v191
      %v565 = vunpack.c.h.b16 %v191
      %v566 = vunpack.c.l.b16 %v192
      %v567 = vunpack.c.h.b16 %v192
      %v568 = vunpack.c.l.b16 %v193
      %v569 = vunpack.c.h.b16 %v193
      %v570 = vunpack.c.l.b16 %v194
      %v571 = vunpack.c.h.b16 %v194
      %v572 = vunpack.c.l.b16 %v195
      %v573 = vunpack.c.h.b16 %v195
      %v574 = vunpack.c.l.b16 %v196
      %v575 = vunpack.c.h.b16 %v196
      %v576 = vunpack.c.l.b16 %v197
      %v577 = vunpack.c.h.b16 %v197
      %v578 = vunpack.c.l.b16 %v198
      %v579 = vunpack.c.h.b16 %v198
      %v580 = vunpack.c.l.b16 %v199
      %v581 = vunpack.c.h.b16 %v199
      %v582 = vunpack.c.l.b16 %v200
      %v583 = vunpack.c.h.b16 %v200
      %v584 = vunpack.c.l.b16 %v201
      %v585 = vunpack.c.h.b16 %v201
      %v586 = vunpack.c.l.b16 %v202
      %v587 = vunpack.c.h.b16 %v202
      %v588 = vunpack.c.l.b16 %v203
      %v589 = vunpack.c.h.b16 %v203
      %v590 = vunpack.c.l.b16 %v204
      %v591 = vunpack.c.h.b16 %v204
      %v592 = vunpack.c.l.b16 %v205
      %v593 = vunpack.c.h.b16 %v205
      %v594 = vunpack.c.l.b16 %v206
      %v595 = vunpack.c.h.b16 %v206
      %v596 = vunpack.c.l.b16 %v207
      %v597 = vunpack.c.h.b16 %v207
      %v598 = vunpack.c.l.b16 %v208
      %v599 = vunpack.c.h.b16 %v208
      %v600 = vunpack.c.l.b16 %v209
      %v601 = vunpack.c.h.b16 %v209
      %v602 = vunpack.c.l.b16 %v210
      %v603 = vunpack.c.h.b16 %v210
      %v604 = vunpack.c.l.b16 %v211
      %v605 = vunpack.c.h.b16 %v211
      %v606 = vunpack.c.l.b16 %v212
      %v607 = vunpack.c.h.b16 %v212
      %v608 = vunpack.c.l.b16 %v213
      %v609 = vunpack.c.h.b16 %v213
      %v610 = vunpack.c.l.b16 %v214
      %v611 = vunpack.c.h.b16 %v214
      %v612 = vunpack.c.l.b16 %v215
      %v613 = vunpack.c.h.b16 %v215
      %v614 = vunpack.c.l.b16 %v216
      %v615 = vunpack.c.h.b16 %v216
      %v616 = vunpack.c.l.b16 %v217
      %v617 = vunpack.c.h.b16 %v217
      %v618 = vunpack.c.l.b16 %v218
      %v619 = vunpack.c.h.b16 %v218
      %v620 = vunpack.c.l.b16 %v219
      %v621 = vunpack.c.h.b16 %v219
      %v622 = vunpack.c.l.b16 %v220
      %v623 = vunpack.c.h.b16 %v220
      %v624 = vunpack.c.l.b16 %v221
      %v625 = vunpack.c.h.b16 %v221
      %v626 = vunpack.c.l.b16 %v222
      %v627 = vunpack.c.h.b16 %v222
      %v628 = vunpack.c.l.b16 %v223
      %v629 = vunpack.c.h.b16 %v223
      %v630 = vunpack.c.l.b16 %v224
      %v631 = vunpack.c.h.b16 %v224
      %v632 = vunpack.c.l.b16 %v225
      %v633 = vunpack.c.h.b16 %v225
      %v634 = vunpack.c.l.b16 %v226
      %v635 = vunpack.c.h.b16 %v226
      %v636 = vunpack.c.l.b16 %v227
      %v637 = vunpack.c.h.b16 %v227
      %v638 = vunpack.c.l.b16 %v228
      %v639 = vunpack.c.h.b16 %v228
      %v640 = vunpack.c.l.b16 %v229
      %v641 = vunpack.c.h.b16 %v229
      %v642 = vunpack.c.l.b16 %v230
      %v643 = vunpack.c.h.b16 %v230
      %v644 = vunpack.c.l.b16 %v231
      %v645 = vunpack.c.h.b16 %v231
      %v646 = vunpack.c.l.b16 %v232
      %v647 = vunpack.c.h.b16 %v232
      %v648 = vunpack.c.l.b16 %v233
      %v649 = vunpack.c.h.b16 %v233
      %v650 = vunpack.c.l.b16 %v234
      %v651 = vunpack.c.h.b16 %v234
      %v652 = vunpack.c.l.b16 %v235
      %v653 = vunpack.c.h.b16 %v235
      %v654 = vunpack.c.l.b16 %v236
      %v655 = vunpack.c.h.b16 %v236
      %v656 = vunpack.c.l.b16 %v237
      %v657 = vunpack.c.h.b16 %v237
      %v658 = vunpack.c.l.b16 %v238
      %v659 = vunpack.c.h.b16 %v238
      %v660 = vunpack.c.l.b16 %v239
      %v661 = vunpack.c.h.b16 %v239
      %v662 = vunpack.c.l.b16 %v240
      %v663 = vunpack.c.h.b16 %v240
      %v664 = vunpack.c.l.b16 %v241
      %v665 = vunpack.c.h.b16 %v241
      %v666 = vunpack.c.l.b16 %v242
      %v667 = vunpack.c.h.b16 %v242
      %v668 = vunpack.c.l.b16 %v243
      %v669 = vunpack.c.h.b16 %v243
      %v670 = vunpack.c.l.b16 %v244
      %v671 = vunpack.c.h.b16 %v244
      %v672 = vunpack.c.l.b16 %v245
      %v673 = vunpack.c.h.b16 %v245
      %v674 = vunpack.c.l.b16 %v246
      %v675 = vunpack.c.h.b16 %v246
      %v676 = vunpack.c.l.b16 %v247
      %v677 = vunpack.c.h.b16 %v247
      %v678 = vunpack.c.l.b16 %v248
      %v679 = vunpack.c.h.b16 %v248
      %v680 = vunpack.c.l.b16 %v249
      %v681 = vunpack.c.h.b16 %v249
      %v682 = vunpack.c.l.b16 %v250
      %v683 = vunpack.c.h.b16 %v250
      %v684 = vunpack.c.l.b16 %v251
      %v685 = vunpack.c.h.b16 %v251
      %v686 = vunpack.c.l.b16 %v252
      %v687 = vunpack.c.h.b16 %v252
      %v688 = vunpack.c.l.b16 %v253
      %v689 = vunpack.c.h.b16 %v253
      %v690 = vunpack.c.l.b16 %v254
      %v691 = vunpack.c.h.b16 %v254
      %v692 = vunpack.c.l.b16 %v255
      %v693 = vunpack.c.h.b16 %v255
      %v694 = vunpack.c.l.b16 %v256
      %v695 = vunpack.c.h.b16 %v256
      %v696 = vunpack.c.l.b16 %v257
      %v697 = vunpack.c.h.b16 %v257
      %v698 = vunpack.c.l.b16 %v258
      %v699 = vunpack.c.h.b16 %v258
      %v700 = vunpack.c.l.b16 %v259
      %v701 = vunpack.c.h.b16 %v259
      %v702 = vunpack.c.l.b16 %v260
      %v703 = vunpack.c.h.b16 %v260
      %v704 = vunpack.c.l.b16 %v261
      %v705 = vunpack.c.h.b16 %v261
      %v706 = vunpack.c.l.b16 %v262
      %v707 = vunpack.c.h.b16 %v262
      %v708 = vunpack.c.l.b16 %v263
      %v709 = vunpack.c.h.b16 %v263
      %v710 = vunpack.c.l.b16 %v264
      %v711 = vunpack.c.h.b16 %v264
      %v712 = vunpack.c.l.b16 %v265
      %v713 = vunpack.c.h.b16 %v265
      %v714 = vunpack.c.l.b16 %v266
      %v715 = vunpack.c.h.b16 %v266
      %v716 = vunpack.c.l.b16 %v267
      %v717 = vunpack.c.h.b16 %v267
      %v718 = vunpack.c.l.b16 %v268
      %v719 = vunpack.c.h.b16 %v268
      %v720 = vunpack.c.l.b16 %v269
      %v721 = vunpack.c.h.b16 %v269
      %v722 = vunpack.c.l.b16 %v270
      %v723 = vunpack.c.h.b16 %v270
      %v724 = vunpack.c.l.b16 %v271
      %v725 = vunpack.c.h.b16 %v271
      %v726 = vunpack.c.l.b16 %v272
      %v727 = vunpack.c.h.b16 %v272
      %v728 = vunpack.c.l.b16 %v273
      %v729 = vunpack.c.h.b16 %v273
      %v730 = vunpack.c.l.b16 %v274
      %v731 = vunpack.c.h.b16 %v274
      %v732 = vunpack.c.l.b16 %v275
      %v733 = vunpack.c.h.b16 %v275
      %v734 = vunpack.c.l.b16 %v276
      %v735 = vunpack.c.h.b16 %v276
      %v736 = vunpack.c.l.b16 %v277
      %v737 = vunpack.c.h.b16 %v277
      %v738 = vunpack.c.l.b16 %v278
      %v739 = vunpack.c.h.b16 %v278
      %v740 = vunpack.c.l.b16 %v279
      %v741 = vunpack.c.h.b16 %v279
      %v742 = vunpack.c.l.b16 %v280
      %v743 = vunpack.c.h.b16 %v280
      %v744 = vunpack.c.l.b16 %v281
      %v745 = vunpack.c.h.b16 %v281
      %v746 = vunpack.c.l.b16 %v282
      %v747 = vunpack.c.h.b16 %v282
      %v748 = vunpack.c.l.b16 %v283
      %v749 = vunpack.c.h.b16 %v283
      %v750 = vunpack.c.l.b16 %v284
      %v751 = vunpack.c.h.b16 %v284
      %v752 = vunpack.c.l.b16 %v285
      %v753 = vunpack.c.h.b16 %v285
      %v754 = vunpack.c.l.b16 %v286
      %v755 = vunpack.c.h.b16 %v286
      %v756 = vunpack.c.l.b16 %v287
      %v757 = vunpack.c.h.b16 %v287
      %v758 = vunpack.c.l.b16 %v288
      %v759 = vunpack.c.h.b16 %v288
      %v760 = vunpack.c.l.b16 %v289
      %v761 = vunpack.c.h.b16 %v289
      %v762 = vunpack.c.l.b16 %v290
      %v763 = vunpack.c.h.b16 %v290
      %v764 = vunpack.c.l.b16 %v291
      %v765 = vunpack.c.h.b16 %v291
      %v766 = vunpack.c.l.b16 %v292
      %v767 = vunpack.c.h.b16 %v292
      %v768 = vunpack.c.l.b16 %v293
      %v769 = vunpack.c.h.b16 %v293
      %v770 = vunpack.c.l.b16 %v294
      %v771 = vunpack.c.h.b16 %v294
      %v772 = vunpack.c.l.b16 %v295
      %v773 = vunpack.c.h.b16 %v295
      %v774 = vunpack.c.l.b16 %v296
      %v775 = vunpack.c.h.b16 %v296
      %v776 = vunpack.c.l.b16 %v297
      %v777 = vunpack.c.h.b16 %v297
      %v778 = vunpack.c.l.b16 %v298
      %v779 = vunpack.c.h.b16 %v298
      %v780 = vunpack.c.l.b16 %v299
      %v781 = vunpack.c.h.b16 %v299
      %v782 = vunpack.c.l.b16 %v300
      %v783 = vunpack.c.h.b16 %v300
      %v784 = vunpack.c.l.b16 %v301
      %v785 = vunpack.c.h.b16 %v301
      %v786 = vunpack.c.l.b16 %v302
      %v787 = vunpack.c.h.b16 %v302
      %v788 = vunpack.c.l.b16 %v303
      %v789 = vunpack.c.h.b16 %v303
      %v790 = vunpack.c.l.b16 %v304
      %v791 = vunpack.c.h.b16 %v304
      %v792 = vunpack.c.l.b16 %v305
      %v793 = vunpack.c.h.b16 %v305
      %v794 = vunpack.c.l.b16 %v306
      %v795 = vunpack.c.h.b16 %v306
      %v796 = vunpack.c.l.b16 %v307
      %v797 = vunpack.c.h.b16 %v307
      %v798 = vunpack.c.l.b16 %v308
      %v799 = vunpack.c.h.b16 %v308
      %v800 = vunpack.c.l.b16 %v309
      %v801 = vunpack.c.h.b16 %v309
      %v802 = vunpack.c.l.b16 %v310
      %v803 = vunpack.c.h.b16 %v310
      %v804 = vunpack.c.l.b16 %v311
      %v805 = vunpack.c.h.b16 %v311
      %v806 = vunpack.c.l.b16 %v312
      %v807 = vunpack.c.h.b16 %v312
      %v808 = vunpack.c.l.b16 %v313
      %v809 = vunpack.c.h.b16 %v313
      %v810 = vunpack.c.l.b16 %v314
      %v811 = vunpack.c.h.b16 %v314
      %v812 = vunpack.c.l.b16 %v315
      %v813 = vunpack.c.h.b16 %v315
      %v814 = vunpack.c.l.b16 %v316
      %v815 = vunpack.c.h.b16 %v316
      %v816 = vunpack.c.l.b16 %v317
      %v817 = vunpack.c.h.b16 %v317
      %v818 = vunpack.c.l.b16 %v318
      %v819 = vunpack.c.h.b16 %v318
      %v820 = vunpack.c.l.b16 %v319
      %v821 = vunpack.c.h.b16 %v319
      %v822 = vunpack.c.l.b16 %v320
      %v823 = vunpack.c.h.b16 %v320
      %v824 = vunpack.c.l.b16 %v321
      %v825 = vunpack.c.h.b16 %v321
      %v826 = vunpack.c.l.b16 %v322
      %v827 = vunpack.c.h.b16 %v322
      %v828 = vunpack.c.l.b16 %v323
      %v829 = vunpack.c.h.b16 %v323
      %v830 = vunpack.c.l.b16 %v324
      %v831 = vunpack.c.h.b16 %v324
      %v832 = vunpack.c.l.b16 %v325
      %v833 = vunpack.c.h.b16 %v325
      %v834 = vunpack.c.l.b16 %v326
      %v835 = vunpack.c.h.b16 %v326
      %v836 = vunpack.c.l.b16 %v327
      %v837 = vunpack.c.h.b16 %v327
      %v838 = vunpack.c.l.b16 %v328
      %v839 = vunpack.c.h.b16 %v328
      %v840 = vunpack.c.l.b16 %v329
      %v841 = vunpack.c.h.b16 %v329
      %v842 = vunpack.c.l.b16 %v330
      %v843 = vunpack.c.h.b16 %v330
      %v844 = vunpack.c.l.b16 %v331
      %v845 = vunpack.c.h.b16 %v331
      %v846 = vunpack.c.l.b16 %v332
      %v847 = vunpack.c.h.b16 %v332
      %v848 = vunpack.c.l.b16 %v333
      %v849 = vunpack.c.h.b16 %v333
      %v850 = vunpack.c.l.b16 %v334
      %v851 = vunpack.c.h.b16 %v334
      %v852 = vunpack.c.l.b16 %v335
      %v853 = vunpack.c.h.b16 %v335
      %v854 = vunpack.c.l.b16 %v336
      %v855 = vunpack.c.h.b16 %v336
      %v856 = vunpack.c.l.b16 %v337
      %v857 = vunpack.c.h.b16 %v337
      %v858 = vunpack.c.l.b16 %v338
      %v859 = vunpack.c.h.b16 %v338
      %v860 = vunpack.c.l.b16 %v339
      %v861 = vunpack.c.h.b16 %v339
      %v862 = vunpack.c.l.b16 %v340
      %v863 = vunpack.c.h.b16 %v340
      %v864 = vunpack.c.l.b16 %v341
      %v865 = vunpack.c.h.b16 %v341
      %v866 = vunpack.c.l.b16 %v342
      %v867 = vunpack.c.h.b16 %v342
      %v868 = vunpack.c.l.b16 %v343
      %v869 = vunpack.c.h.b16 %v343
      %v870 = vunpack.c.l.b16 %v344
      %v871 = vunpack.c.h.b16 %v344
      %v872 = vunpack.c.l.b16 %v345
      %v873 = vunpack.c.h.b16 %v345
      %v874 = vunpack.c.l.b16 %v346
      %v875 = vunpack.c.h.b16 %v346
      %v876 = vunpack.c.l.b16 %v347
      %v877 = vunpack.c.h.b16 %v347
      %v878 = vunpack.c.l.b16 %v348
      %v879 = vunpack.c.h.b16 %v348
      %v880 = vunpack.c.l.b16 %v349
      %v881 = vunpack.c.h.b16 %v349
      %v882 = vpack.c.b16 %v566, %v562
      %v883 = vpack.c.b16 %v567, %v563
      %v884 = vpack.c.b16 %v568, %v564
      %v885 = vpack.c.b16 %v569, %v565
      %v886 = vpack.c.b16 %v574, %v570
      %v887 = vpack.c.b16 %v575, %v571
      %v888 = vpack.c.b16 %v576, %v572
      %v889 = vpack.c.b16 %v577, %v573
      %v890 = vpack.c.b16 %v582, %v578
      %v891 = vpack.c.b16 %v583, %v579
      %v892 = vpack.c.b16 %v584, %v580
      %v893 = vpack.c.b16 %v585, %v581
      %v894 = vpack.c.b16 %v590, %v586
      %v895 = vpack.c.b16 %v591, %v587
      %v896 = vpack.c.b16 %v592, %v588
      %v897 = vpack.c.b16 %v593, %v589
      %v898 = vpack.c.b16 %v598, %v594
      %v899 = vpack.c.b16 %v599, %v595
      %v900 = vpack.c.b16 %v600, %v596
      %v901 = vpack.c.b16 %v601, %v597
      %v902 = vpack.c.b16 %v606, %v602
      %v903 = vpack.c.b16 %v607, %v603
      %v904 = vpack.c.b16 %v608, %v604
      %v905 = vpack.c.b16 %v609, %v605
      %v906 = vpack.c.b16 %v614, %v610
      %v907 = vpack.c.b16 %v615, %v611
      %v908 = vpack.c.b16 %v616, %v612
      %v909 = vpack.c.b16 %v617, %v613
      %v910 = vpack.c.b16 %v622, %v618
      %v911 = vpack.c.b16 %v623, %v619
      %v912 = vpack.c.b16 %v624, %v620
      %v913 = vpack.c.b16 %v625, %v621
      %v914 = vpack.c.b16 %v630, %v626
      %v915 = vpack.c.b16 %v631, %v627
      %v916 = vpack.c.b16 %v632, %v628
      %v917 = vpack.c.b16 %v633, %v629
      %v918 = vpack.c.b16 %v638, %v634
      %v919 = vpack.c.b16 %v639, %v635
      %v920 = vpack.c.b16 %v640, %v636
      %v921 = vpack.c.b16 %v641, %v637
      %v922 = vpack.c.b16 %v646, %v642
      %v923 = vpack.c.b16 %v647, %v643
      %v924 = vpack.c.b16 %v648, %v644
      %v925 = vpack.c.b16 %v649, %v645
      %v926 = vpack.c.b16 %v654, %v650
      %v927 = vpack.c.b16 %v655, %v651
      %v928 = vpack.c.b16 %v656, %v652
      %v929 = vpack.c.b16 %v657, %v653
      %v930 = vpack.c.b16 %v662, %v658
      %v931 = vpack.c.b16 %v663, %v659
      %v932 = vpack.c.b16 %v664, %v660
      %v933 = vpack.c.b16 %v665, %v661
      %v934 = vpack.c.b16 %v670, %v666
      %v935 = vpack.c.b16 %v671, %v667
      %v936 = vpack.c.b16 %v672, %v668
      %v937 = vpack.c.b16 %v673, %v669
      %v938 = vpack.c.b16 %v678, %v674
      %v939 = vpack.c.b16 %v679, %v675
      %v940 = vpack.c.b16 %v680, %v676
      %v941 = vpack.c.b16 %v681, %v677
      %v942 = vpack.c.b16 %v686, %v682
      %v943 = vpack.c.b16 %v687, %v683
      %v944 = vpack.c.b16 %v688, %v684
      %v945 = vpack.c.b16 %v689, %v685
      %v946 = vpack.c.b16 %v694, %v690
      %v947 = vpack.c.b16 %v695, %v691
      %v948 = vpack.c.b16 %v696, %v692
      %v949 = vpack.c.b16 %v697, %v693
      %v950 = vpack.c.b16 %v702, %v698
      %v951 = vpack.c.b16 %v703, %v699
      %v952 = vpack.c.b16 %v704, %v700
      %v953 = vpack.c.b16 %v705, %v701
      %v954 = vpack.c.b16 %v710, %v706
      %v955 = vpack.c.b16 %v711, %v707
      %v956 = vpack.c.b16 %v712, %v708
      %v957 = vpack.c.b16 %v713, %v709
      %v958 = vpack.c.b16 %v718, %v714
      %v959 = vpack.c.b16 %v719, %v715
      %v960 = vpack.c.b16 %v720, %v716
      %v961 = vpack.c.b16 %v721, %v717
      %v962 = vpack.c.b16 %v726, %v722
      %v963 = vpack.c.b16 %v727, %v723
      %v964 = vpack.c.b16 %v728, %v724
      %v965 = vpack.c.b16 %v729, %v725
      %v966 = vpack.c.b16 %v734, %v730
      %v967 = vpack.c.b16 %v735, %v731
      %v968 = vpack.c.b16 %v736, %v732
      %v969 = vpack.c.b16 %v737, %v733
      %v970 = vpack.c.b16 %v742, %v738
      %v971 = vpack.c.b16 %v743, %v739
      %v972 = vpack.c.b16 %v744, %v740
      %v973 = vpack.c.b16 %v745, %v741
      %v974 = vpack.c.b16 %v750, %v746
      %v975 = vpack.c.b16 %v751, %v747
      %v976 = vpack.c.b16 %v752, %v748
      %v977 = vpack.c.b16 %v753, %v749
      %v978 = vpack.c.b16 %v758, %v754
      %v979 = vpack.c.b16 %v759, %v755
      %v980 = vpack.c.b16 %v760, %v756
      %v981 = vpack.c.b16 %v761, %v757
      %v982 = vpack.c.b16 %v766, %v762
      %v983 = vpack.c.b16 %v767, %v763
      %v984 = vpack.c.b16 %v768, %v764
      %v985 = vpack.c.b16 %v769, %v765
      %v986 = vpack.c.b16 %v774, %v770
      %v987 = vpack.c.b16 %v775, %v771
      %v988 = vpack.c.b16 %v776, %v772
      %v989 = vpack.c.b16 %v777, %v773
      %v990 = vpack.c.b16 %v782, %v778
      %v991 = vpack.c.b16 %v783, %v779
      %v992 = vpack.c.b16 %v784, %v780
      %v993 = vpack.c.b16 %v785, %v781
      %v994 = vpack.c.b16 %v790, %v786
      %v995 = vpack.c.b16 %v791, %v787
      %v996 = vpack.c.b16 %v792, %v788
      %v997 = vpack.c.b16 %v793, %v789
      %v998 = vpack.c.b16 %v798, %v794
      %v999 = vpack.c.b16 %v799, %v795
      %v1000 = vpack.c.b16 %v800, %v796
      %v1001 = vpack.c.b16 %v801, %v797
      %v1002 = vpack.c.b16 %v806, %v802
      %v1003 = vpack.c.b16 %v807, %v803
      %v1004 = vpack.c.b16 %v808, %v804
      %v1005 = vpack.c.b16 %v809, %v805
      %v1006 = vpack.c.b16 %v814, %v810
      %v1007 = vpack.c.b16 %v815, %v811
      %v1008 = vpack.c.b16 %v816, %v812
      %v1009 = vpack.c.b16 %v817, %v813
      %v1010 = vpack.c.b16 %v822, %v818
      %v1011 = vpack.c.b16 %v823, %v819
      %v1012 = vpack.c.b16 %v824, %v820
      %v1013 = vpack.c.b16 %v825, %v821
      %v1014 = vpack.c.b16 %v830, %v826
      %v1015 = vpack.c.b16 %v831, %v827
      %v1016 = vpack.c.b16 %v832, %v828
      %v1017 = vpack.c.b16 %v833, %v829
      %v1018 = vpack.c.b16 %v838, %v834
      %v1019 = vpack.c.b16 %v839, %v835
      %v1020 = vpack.c.b16 %v840, %v836
      %v1021 = vpack.c.b16 %v841, %v837
      %v1022 = vpack.c.b16 %v846, %v842
      %v1023 = vpack.c.b16 %v847, %v843
      %v1024 = vpack.c.b16 %v848, %v844
      %v1025 = vpack.c.b16 %v849, %v845
      %v1026 = vpack.c.b16 %v854, %v850
      %v1027 = vpack.c.b16 %v855, %v851
      %v1028 = vpack.c.b16 %v856, %v852
      %v1029 = vpack.c.b16 %v857, %v853
      %v1030 = vpack.c.b16 %v862, %v858
      %v1031 = vpack.c.b16 %v863, %v859
      %v1032 = vpack.c.b16 %v864, %v860
      %v1033 = vpack.c.b16 %v865, %v861
      %v1034 = vpack.c.b16 %v870, %v866
      %v1035 = vpack.c.b16 %v871, %v867
      %v1036 = vpack.c.b16 %v872, %v868
      %v1037 = vpack.c.b16 %v873, %v869
      %v1038 = vpack.c.b16 %v878, %v874
      %v1039 = vpack.c.b16 %v879, %v875
      %v1040 = vpack.c.b16 %v880, %v876
      %v1041 = vpack.c.b16 %v881, %v877
      %1202 = vmatprep.subr.bf16.mxu0 %v883
      %1203 = vmatpush1.bf16.msra.mxu0 %v882
      %1204 = vmatprep.subr.bf16.mxu0 %v887
      %1205 = vmatpush1.bf16.msra.mxu0 %v886
      %1206 = vmatprep.subr.bf16.mxu0 %v891
      %1207 = vmatpush1.bf16.msra.mxu0 %v890
      %1208 = vmatprep.subr.bf16.mxu0 %v895
      %1209 = vmatpush1.bf16.msra.mxu0 %v894
      %1210 = vmatprep.subr.bf16.mxu0 %v899
      %1211 = vmatpush1.bf16.msra.mxu0 %v898
      %1212 = vmatprep.subr.bf16.mxu0 %v903
      %1213 = vmatpush1.bf16.msra.mxu0 %v902
      %1214 = vmatprep.subr.bf16.mxu0 %v907
      %1215 = vmatpush1.bf16.msra.mxu0 %v906
      %1216 = vmatprep.subr.bf16.mxu0 %v911
      %1217 = vmatpush1.bf16.msra.mxu0 %v910
      %1218 = vmatprep.subr.bf16.mxu0 %v915
      %1219 = vmatpush1.bf16.msra.mxu0 %v914
      %1220 = vmatprep.subr.bf16.mxu0 %v919
      %1221 = vmatpush1.bf16.msra.mxu0 %v918
      %1222 = vmatprep.subr.bf16.mxu0 %v923
      %1223 = vmatpush1.bf16.msra.mxu0 %v922
      %1224 = vmatprep.subr.bf16.mxu0 %v927
      %1225 = vmatpush1.bf16.msra.mxu0 %v926
      %1226 = vmatprep.subr.bf16.mxu0 %v931
      %1227 = vmatpush1.bf16.msra.mxu0 %v930
      %1228 = vmatprep.subr.bf16.mxu0 %v935
      %1229 = vmatpush1.bf16.msra.mxu0 %v934
      %1230 = vmatprep.subr.bf16.mxu0 %v939
      %1231 = vmatpush1.bf16.msra.mxu0 %v938
      %1232 = vmatprep.subr.bf16.mxu0 %v943
      %1233 = vmatpush1.bf16.msra.mxu0 %v942
      %1234 = vmatprep.mubr.bf16.mxu0 %v383
      %1235 = vmatmul.mubr.bf16.gmra.mrb[0].mxu0 %v382
      %v1236 = vpop.f32.mrb[0].mxu0
      %v1237 = vadd.f32 0.0, %v1236
      %v1238 = vpop.f32.mrb[0].mxu0
      %v1239 = vadd.f32 0.0, %v1238
      %v1240 = vpop.f32.mrb[0].mxu0
      %v1241 = vadd.f32 0.0, %v1240
      %v1242 = vpop.f32.mrb[0].mxu0
      %v1243 = vadd.f32 0.0, %v1242
      %1244 = vmatprep.mubr.bf16.mxu0 %v388
      %1245 = vmatmul.mubr.bf16.gmra.mrb[0].mxu0 %v387
      %v1246 = vpop.f32.mrb[0].mxu0
      %v1247 = vadd.f32 0.0, %v1246
      %v1248 = vpop.f32.mrb[0].mxu0
      %v1249 = vadd.f32 0.0, %v1248
      %v1250 = vpop.f32.mrb[0].mxu0
      %v1251 = vadd.f32 0.0, %v1250
      %v1252 = vpop.f32.mrb[0].mxu0
      %v1253 = vadd.f32 0.0, %v1252
      %1254 = vdwg.mxu0
      %1255 = vmatprep.subr.bf16.mxu0 %v947
      %1256 = vmatpush1.bf16.msra.mxu0 %v946
      %1257 = vmatprep.subr.bf16.mxu0 %v951
      %1258 = vmatpush1.bf16.msra.mxu0 %v950
      %1259 = vmatprep.subr.bf16.mxu0 %v955
      %1260 = vmatpush1.bf16.msra.mxu0 %v954
      %1261 = vmatprep.subr.bf16.mxu0 %v959
      %1262 = vmatpush1.bf16.msra.mxu0 %v958
      %1263 = vmatprep.subr.bf16.mxu0 %v963
      %1264 = vmatpush1.bf16.msra.mxu0 %v962
      %1265 = vmatprep.subr.bf16.mxu0 %v967
      %1266 = vmatpush1.bf16.msra.mxu0 %v966
      %1267 = vmatprep.subr.bf16.mxu0 %v971
      %1268 = vmatpush1.bf16.msra.mxu0 %v970
      %1269 = vmatprep.subr.bf16.mxu0 %v975
      %1270 = vmatpush1.bf16.msra.mxu0 %v974
      %1271 = vmatprep.subr.bf16.mxu0 %v979
      %1272 = vmatpush1.bf16.msra.mxu0 %v978
      %1273 = vmatprep.subr.bf16.mxu0 %v983
      %1274 = vmatpush1.bf16.msra.mxu0 %v982
      %1275 = vmatprep.subr.bf16.mxu0 %v987
      %1276 = vmatpush1.bf16.msra.mxu0 %v986
      %1277 = vmatprep.subr.bf16.mxu0 %v991
      %1278 = vmatpush1.bf16.msra.mxu0 %v990
      %1279 = vmatprep.subr.bf16.mxu0 %v995
      %1280 = vmatpush1.bf16.msra.mxu0 %v994
      %1281 = vmatprep.subr.bf16.mxu0 %v999
      %1282 = vmatpush1.bf16.msra.mxu0 %v998
      %1283 = vmatprep.subr.bf16.mxu0 %v1003
      %1284 = vmatpush1.bf16.msra.mxu0 %v1002
      %1285 = vmatprep.subr.bf16.mxu0 %v1007
      %1286 = vmatpush1.bf16.msra.mxu0 %v1006
      %1287 = vmatprep.mubr.bf16.mxu0 %v385
      %1288 = vmatmul.mubr.bf16.gmra.mrb[0].mxu0 %v384
      %v1289 = vpop.f32.mrb[0].mxu0
      %v1290 = vadd.f32 %v1237, %v1289
      %v1291 = vpop.f32.mrb[0].mxu0
      %v1292 = vadd.f32 %v1239, %v1291
      %v1293 = vpop.f32.mrb[0].mxu0
      %v1294 = vadd.f32 %v1241, %v1293
      %v1295 = vpop.f32.mrb[0].mxu0
      %v1296 = vadd.f32 %v1243, %v1295
      %1297 = vmatprep.mubr.bf16.mxu0 %v390
      %1298 = vmatmul.mubr.bf16.gmra.mrb[0].mxu0 %v389
      %v1299 = vpop.f32.mrb[0].mxu0
      %v1300 = vadd.f32 %v1247, %v1299
      %v1301 = vpop.f32.mrb[0].mxu0
      %v1302 = vadd.f32 %v1249, %v1301
      %v1303 = vpop.f32.mrb[0].mxu0
      %v1304 = vadd.f32 %v1251, %v1303
      %v1305 = vpop.f32.mrb[0].mxu0
      %v1306 = vadd.f32 %v1253, %v1305
      %1307 = vdwg.mxu0
      %1308 = vmatprep.subr.bf16.mxu0 %v1011
      %1309 = vmatpush1.bf16.msra.mxu0 %v1010
      %1310 = vmatprep.subr.bf16.mxu0 %v1015
      %1311 = vmatpush1.bf16.msra.mxu0 %v1014
      %1312 = vmatprep.subr.bf16.mxu0 %v1019
      %1313 = vmatpush1.bf16.msra.mxu0 %v1018
      %1314 = vmatprep.subr.bf16.mxu0 %v1023
      %1315 = vmatpush1.bf16.msra.mxu0 %v1022
      %1316 = vmatprep.subr.bf16.mxu0 %v1027
      %1317 = vmatpush1.bf16.msra.mxu0 %v1026
      %1318 = vmatprep.subr.bf16.mxu0 %v1031
      %1319 = vmatpush1.bf16.msra.mxu0 %v1030
      %1320 = vmatprep.subr.bf16.mxu0 %v1035
      %1321 = vmatpush1.bf16.msra.mxu0 %v1034
      %1322 = vmatprep.subr.bf16.mxu0 %v1039
      %1323 = vmatpush1.bf16.msra.mxu0 %v1038
      %1324 = vmatprep.subr.bf16.mxu0 0
      %1325 = vmatpush1.bf16.msra.mxu0 0
      %1326 = vmatprep.subr.bf16.mxu0 0
      %1327 = vmatpush1.bf16.msra.mxu0 0
      %1328 = vmatprep.subr.bf16.mxu0 0
      %1329 = vmatpush1.bf16.msra.mxu0 0
      %1330 = vmatprep.subr.bf16.mxu0 0
      %1331 = vmatpush1.bf16.msra.mxu0 0
      %1332 = vmatprep.subr.bf16.mxu0 0
      %1333 = vmatpush1.bf16.msra.mxu0 0
      %1334 = vmatprep.subr.bf16.mxu0 0
      %1335 = vmatpush1.bf16.msra.mxu0 0
      %1336 = vmatprep.subr.bf16.mxu0 0
      %1337 = vmatpush1.bf16.msra.mxu0 0
      %1338 = vmatprep.subr.bf16.mxu0 0
      %1339 = vmatpush1.bf16.msra.mxu0 0
      %1340 = vmatprep.mubr.bf16.mxu0 0
      %1341 = vmatmul.mubr.bf16.gmra.mrb[0].mxu0 %v386
      %v1342 = vpop.f32.mrb[0].mxu0
      %v1343 = vadd.f32 %v1290, %v1342
      %v1344 = vpop.f32.mrb[0].mxu0
      %v1345 = vadd.f32 %v1292, %v1344
      %v1346 = vpop.f32.mrb[0].mxu0
      %v1347 = vadd.f32 %v1294, %v1346
      %v1348 = vpop.f32.mrb[0].mxu0
      %v1349 = vadd.f32 %v1296, %v1348
      %1350 = vmatprep.mubr.bf16.mxu0 0
      %1351 = vmatmul.mubr.bf16.gmra.mrb[0].mxu0 %v391
      %v1352 = vpop.f32.mrb[0].mxu0
      %v1353 = vadd.f32 %v1300, %v1352
      %v1354 = vpop.f32.mrb[0].mxu0
      %v1355 = vadd.f32 %v1302, %v1354
      %v1356 = vpop.f32.mrb[0].mxu0
      %v1357 = vadd.f32 %v1304, %v1356
      %v1358 = vpop.f32.mrb[0].mxu0
      %v1359 = vadd.f32 %v1306, %v1358
      %1360 = vdwg.mxu0
      %1361 = vmatprep.subr.bf16.mxu0 %v885
      %1362 = vmatpush1.bf16.msra.mxu0 %v884
      %1363 = vmatprep.subr.bf16.mxu0 %v889
      %1364 = vmatpush1.bf16.msra.mxu0 %v888
      %1365 = vmatprep.subr.bf16.mxu0 %v893
      %1366 = vmatpush1.bf16.msra.mxu0 %v892
      %1367 = vmatprep.subr.bf16.mxu0 %v897
      %1368 = vmatpush1.bf16.msra.mxu0 %v896
      %1369 = vmatprep.subr.bf16.mxu0 %v901
      %1370 = vmatpush1.bf16.msra.mxu0 %v900
      %1371 = vmatprep.subr.bf16.mxu0 %v905
      %1372 = vmatpush1.bf16.msra.mxu0 %v904
      %1373 = vmatprep.subr.bf16.mxu0 %v909
      %1374 = vmatpush1.bf16.msra.mxu0 %v908
      %1375 = vmatprep.subr.bf16.mxu0 %v913
      %1376 = vmatpush1.bf16.msra.mxu0 %v912
      %1377 = vmatprep.subr.bf16.mxu0 %v917
      %1378 = vmatpush1.bf16.msra.mxu0 %v916
      %1379 = vmatprep.subr.bf16.mxu0 %v921
      %1380 = vmatpush1.bf16.msra.mxu0 %v920
      %1381 = vmatprep.subr.bf16.mxu0 %v925
      %1382 = vmatpush1.bf16.msra.mxu0 %v924
      %1383 = vmatprep.subr.bf16.mxu0 %v929
      %1384 = vmatpush1.bf16.msra.mxu0 %v928
      %1385 = vmatprep.subr.bf16.mxu0 %v933
      %1386 = vmatpush1.bf16.msra.mxu0 %v932
      %1387 = vmatprep.subr.bf16.mxu0 %v937
      %1388 = vmatpush1.bf16.msra.mxu0 %v936
      %1389 = vmatprep.subr.bf16.mxu0 %v941
      %1390 = vmatpush1.bf16.msra.mxu0 %v940
      %1391 = vmatprep.subr.bf16.mxu0 %v945
      %1392 = vmatpush1.bf16.msra.mxu0 %v944
      %1393 = vmatprep.mubr.bf16.mxu0 %v383
      %1394 = vmatmul.mubr.bf16.gmra.mrb[0].mxu0 %v382
      %v1395 = vpop.f32.mrb[0].mxu0
      %v1396 = vadd.f32 0.0, %v1395
      %v1397 = vpop.f32.mrb[0].mxu0
      %v1398 = vadd.f32 0.0, %v1397
      %v1399 = vpop.f32.mrb[0].mxu0
      %v1400 = vadd.f32 0.0, %v1399
      %v1401 = vpop.f32.mrb[0].mxu0
      %v1402 = vadd.f32 0.0, %v1401
      %1403 = vmatprep.mubr.bf16.mxu0 %v388
      %1404 = vmatmul.mubr.bf16.gmra.mrb[0].mxu0 %v387
      %v1405 = vpop.f32.mrb[0].mxu0
      %v1406 = vadd.f32 0.0, %v1405
      %v1407 = vpop.f32.mrb[0].mxu0
      %v1408 = vadd.f32 0.0, %v1407
      %v1409 = vpop.f32.mrb[0].mxu0
      %v1410 = vadd.f32 0.0, %v1409
      %v1411 = vpop.f32.mrb[0].mxu0
      %v1412 = vadd.f32 0.0, %v1411
      %1413 = vdwg.mxu0
      %1414 = vmatprep.subr.bf16.mxu0 %v949
      %1415 = vmatpush1.bf16.msra.mxu0 %v948
      %1416 = vmatprep.subr.bf16.mxu0 %v953
      %1417 = vmatpush1.bf16.msra.mxu0 %v952
      %1418 = vmatprep.subr.bf16.mxu0 %v957
      %1419 = vmatpush1.bf16.msra.mxu0 %v956
      %1420 = vmatprep.subr.bf16.mxu0 %v961
      %1421 = vmatpush1.bf16.msra.mxu0 %v960
      %1422 = vmatprep.subr.bf16.mxu0 %v965
      %1423 = vmatpush1.bf16.msra.mxu0 %v964
      %1424 = vmatprep.subr.bf16.mxu0 %v969
      %1425 = vmatpush1.bf16.msra.mxu0 %v968
      %1426 = vmatprep.subr.bf16.mxu0 %v973
      %1427 = vmatpush1.bf16.msra.mxu0 %v972
      %1428 = vmatprep.subr.bf16.mxu0 %v977
      %1429 = vmatpush1.bf16.msra.mxu0 %v976
      %1430 = vmatprep.subr.bf16.mxu0 %v981
      %1431 = vmatpush1.bf16.msra.mxu0 %v980
      %1432 = vmatprep.subr.bf16.mxu0 %v985
      %1433 = vmatpush1.bf16.msra.mxu0 %v984
      %1434 = vmatprep.subr.bf16.mxu0 %v989
      %1435 = vmatpush1.bf16.msra.mxu0 %v988
      %1436 = vmatprep.subr.bf16.mxu0 %v993
      %1437 = vmatpush1.bf16.msra.mxu0 %v992
      %1438 = vmatprep.subr.bf16.mxu0 %v997
      %1439 = vmatpush1.bf16.msra.mxu0 %v996
      %1440 = vmatprep.subr.bf16.mxu0 %v1001
      %1441 = vmatpush1.bf16.msra.mxu0 %v1000
      %1442 = vmatprep.subr.bf16.mxu0 %v1005
      %1443 = vmatpush1.bf16.msra.mxu0 %v1004
      %1444 = vmatprep.subr.bf16.mxu0 %v1009
      %1445 = vmatpush1.bf16.msra.mxu0 %v1008
      %1446 = vmatprep.mubr.bf16.mxu0 %v385
      %1447 = vmatmul.mubr.bf16.gmra.mrb[0].mxu0 %v384
      %v1448 = vpop.f32.mrb[0].mxu0
      %v1449 = vadd.f32 %v1396, %v1448
      %v1450 = vpop.f32.mrb[0].mxu0
      %v1451 = vadd.f32 %v1398, %v1450
      %v1452 = vpop.f32.mrb[0].mxu0
      %v1453 = vadd.f32 %v1400, %v1452
      %v1454 = vpop.f32.mrb[0].mxu0
      %v1455 = vadd.f32 %v1402, %v1454
      %1456 = vmatprep.mubr.bf16.mxu0 %v390
      %1457 = vmatmul.mubr.bf16.gmra.mrb[0].mxu0 %v389
      %v1458 = vpop.f32.mrb[0].mxu0
      %v1459 = vadd.f32 %v1406, %v1458
      %v1460 = vpop.f32.mrb[0].mxu0
      %v1461 = vadd.f32 %v1408, %v1460
      %v1462 = vpop.f32.mrb[0].mxu0
      %v1463 = vadd.f32 %v1410, %v1462
      %v1464 = vpop.f32.mrb[0].mxu0
      %v1465 = vadd.f32 %v1412, %v1464
      %1466 = vdwg.mxu0
      %1467 = vmatprep.subr.bf16.mxu0 %v1013
      %1468 = vmatpush1.bf16.msra.mxu0 %v1012
      %1469 = vmatprep.subr.bf16.mxu0 %v1017
      %1470 = vmatpush1.bf16.msra.mxu0 %v1016
      %1471 = vmatprep.subr.bf16.mxu0 %v1021
      %1472 = vmatpush1.bf16.msra.mxu0 %v1020
      %1473 = vmatprep.subr.bf16.mxu0 %v1025
      %1474 = vmatpush1.bf16.msra.mxu0 %v1024
      %1475 = vmatprep.subr.bf16.mxu0 %v1029
      %1476 = vmatpush1.bf16.msra.mxu0 %v1028
      %1477 = vmatprep.subr.bf16.mxu0 %v1033
      %1478 = vmatpush1.bf16.msra.mxu0 %v1032
      %1479 = vmatprep.subr.bf16.mxu0 %v1037
      %1480 = vmatpush1.bf16.msra.mxu0 %v1036
      %1481 = vmatprep.subr.bf16.mxu0 %v1041
      %1482 = vmatpush1.bf16.msra.mxu0 %v1040
      %1483 = vmatprep.subr.bf16.mxu0 0
      %1484 = vmatpush1.bf16.msra.mxu0 0
      %1485 = vmatprep.subr.bf16.mxu0 0
      %1486 = vmatpush1.bf16.msra.mxu0 0
      %1487 = vmatprep.subr.bf16.mxu0 0
      %1488 = vmatpush1.bf16.msra.mxu0 0
      %1489 = vmatprep.subr.bf16.mxu0 0
      %1490 = vmatpush1.bf16.msra.mxu0 0
      %1491 = vmatprep.subr.bf16.mxu0 0
      %1492 = vmatpush1.bf16.msra.mxu0 0
      %1493 = vmatprep.subr.bf16.mxu0 0
      %1494 = vmatpush1.bf16.msra.mxu0 0
      %1495 = vmatprep.subr.bf16.mxu0 0
      %1496 = vmatpush1.bf16.msra.mxu0 0
      %1497 = vmatprep.subr.bf16.mxu0 0
      %1498 = vmatpush1.bf16.msra.mxu0 0
      %1499 = vmatprep.mubr.bf16.mxu0 0
      %1500 = vmatmul.mubr.bf16.gmra.mrb[0].mxu0 %v386
      %v1501 = vpop.f32.mrb[0].mxu0
      %v1502 = vadd.f32 %v1449, %v1501
      %v1503 = vpop.f32.mrb[0].mxu0
      %v1504 = vadd.f32 %v1451, %v1503
      %v1505 = vpop.f32.mrb[0].mxu0
      %v1506 = vadd.f32 %v1453, %v1505
      %v1507 = vpop.f32.mrb[0].mxu0
      %v1508 = vadd.f32 %v1455, %v1507
      %1509 = vmatprep.mubr.bf16.mxu0 0
      %1510 = vmatmul.mubr.bf16.gmra.mrb[0].mxu0 %v391
      %v1511 = vpop.f32.mrb[0].mxu0
      %v1512 = vadd.f32 %v1459, %v1511
      %v1513 = vpop.f32.mrb[0].mxu0
      %v1514 = vadd.f32 %v1461, %v1513
      %v1515 = vpop.f32.mrb[0].mxu0
      %v1516 = vadd.f32 %v1463, %v1515
      %v1517 = vpop.f32.mrb[0].mxu0
      %v1518 = vadd.f32 %v1465, %v1517
      %1519 = vdwg.mxu0
      %v1520 = vmax.f32 %v1343, %v1345
      %v1521 = vmax.f32 %v1347, %v1349
      %v1522 = vmax.f32 %v1353, %v1355
      %v1523 = vmax.f32 %v1357, %v1359
      %v1524 = vmax.f32 %v1502, %v1504
      %v1525 = vmax.f32 %v1506, %v1508
      %v1526 = vmax.f32 %v1512, %v1514
      %v1527 = vmax.f32 %v1516, %v1518
      %v1528 = vmax.f32 %v1520, %v1524
      %v1529 = vmax.f32 %v1521, %v1525
      %v1530 = vmax.f32 %v1522, %v1526
      %v1531 = vmax.f32 %v1523, %v1527
      %v1532 = vld [vmem:[%s2] sm:$0x1]
      %v1534 = vlaneseq
      %v1535 = vshrl.u32 %v1534, 7
      %v1536 = vsub.s32 0, %v1535
      %v1537 = vrot.slane %v1532, %v1536
      %v1539 = vadd.f32 %v1528, %v1537
      %v1540 = vadd.f32 %v1529, %v1537
      %v1541 = vadd.f32 %v1530, %v1537
      %v1542 = vadd.f32 %v1531, %v1537
      %v1543 = vmax.f32 %v1539, 0.0
      %v1544 = vmax.f32 %v1540, 0.0
      %v1545 = vmax.f32 %v1541, 0.0
      %v1546 = vmax.f32 %v1542, 0.0
      %v1547 = vpack.c.bf16 %v1544, %v1543
      %v1548 = vpack.c.bf16 %v1546, %v1545
      %v1551 = vunpack.c.l.b16 %v1547
      %v1552 = vunpack.c.h.b16 %v1547
      %v1553 = vunpack.c.l.b16 %v1548
      %v1554 = vunpack.c.h.b16 %v1548
      %v1555 = vpack.c.b16 %v1551, %v1551
      %v1556 = vpack.c.b16 %v1552, %v1552
      %v1557 = vpack.c.b16 %v1553, %v1553
      %v1558 = vpack.c.b16 %v1554, %v1554
      %1563 = vst [vmem:[%s175] sm:$0xf] %v1555
      %1564 = vst [vmem:[%s175 + $0x4] sm:$0xf] %v1556
      %1565 = vst [vmem:[%s175 + $0x8] sm:$0xf] %v1557
      %1566 = vst [vmem:[%s175 + $0xc] sm:$0xf] %v1558
      %s1567 = smul.u32 4, %s14
      %p1568 = scmp.lt.s32.totalorder %s1567, 7
      %s1569 = scalar_select %p1568, %s1567, 7
      %s1570 = smul.addr %s1569, 4
      %s1571 = scalar_lea.vmem %s3, %s1570
      // Predicated region
      $region33: #{forward.4} parent=31 // pred_check
        %p1572 = pneg %p100
      $region34: #{forward.4} parent=31 // pred_check_branch
        %1574 = sbr.rel (%p1572) target = $region36
      $region35: #{forward.4} parent=31 // pred_region
        %s1575 = smul.u32 4, %s14
      $region36: #{forward.4} parent=31 // pred_fallthru
        _
    $region32: #{forward.4} parent=5 // pred_fallthru
      _
    %p1576 = scmp.le.s32.totalorder 2, %s9
    // Predicated region
    $region37: #{forward.4} parent=5 // pred_check
      %p1577 = pneg %p1576
    $region38: #{forward.4} parent=5 // pred_check_branch
      %1579 = sbr.rel (%p1577) target = $region40
    $region39: #{forward.4} parent=5 // pred_region
      %s1580 = ssub.s32 %s9, 2
      // Predicated region
      $region41: #{forward.4} parent=39 // pred_check
        %p1581 = pneg %p106
      $region42: #{forward.4} parent=39 // pred_check_branch
        %1583 = sbr.rel (%p1581) target = $region44
      $region43: #{forward.4} parent=39 // pred_region
        %s1584 = smul.u32 4, %s15
        %p1585 = scmp.lt.s32.totalorder %s1584, 7
        %s1586 = scalar_select %p1585, %s1584, 7
        %s1587 = smul.addr %s1586, 4
        %s1588 = scalar_lea.vmem %s3, %s1587
      $region44: #{forward.4} parent=39 // pred_fallthru
        _
    $region40: #{forward.4} parent=5 // pred_fallthru
      _
  $region6: #{forward.4} parent=0 // loop_footer
    %s13 = sadd.s32 1, %s9
  $region7: #{forward.4} parent=0 // loop_footer_branch
    %8 = sbr.rel target = $region3
  $region8: #{forward.4} parent=0 // loop_exit
    _

// kernel: forward.5
$region0: #{forward.5}
  #allocation0 [shape = 'u32[]', space=smem, size = 0x4, offset = 0x4, fixed_abs, tag = 'smem constant byte address 0x4 - core index']
  #allocation1 [shape = 'u32[144,128]{1,0:T(1,128)}', space=vmem, size = 0x12000, scoped, tag = 'internal scratch']
  %s0 = inlined_call_operand.vmem [shape: bf16[8,3200], index: 0, kind: input, shape index: {}]
  %s1 = inlined_call_operand.vmem [shape: bf16[3200,128], index: 1, kind: input, shape index: {}]
  %s2 = inlined_call_operand.vmem [shape: f32[1,128], index: 2, kind: input, shape index: {}]
  %s3 = inlined_call_operand.vmem [shape: bf16[128,128], index: 3, kind: input, shape index: {}]
  %s4 = inlined_call_operand.vmem [shape: f32[1,128], index: 4, kind: input, shape index: {}]
  %s5 = inlined_call_operand.vmem [shape: bf16[128,128], index: 5, kind: input, shape index: {}]
  %s6 = inlined_call_operand.vmem [shape: f32[1,128], index: 6, kind: input, shape index: {}]
  %s7 = inlined_call_operand.vmem [shape: f32[8,128], index: 7, kind: output, shape index: {}]
  %s8 = sld [smem:[#allocation0]]
  $region38: #{forward.5} parent=0
    _
  %s10 = ssub.s32 1, %s8
  %s11 = scalar_select 0, %s10, %s8
  // Predicated region
  $region2: #{forward.5} parent=0 // pred_check
    _
  $region3: #{forward.5} parent=0 // pred_check_branch
    %13 = sbr.rel (0) target = $region5
  $region4: #{forward.5} parent=0 // pred_region
    _
  $region5: #{forward.5} parent=0 // pred_fallthru
    _
  // Predicated region
  $region6: #{forward.5} parent=0 // pred_check
    _
  $region7: #{forward.5} parent=0 // pred_check_branch
    %15 = sbr.rel (0) target = $region9
  $region8: #{forward.5} parent=0 // pred_region
    _
  $region9: #{forward.5} parent=0 // pred_fallthru
    _
  // Predicated region
  $region10: #{forward.5} parent=0 // pred_check
    _
  $region11: #{forward.5} parent=0 // pred_check_branch
    %17 = sbr.rel (0) target = $region13
  $region12: #{forward.5} parent=0 // pred_region
    _
  $region13: #{forward.5} parent=0 // pred_fallthru
    _
  // Predicated region
  $region14: #{forward.5} parent=0 // pred_check
    _
  $region15: #{forward.5} parent=0 // pred_check_branch
    %19 = sbr.rel (0) target = $region17
  $region16: #{forward.5} parent=0 // pred_region
    _
  $region17: #{forward.5} parent=0 // pred_fallthru
    _
  // Predicated region
  $region18: #{forward.5} parent=0 // pred_check
    _
  $region19: #{forward.5} parent=0 // pred_check_branch
    %21 = sbr.rel (0) target = $region21
  $region20: #{forward.5} parent=0 // pred_region
    _
  $region21: #{forward.5} parent=0 // pred_fallthru
    _
  // Predicated region
  $region22: #{forward.5} parent=0 // pred_check
    _
  $region23: #{forward.5} parent=0 // pred_check_branch
    %23 = sbr.rel (0) target = $region25
  $region24: #{forward.5} parent=0 // pred_region
    _
  $region25: #{forward.5} parent=0 // pred_fallthru
    _
  // Predicated region
  $region26: #{forward.5} parent=0 // pred_check
    _
  $region27: #{forward.5} parent=0 // pred_check_branch
    %25 = sbr.rel (0) target = $region29
  $region28: #{forward.5} parent=0 // pred_region
    _
  $region29: #{forward.5} parent=0 // pred_fallthru
    _
  %v27 = vld [vmem:[%s0] sm:$0xff]
  %v28 = vld [vmem:[%s0 + $0x8] sm:$0xff]
  %v29 = vld [vmem:[%s0 + $0x10] sm:$0xff]
  %v30 = vld [vmem:[%s0 + $0x18] sm:$0xff]
  %v31 = vld [vmem:[%s0 + $0x20] sm:$0xff]
  %v32 = vld [vmem:[%s0 + $0x28] sm:$0xff]
  %v33 = vld [vmem:[%s0 + $0x30] sm:$0xff]
  %v34 = vld [vmem:[%s0 + $0x38] sm:$0xff]
  %v35 = vld [vmem:[%s0 + $0x40] sm:$0xff]
  %v36 = vld [vmem:[%s0 + $0x48] sm:$0xff]
  %v37 = vld [vmem:[%s0 + $0x50] sm:$0xff]
  %v38 = vld [vmem:[%s0 + $0x58] sm:$0xff]
  %v39 = vld [vmem:[%s0 + $0x60] sm:$0xf]
  %v40 = vld [vmem:[%s1] sm:$0xf]
  %v41 = vld [vmem:[%s1 + $0x4] sm:$0xf]
  %v42 = vld [vmem:[%s1 + $0x8] sm:$0xf]
  %v43 = vld [vmem:[%s1 + $0xc] sm:$0xf]
  %v44 = vld [vmem:[%s1 + $0x10] sm:$0xf]
  %v45 = vld [vmem:[%s1 + $0x14] sm:$0xf]
  %v46 = vld [vmem:[%s1 + $0x18] sm:$0xf]
  %v47 = vld [vmem:[%s1 + $0x1c] sm:$0xf]
  %v48 = vld [vmem:[%s1 + $0x20] sm:$0xf]
  %v49 = vld [vmem:[%s1 + $0x24] sm:$0xf]
  %v50 = vld [vmem:[%s1 + $0x28] sm:$0xf]
  %v51 = vld [vmem:[%s1 + $0x2c] sm:$0xf]
  %v52 = vld [vmem:[%s1 + $0x30] sm:$0xf]
  %v53 = vld [vmem:[%s1 + $0x34] sm:$0xf]
  %v54 = vld [vmem:[%s1 + $0x38] sm:$0xf]
  %v55 = vld [vmem:[%s1 + $0x3c] sm:$0xf]
  %v56 = vld [vmem:[%s1 + $0x40] sm:$0xf]
  %v57 = vld [vmem:[%s1 + $0x44] sm:$0xf]
  %v58 = vld [vmem:[%s1 + $0x48] sm:$0xf]
  %v59 = vld [vmem:[%s1 + $0x4c] sm:$0xf]
  %v60 = vld [vmem:[%s1 + $0x50] sm:$0xf]
  %v61 = vld [vmem:[%s1 + $0x54] sm:$0xf]
  %v62 = vld [vmem:[%s1 + $0x58] sm:$0xf]
  %v63 = vld [vmem:[%s1 + $0x5c] sm:$0xf]
  %v64 = vld [vmem:[%s1 + $0x60] sm:$0xf]
  %v65 = vld [vmem:[%s1 + $0x64] sm:$0xf]
  %v66 = vld [vmem:[%s1 + $0x68] sm:$0xf]
  %v67 = vld [vmem:[%s1 + $0x6c] sm:$0xf]
  %v68 = vld [vmem:[%s1 + $0x70] sm:$0xf]
  %v69 = vld [vmem:[%s1 + $0x74] sm:$0xf]
  %v70 = vld [vmem:[%s1 + $0x78] sm:$0xf]
  %v71 = vld [vmem:[%s1 + $0x7c] sm:$0xf]
  %v72 = vld [vmem:[%s1 + $0x80] sm:$0xf]
  %v73 = vld [vmem:[%s1 + $0x84] sm:$0xf]
  %v74 = vld [vmem:[%s1 + $0x88] sm:$0xf]
  %v75 = vld [vmem:[%s1 + $0x8c] sm:$0xf]
  %v76 = vld [vmem:[%s1 + $0x90] sm:$0xf]
  %v77 = vld [vmem:[%s1 + $0x94] sm:$0xf]
  %v78 = vld [vmem:[%s1 + $0x98] sm:$0xf]
  %v79 = vld [vmem:[%s1 + $0x9c] sm:$0xf]
  %v80 = vld [vmem:[%s1 + $0xa0] sm:$0xf]
  %v81 = vld [vmem:[%s1 + $0xa4] sm:$0xf]
  %v82 = vld [vmem:[%s1 + $0xa8] sm:$0xf]
  %v83 = vld [vmem:[%s1 + $0xac] sm:$0xf]
  %v84 = vld [vmem:[%s1 + $0xb0] sm:$0xf]
  %v85 = vld [vmem:[%s1 + $0xb4] sm:$0xf]
  %v86 = vld [vmem:[%s1 + $0xb8] sm:$0xf]
  %v87 = vld [vmem:[%s1 + $0xbc] sm:$0xf]
  %v88 = vld [vmem:[%s1 + $0xc0] sm:$0xf]
  %v89 = vld [vmem:[%s1 + $0xc4] sm:$0xf]
  %v90 = vld [vmem:[%s1 + $0xc8] sm:$0xf]
  %v91 = vld [vmem:[%s1 + $0xcc] sm:$0xf]
  %v92 = vld [vmem:[%s1 + $0xd0] sm:$0xf]
  %v93 = vld [vmem:[%s1 + $0xd4] sm:$0xf]
  %v94 = vld [vmem:[%s1 + $0xd8] sm:$0xf]
  %v95 = vld [vmem:[%s1 + $0xdc] sm:$0xf]
  %v96 = vld [vmem:[%s1 + $0xe0] sm:$0xf]
  %v97 = vld [vmem:[%s1 + $0xe4] sm:$0xf]
  %v98 = vld [vmem:[%s1 + $0xe8] sm:$0xf]
  %v99 = vld [vmem:[%s1 + $0xec] sm:$0xf]
  %v100 = vld [vmem:[%s1 + $0xf0] sm:$0xf]
  %v101 = vld [vmem:[%s1 + $0xf4] sm:$0xf]
  %v102 = vld [vmem:[%s1 + $0xf8] sm:$0xf]
  %v103 = vld [vmem:[%s1 + $0xfc] sm:$0xf]
  %v104 = vld [vmem:[%s1 + $0x100] sm:$0xf]
  %v105 = vld [vmem:[%s1 + $0x104] sm:$0xf]
  %v106 = vld [vmem:[%s1 + $0x108] sm:$0xf]
  %v107 = vld [vmem:[%s1 + $0x10c] sm:$0xf]
  %v108 = vld [vmem:[%s1 + $0x110] sm:$0xf]
  %v109 = vld [vmem:[%s1 + $0x114] sm:$0xf]
  %v110 = vld [vmem:[%s1 + $0x118] sm:$0xf]
  %v111 = vld [vmem:[%s1 + $0x11c] sm:$0xf]
  %v112 = vld [vmem:[%s1 + $0x120] sm:$0xf]
  %v113 = vld [vmem:[%s1 + $0x124] sm:$0xf]
  %v114 = vld [vmem:[%s1 + $0x128] sm:$0xf]
  %v115 = vld [vmem:[%s1 + $0x12c] sm:$0xf]
  %v116 = vld [vmem:[%s1 + $0x130] sm:$0xf]
  %v117 = vld [vmem:[%s1 + $0x134] sm:$0xf]
  %v118 = vld [vmem:[%s1 + $0x138] sm:$0xf]
  %v119 = vld [vmem:[%s1 + $0x13c] sm:$0xf]
  %v120 = vld [vmem:[%s1 + $0x140] sm:$0xf]
  %v121 = vld [vmem:[%s1 + $0x144] sm:$0xf]
  %v122 = vld [vmem:[%s1 + $0x148] sm:$0xf]
  %v123 = vld [vmem:[%s1 + $0x14c] sm:$0xf]
  %v124 = vld [vmem:[%s1 + $0x150] sm:$0xf]
  %v125 = vld [vmem:[%s1 + $0x154] sm:$0xf]
  %v126 = vld [vmem:[%s1 + $0x158] sm:$0xf]
  %v127 = vld [vmem:[%s1 + $0x15c] sm:$0xf]
  %v128 = vld [vmem:[%s1 + $0x160] sm:$0xf]
  %v129 = vld [vmem:[%s1 + $0x164] sm:$0xf]
  %v130 = vld [vmem:[%s1 + $0x168] sm:$0xf]
  %v131 = vld [vmem:[%s1 + $0x16c] sm:$0xf]
  %v132 = vld [vmem:[%s1 + $0x170] sm:$0xf]
  %v133 = vld [vmem:[%s1 + $0x174] sm:$0xf]
  %v134 = vld [vmem:[%s1 + $0x178] sm:$0xf]
  %v135 = vld [vmem:[%s1 + $0x17c] sm:$0xf]
  %v136 = vld [vmem:[%s1 + $0x180] sm:$0xf]
  %v137 = vld [vmem:[%s1 + $0x184] sm:$0xf]
  %v138 = vld [vmem:[%s1 + $0x188] sm:$0xf]
  %v139 = vld [vmem:[%s1 + $0x18c] sm:$0xf]
  %v140 = vld [vmem:[%s1 + $0x190] sm:$0xf]
  %v141 = vld [vmem:[%s1 + $0x194] sm:$0xf]
  %v142 = vld [vmem:[%s1 + $0x198] sm:$0xf]
  %v143 = vld [vmem:[%s1 + $0x19c] sm:$0xf]
  %v144 = vld [vmem:[%s1 + $0x1a0] sm:$0xf]
  %v145 = vld [vmem:[%s1 + $0x1a4] sm:$0xf]
  %v146 = vld [vmem:[%s1 + $0x1a8] sm:$0xf]
  %v147 = vld [vmem:[%s1 + $0x1ac] sm:$0xf]
  %v148 = vld [vmem:[%s1 + $0x1b0] sm:$0xf]
  %v149 = vld [vmem:[%s1 + $0x1b4] sm:$0xf]
  %v150 = vld [vmem:[%s1 + $0x1b8] sm:$0xf]
  %v151 = vld [vmem:[%s1 + $0x1bc] sm:$0xf]
  %v152 = vld [vmem:[%s1 + $0x1c0] sm:$0xf]
  %v153 = vld [vmem:[%s1 + $0x1c4] sm:$0xf]
  %v154 = vld [vmem:[%s1 + $0x1c8] sm:$0xf]
  %v155 = vld [vmem:[%s1 + $0x1cc] sm:$0xf]
  %v156 = vld [vmem:[%s1 + $0x1d0] sm:$0xf]
  %v157 = vld [vmem:[%s1 + $0x1d4] sm:$0xf]
  %v158 = vld [vmem:[%s1 + $0x1d8] sm:$0xf]
  %v159 = vld [vmem:[%s1 + $0x1dc] sm:$0xf]
  %v160 = vld [vmem:[%s1 + $0x1e0] sm:$0xf]
  %v161 = vld [vmem:[%s1 + $0x1e4] sm:$0xf]
  %v162 = vld [vmem:[%s1 + $0x1e8] sm:$0xf]
  %v163 = vld [vmem:[%s1 + $0x1ec] sm:$0xf]
  %v164 = vld [vmem:[%s1 + $0x1f0] sm:$0xf]
  %v165 = vld [vmem:[%s1 + $0x1f4] sm:$0xf]
  %v166 = vld [vmem:[%s1 + $0x1f8] sm:$0xf]
  %v167 = vld [vmem:[%s1 + $0x1fc] sm:$0xf]
  %v168 = vld [vmem:[%s1 + $0x200] sm:$0xf]
  %v169 = vld [vmem:[%s1 + $0x204] sm:$0xf]
  %v170 = vld [vmem:[%s1 + $0x208] sm:$0xf]
  %v171 = vld [vmem:[%s1 + $0x20c] sm:$0xf]
  %v172 = vld [vmem:[%s1 + $0x210] sm:$0xf]
  %v173 = vld [vmem:[%s1 + $0x214] sm:$0xf]
  %v174 = vld [vmem:[%s1 + $0x218] sm:$0xf]
  %v175 = vld [vmem:[%s1 + $0x21c] sm:$0xf]
  %v176 = vld [vmem:[%s1 + $0x220] sm:$0xf]
  %v177 = vld [vmem:[%s1 + $0x224] sm:$0xf]
  %v178 = vld [vmem:[%s1 + $0x228] sm:$0xf]
  %v179 = vld [vmem:[%s1 + $0x22c] sm:$0xf]
  %v180 = vld [vmem:[%s1 + $0x230] sm:$0xf]
  %v181 = vld [vmem:[%s1 + $0x234] sm:$0xf]
  %v182 = vld [vmem:[%s1 + $0x238] sm:$0xf]
  %v183 = vld [vmem:[%s1 + $0x23c] sm:$0xf]
  %v184 = vld [vmem:[%s1 + $0x240] sm:$0xf]
  %v185 = vld [vmem:[%s1 + $0x244] sm:$0xf]
  %v186 = vld [vmem:[%s1 + $0x248] sm:$0xf]
  %v187 = vld [vmem:[%s1 + $0x24c] sm:$0xf]
  %v188 = vld [vmem:[%s1 + $0x250] sm:$0xf]
  %v189 = vld [vmem:[%s1 + $0x254] sm:$0xf]
  %v190 = vld [vmem:[%s1 + $0x258] sm:$0xf]
  %v191 = vld [vmem:[%s1 + $0x25c] sm:$0xf]
  %v192 = vld [vmem:[%s1 + $0x260] sm:$0xf]
  %v193 = vld [vmem:[%s1 + $0x264] sm:$0xf]
  %v194 = vld [vmem:[%s1 + $0x268] sm:$0xf]
  %v195 = vld [vmem:[%s1 + $0x26c] sm:$0xf]
  %v196 = vld [vmem:[%s1 + $0x270] sm:$0xf]
  %v197 = vld [vmem:[%s1 + $0x274] sm:$0xf]
  %v198 = vld [vmem:[%s1 + $0x278] sm:$0xf]
  %v199 = vld [vmem:[%s1 + $0x27c] sm:$0xf]
  %v200 = vld [vmem:[%s1 + $0x280] sm:$0xf]
  %v201 = vld [vmem:[%s1 + $0x284] sm:$0xf]
  %v202 = vld [vmem:[%s1 + $0x288] sm:$0xf]
  %v203 = vld [vmem:[%s1 + $0x28c] sm:$0xf]
  %v204 = vld [vmem:[%s1 + $0x290] sm:$0xf]
  %v205 = vld [vmem:[%s1 + $0x294] sm:$0xf]
  %v206 = vld [vmem:[%s1 + $0x298] sm:$0xf]
  %v207 = vld [vmem:[%s1 + $0x29c] sm:$0xf]
  %v208 = vld [vmem:[%s1 + $0x2a0] sm:$0xf]
  %v209 = vld [vmem:[%s1 + $0x2a4] sm:$0xf]
  %v210 = vld [vmem:[%s1 + $0x2a8] sm:$0xf]
  %v211 = vld [vmem:[%s1 + $0x2ac] sm:$0xf]
  %v212 = vld [vmem:[%s1 + $0x2b0] sm:$0xf]
  %v213 = vld [vmem:[%s1 + $0x2b4] sm:$0xf]
  %v214 = vld [vmem:[%s1 + $0x2b8] sm:$0xf]
  %v215 = vld [vmem:[%s1 + $0x2bc] sm:$0xf]
  %v216 = vld [vmem:[%s1 + $0x2c0] sm:$0xf]
  %v217 = vld [vmem:[%s1 + $0x2c4] sm:$0xf]
  %v218 = vld [vmem:[%s1 + $0x2c8] sm:$0xf]
  %v219 = vld [vmem:[%s1 + $0x2cc] sm:$0xf]
  %v220 = vld [vmem:[%s1 + $0x2d0] sm:$0xf]
  %v221 = vld [vmem:[%s1 + $0x2d4] sm:$0xf]
  %v222 = vld [vmem:[%s1 + $0x2d8] sm:$0xf]
  %v223 = vld [vmem:[%s1 + $0x2dc] sm:$0xf]
  %v224 = vld [vmem:[%s1 + $0x2e0] sm:$0xf]
  %v225 = vld [vmem:[%s1 + $0x2e4] sm:$0xf]
  %v226 = vld [vmem:[%s1 + $0x2e8] sm:$0xf]
  %v227 = vld [vmem:[%s1 + $0x2ec] sm:$0xf]
  %v228 = vld [vmem:[%s1 + $0x2f0] sm:$0xf]
  %v229 = vld [vmem:[%s1 + $0x2f4] sm:$0xf]
  %v230 = vld [vmem:[%s1 + $0x2f8] sm:$0xf]
  %v231 = vld [vmem:[%s1 + $0x2fc] sm:$0xf]
  %v232 = vld [vmem:[%s1 + $0x300] sm:$0xf]
  %v233 = vld [vmem:[%s1 + $0x304] sm:$0xf]
  %v234 = vld [vmem:[%s1 + $0x308] sm:$0xf]
  %v235 = vld [vmem:[%s1 + $0x30c] sm:$0xf]
  %v236 = vld [vmem:[%s1 + $0x310] sm:$0xf]
  %v237 = vld [vmem:[%s1 + $0x314] sm:$0xf]
  %v238 = vld [vmem:[%s1 + $0x318] sm:$0xf]
  %v239 = vld [vmem:[%s1 + $0x31c] sm:$0xf]
  %v240 = vld [vmem:[%s1 + $0x320] sm:$0xf]
  %v241 = vld [vmem:[%s1 + $0x324] sm:$0xf]
  %v242 = vld [vmem:[%s1 + $0x328] sm:$0xf]
  %v243 = vld [vmem:[%s1 + $0x32c] sm:$0xf]
  %v244 = vld [vmem:[%s1 + $0x330] sm:$0xf]
  %v245 = vld [vmem:[%s1 + $0x334] sm:$0xf]
  %v246 = vld [vmem:[%s1 + $0x338] sm:$0xf]
  %v247 = vld [vmem:[%s1 + $0x33c] sm:$0xf]
  %v248 = vld [vmem:[%s1 + $0x340] sm:$0xf]
  %v249 = vld [vmem:[%s1 + $0x344] sm:$0xf]
  %v250 = vld [vmem:[%s1 + $0x348] sm:$0xf]
  %v251 = vld [vmem:[%s1 + $0x34c] sm:$0xf]
  %v252 = vld [vmem:[%s1 + $0x350] sm:$0xf]
  %v253 = vld [vmem:[%s1 + $0x354] sm:$0xf]
  %v254 = vld [vmem:[%s1 + $0x358] sm:$0xf]
  %v255 = vld [vmem:[%s1 + $0x35c] sm:$0xf]
  %v256 = vld [vmem:[%s1 + $0x360] sm:$0xf]
  %v257 = vld [vmem:[%s1 + $0x364] sm:$0xf]
  %v258 = vld [vmem:[%s1 + $0x368] sm:$0xf]
  %v259 = vld [vmem:[%s1 + $0x36c] sm:$0xf]
  %v260 = vld [vmem:[%s1 + $0x370] sm:$0xf]
  %v261 = vld [vmem:[%s1 + $0x374] sm:$0xf]
  %v262 = vld [vmem:[%s1 + $0x378] sm:$0xf]
  %v263 = vld [vmem:[%s1 + $0x37c] sm:$0xf]
  %v264 = vld [vmem:[%s1 + $0x380] sm:$0xf]
  %v265 = vld [vmem:[%s1 + $0x384] sm:$0xf]
  %v266 = vld [vmem:[%s1 + $0x388] sm:$0xf]
  %v267 = vld [vmem:[%s1 + $0x38c] sm:$0xf]
  %v268 = vld [vmem:[%s1 + $0x390] sm:$0xf]
  %v269 = vld [vmem:[%s1 + $0x394] sm:$0xf]
  %v270 = vld [vmem:[%s1 + $0x398] sm:$0xf]
  %v271 = vld [vmem:[%s1 + $0x39c] sm:$0xf]
  %v272 = vld [vmem:[%s1 + $0x3a0] sm:$0xf]
  %v273 = vld [vmem:[%s1 + $0x3a4] sm:$0xf]
  %v274 = vld [vmem:[%s1 + $0x3a8] sm:$0xf]
  %v275 = vld [vmem:[%s1 + $0x3ac] sm:$0xf]
  %v276 = vld [vmem:[%s1 + $0x3b0] sm:$0xf]
  %v277 = vld [vmem:[%s1 + $0x3b4] sm:$0xf]
  %v278 = vld [vmem:[%s1 + $0x3b8] sm:$0xf]
  %v279 = vld [vmem:[%s1 + $0x3bc] sm:$0xf]
  %v280 = vld [vmem:[%s1 + $0x3c0] sm:$0xf]
  %v281 = vld [vmem:[%s1 + $0x3c4] sm:$0xf]
  %v282 = vld [vmem:[%s1 + $0x3c8] sm:$0xf]
  %v283 = vld [vmem:[%s1 + $0x3cc] sm:$0xf]
  %v284 = vld [vmem:[%s1 + $0x3d0] sm:$0xf]
  %v285 = vld [vmem:[%s1 + $0x3d4] sm:$0xf]
  %v286 = vld [vmem:[%s1 + $0x3d8] sm:$0xf]
  %v287 = vld [vmem:[%s1 + $0x3dc] sm:$0xf]
  %v288 = vld [vmem:[%s1 + $0x3e0] sm:$0xf]
  %v289 = vld [vmem:[%s1 + $0x3e4] sm:$0xf]
  %v290 = vld [vmem:[%s1 + $0x3e8] sm:$0xf]
  %v291 = vld [vmem:[%s1 + $0x3ec] sm:$0xf]
  %v292 = vld [vmem:[%s1 + $0x3f0] sm:$0xf]
  %v293 = vld [vmem:[%s1 + $0x3f4] sm:$0xf]
  %v294 = vld [vmem:[%s1 + $0x3f8] sm:$0xf]
  %v295 = vld [vmem:[%s1 + $0x3fc] sm:$0xf]
  %v296 = vld [vmem:[%s1 + $0x400] sm:$0xf]
  %v297 = vld [vmem:[%s1 + $0x404] sm:$0xf]
  %v298 = vld [vmem:[%s1 + $0x408] sm:$0xf]
  %v299 = vld [vmem:[%s1 + $0x40c] sm:$0xf]
  %v300 = vld [vmem:[%s1 + $0x410] sm:$0xf]
  %v301 = vld [vmem:[%s1 + $0x414] sm:$0xf]
  %v302 = vld [vmem:[%s1 + $0x418] sm:$0xf]
  %v303 = vld [vmem:[%s1 + $0x41c] sm:$0xf]
  %v304 = vld [vmem:[%s1 + $0x420] sm:$0xf]
  %v305 = vld [vmem:[%s1 + $0x424] sm:$0xf]
  %v306 = vld [vmem:[%s1 + $0x428] sm:$0xf]
  %v307 = vld [vmem:[%s1 + $0x42c] sm:$0xf]
  %v308 = vld [vmem:[%s1 + $0x430] sm:$0xf]
  %v309 = vld [vmem:[%s1 + $0x434] sm:$0xf]
  %v310 = vld [vmem:[%s1 + $0x438] sm:$0xf]
  %v311 = vld [vmem:[%s1 + $0x43c] sm:$0xf]
  %v312 = vld [vmem:[%s1 + $0x440] sm:$0xf]
  %v313 = vld [vmem:[%s1 + $0x444] sm:$0xf]
  %v314 = vld [vmem:[%s1 + $0x448] sm:$0xf]
  %v315 = vld [vmem:[%s1 + $0x44c] sm:$0xf]
  %v316 = vld [vmem:[%s1 + $0x450] sm:$0xf]
  %v317 = vld [vmem:[%s1 + $0x454] sm:$0xf]
  %v318 = vld [vmem:[%s1 + $0x458] sm:$0xf]
  %v319 = vld [vmem:[%s1 + $0x45c] sm:$0xf]
  %v320 = vld [vmem:[%s1 + $0x460] sm:$0xf]
  %v321 = vld [vmem:[%s1 + $0x464] sm:$0xf]
  %v322 = vld [vmem:[%s1 + $0x468] sm:$0xf]
  %v323 = vld [vmem:[%s1 + $0x46c] sm:$0xf]
  %v324 = vld [vmem:[%s1 + $0x470] sm:$0xf]
  %v325 = vld [vmem:[%s1 + $0x474] sm:$0xf]
  %v326 = vld [vmem:[%s1 + $0x478] sm:$0xf]
  %v327 = vld [vmem:[%s1 + $0x47c] sm:$0xf]
  %v328 = vld [vmem:[%s1 + $0x480] sm:$0xf]
  %v329 = vld [vmem:[%s1 + $0x484] sm:$0xf]
  %v330 = vld [vmem:[%s1 + $0x488] sm:$0xf]
  %v331 = vld [vmem:[%s1 + $0x48c] sm:$0xf]
  %v332 = vld [vmem:[%s1 + $0x490] sm:$0xf]
  %v333 = vld [vmem:[%s1 + $0x494] sm:$0xf]
  %v334 = vld [vmem:[%s1 + $0x498] sm:$0xf]
  %v335 = vld [vmem:[%s1 + $0x49c] sm:$0xf]
  %v336 = vld [vmem:[%s1 + $0x4a0] sm:$0xf]
  %v337 = vld [vmem:[%s1 + $0x4a4] sm:$0xf]
  %v338 = vld [vmem:[%s1 + $0x4a8] sm:$0xf]
  %v339 = vld [vmem:[%s1 + $0x4ac] sm:$0xf]
  %v340 = vld [vmem:[%s1 + $0x4b0] sm:$0xf]
  %v341 = vld [vmem:[%s1 + $0x4b4] sm:$0xf]
  %v342 = vld [vmem:[%s1 + $0x4b8] sm:$0xf]
  %v343 = vld [vmem:[%s1 + $0x4bc] sm:$0xf]
  %v344 = vld [vmem:[%s1 + $0x4c0] sm:$0xf]
  %v345 = vld [vmem:[%s1 + $0x4c4] sm:$0xf]
  %v346 = vld [vmem:[%s1 + $0x4c8] sm:$0xf]
  %v347 = vld [vmem:[%s1 + $0x4cc] sm:$0xf]
  %v348 = vld [vmem:[%s1 + $0x4d0] sm:$0xf]
  %v349 = vld [vmem:[%s1 + $0x4d4] sm:$0xf]
  %v350 = vld [vmem:[%s1 + $0x4d8] sm:$0xf]
  %v351 = vld [vmem:[%s1 + $0x4dc] sm:$0xf]
  %v352 = vld [vmem:[%s1 + $0x4e0] sm:$0xf]
  %v353 = vld [vmem:[%s1 + $0x4e4] sm:$0xf]
  %v354 = vld [vmem:[%s1 + $0x4e8] sm:$0xf]
  %v355 = vld [vmem:[%s1 + $0x4ec] sm:$0xf]
  %v356 = vld [vmem:[%s1 + $0x4f0] sm:$0xf]
  %v357 = vld [vmem:[%s1 + $0x4f4] sm:$0xf]
  %v358 = vld [vmem:[%s1 + $0x4f8] sm:$0xf]
  %v359 = vld [vmem:[%s1 + $0x4fc] sm:$0xf]
  %v360 = vld [vmem:[%s1 + $0x500] sm:$0xf]
  %v361 = vld [vmem:[%s1 + $0x504] sm:$0xf]
  %v362 = vld [vmem:[%s1 + $0x508] sm:$0xf]
  %v363 = vld [vmem:[%s1 + $0x50c] sm:$0xf]
  %v364 = vld [vmem:[%s1 + $0x510] sm:$0xf]
  %v365 = vld [vmem:[%s1 + $0x514] sm:$0xf]
  %v366 = vld [vmem:[%s1 + $0x518] sm:$0xf]
  %v367 = vld [vmem:[%s1 + $0x51c] sm:$0xf]
  %v368 = vld [vmem:[%s1 + $0x520] sm:$0xf]
  %v369 = vld [vmem:[%s1 + $0x524] sm:$0xf]
  %v370 = vld [vmem:[%s1 + $0x528] sm:$0xf]
  %v371 = vld [vmem:[%s1 + $0x52c] sm:$0xf]
  %v372 = vld [vmem:[%s1 + $0x530] sm:$0xf]
  %v373 = vld [vmem:[%s1 + $0x534] sm:$0xf]
  %v374 = vld [vmem:[%s1 + $0x538] sm:$0xf]
  %v375 = vld [vmem:[%s1 + $0x53c] sm:$0xf]
  %v376 = vld [vmem:[%s1 + $0x540] sm:$0xf]
  %v377 = vld [vmem:[%s1 + $0x544] sm:$0xf]
  %v378 = vld [vmem:[%s1 + $0x548] sm:$0xf]
  %v379 = vld [vmem:[%s1 + $0x54c] sm:$0xf]
  %v380 = vld [vmem:[%s1 + $0x550] sm:$0xf]
  %v381 = vld [vmem:[%s1 + $0x554] sm:$0xf]
  %v382 = vld [vmem:[%s1 + $0x558] sm:$0xf]
  %v383 = vld [vmem:[%s1 + $0x55c] sm:$0xf]
  %v384 = vld [vmem:[%s1 + $0x560] sm:$0xf]
  %v385 = vld [vmem:[%s1 + $0x564] sm:$0xf]
  %v386 = vld [vmem:[%s1 + $0x568] sm:$0xf]
  %v387 = vld [vmem:[%s1 + $0x56c] sm:$0xf]
  %v388 = vld [vmem:[%s1 + $0x570] sm:$0xf]
  %v389 = vld [vmem:[%s1 + $0x574] sm:$0xf]
  %v390 = vld [vmem:[%s1 + $0x578] sm:$0xf]
  %v391 = vld [vmem:[%s1 + $0x57c] sm:$0xf]
  %v392 = vld [vmem:[%s1 + $0x580] sm:$0xf]
  %v393 = vld [vmem:[%s1 + $0x584] sm:$0xf]
  %v394 = vld [vmem:[%s1 + $0x588] sm:$0xf]
  %v395 = vld [vmem:[%s1 + $0x58c] sm:$0xf]
  %v396 = vld [vmem:[%s1 + $0x590] sm:$0xf]
  %v397 = vld [vmem:[%s1 + $0x594] sm:$0xf]
  %v398 = vld [vmem:[%s1 + $0x598] sm:$0xf]
  %v399 = vld [vmem:[%s1 + $0x59c] sm:$0xf]
  %v400 = vld [vmem:[%s1 + $0x5a0] sm:$0xf]
  %v401 = vld [vmem:[%s1 + $0x5a4] sm:$0xf]
  %v402 = vld [vmem:[%s1 + $0x5a8] sm:$0xf]
  %v403 = vld [vmem:[%s1 + $0x5ac] sm:$0xf]
  %v404 = vld [vmem:[%s1 + $0x5b0] sm:$0xf]
  %v405 = vld [vmem:[%s1 + $0x5b4] sm:$0xf]
  %v406 = vld [vmem:[%s1 + $0x5b8] sm:$0xf]
  %v407 = vld [vmem:[%s1 + $0x5bc] sm:$0xf]
  %v408 = vld [vmem:[%s1 + $0x5c0] sm:$0xf]
  %v409 = vld [vmem:[%s1 + $0x5c4] sm:$0xf]
  %v410 = vld [vmem:[%s1 + $0x5c8] sm:$0xf]
  %v411 = vld [vmem:[%s1 + $0x5cc] sm:$0xf]
  %v412 = vld [vmem:[%s1 + $0x5d0] sm:$0xf]
  %v413 = vld [vmem:[%s1 + $0x5d4] sm:$0xf]
  %v414 = vld [vmem:[%s1 + $0x5d8] sm:$0xf]
  %v415 = vld [vmem:[%s1 + $0x5dc] sm:$0xf]
  %v416 = vld [vmem:[%s1 + $0x5e0] sm:$0xf]
  %v417 = vld [vmem:[%s1 + $0x5e4] sm:$0xf]
  %v418 = vld [vmem:[%s1 + $0x5e8] sm:$0xf]
  %v419 = vld [vmem:[%s1 + $0x5ec] sm:$0xf]
  %v420 = vld [vmem:[%s1 + $0x5f0] sm:$0xf]
  %v421 = vld [vmem:[%s1 + $0x5f4] sm:$0xf]
  %v422 = vld [vmem:[%s1 + $0x5f8] sm:$0xf]
  %v423 = vld [vmem:[%s1 + $0x5fc] sm:$0xf]
  %v424 = vld [vmem:[%s1 + $0x600] sm:$0xf]
  %v425 = vld [vmem:[%s1 + $0x604] sm:$0xf]
  %v426 = vld [vmem:[%s1 + $0x608] sm:$0xf]
  %v427 = vld [vmem:[%s1 + $0x60c] sm:$0xf]
  %v428 = vld [vmem:[%s1 + $0x610] sm:$0xf]
  %v429 = vld [vmem:[%s1 + $0x614] sm:$0xf]
  %v430 = vld [vmem:[%s1 + $0x618] sm:$0xf]
  %v431 = vld [vmem:[%s1 + $0x61c] sm:$0xf]
  %v432 = vld [vmem:[%s1 + $0x620] sm:$0xf]
  %v433 = vld [vmem:[%s1 + $0x624] sm:$0xf]
  %v434 = vld [vmem:[%s1 + $0x628] sm:$0xf]
  %v435 = vld [vmem:[%s1 + $0x62c] sm:$0xf]
  %v436 = vld [vmem:[%s1 + $0x630] sm:$0xf]
  %v437 = vld [vmem:[%s1 + $0x634] sm:$0xf]
  %v438 = vld [vmem:[%s1 + $0x638] sm:$0xf]
  %v439 = vld [vmem:[%s1 + $0x63c] sm:$0xf]
  %v440 = vld [vmem:[%s2] sm:$0x1]
  %v442 = vlaneseq
  %v443 = vshrl.u32 %v442, 7
  %v444 = vsub.s32 0, %v443
  %v445 = vrot.slane %v440, %v444
  %v460 = vunpack.c.l.b16 %v27
  %v461 = vunpack.c.h.b16 %v27
  %v462 = vunpack.c.l.b16 %v28
  %v463 = vunpack.c.h.b16 %v28
  %v464 = vunpack.c.l.b16 %v29
  %v465 = vunpack.c.h.b16 %v29
  %v466 = vunpack.c.l.b16 %v30
  %v467 = vunpack.c.h.b16 %v30
  %v468 = vunpack.c.l.b16 %v31
  %v469 = vunpack.c.h.b16 %v31
  %v470 = vunpack.c.l.b16 %v32
  %v471 = vunpack.c.h.b16 %v32
  %v472 = vunpack.c.l.b16 %v33
  %v473 = vunpack.c.h.b16 %v33
  %v474 = vunpack.c.l.b16 %v34
  %v475 = vunpack.c.h.b16 %v34
  %v476 = vunpack.c.l.b16 %v35
  %v477 = vunpack.c.h.b16 %v35
  %v478 = vunpack.c.l.b16 %v36
  %v479 = vunpack.c.h.b16 %v36
  %v480 = vunpack.c.l.b16 %v37
  %v481 = vunpack.c.h.b16 %v37
  %v482 = vunpack.c.l.b16 %v38
  %v483 = vunpack.c.h.b16 %v38
  %v484 = vunpack.c.l.b16 %v39
  %v485 = vpack.c.b16 %v460, %v460
  %v486 = vpack.c.b16 %v461, %v461
  %v487 = vpack.c.b16 %v462, %v462
  %v488 = vpack.c.b16 %v463, %v463
  %v489 = vpack.c.b16 %v464, %v464
  %v490 = vpack.c.b16 %v465, %v465
  %v491 = vpack.c.b16 %v466, %v466
  %v492 = vpack.c.b16 %v467, %v467
  %v493 = vpack.c.b16 %v468, %v468
  %v494 = vpack.c.b16 %v469, %v469
  %v495 = vpack.c.b16 %v470, %v470
  %v496 = vpack.c.b16 %v471, %v471
  %v497 = vpack.c.b16 %v472, %v472
  %v498 = vpack.c.b16 %v473, %v473
  %v499 = vpack.c.b16 %v474, %v474
  %v500 = vpack.c.b16 %v475, %v475
  %v501 = vpack.c.b16 %v476, %v476
  %v502 = vpack.c.b16 %v477, %v477
  %v503 = vpack.c.b16 %v478, %v478
  %v504 = vpack.c.b16 %v479, %v479
  %v505 = vpack.c.b16 %v480, %v480
  %v506 = vpack.c.b16 %v481, %v481
  %v507 = vpack.c.b16 %v482, %v482
  %v508 = vpack.c.b16 %v483, %v483
  %v509 = vpack.c.b16 %v484, %v484
  %v935 = vunpack.c.l.b16 %v40
  %v936 = vunpack.c.l.b16 %v41
  %v937 = vunpack.c.l.b16 %v42
  %v938 = vunpack.c.l.b16 %v43
  %v939 = vunpack.c.l.b16 %v44
  %v940 = vunpack.c.l.b16 %v45
  %v941 = vunpack.c.l.b16 %v46
  %v942 = vunpack.c.l.b16 %v47
  %v943 = vunpack.c.l.b16 %v48
  %v944 = vunpack.c.l.b16 %v49
  %v945 = vunpack.c.l.b16 %v50
  %v946 = vunpack.c.l.b16 %v51
  %v947 = vunpack.c.l.b16 %v52
  %v948 = vunpack.c.l.b16 %v53
  %v949 = vunpack.c.l.b16 %v54
  %v950 = vunpack.c.l.b16 %v55
  %v951 = vunpack.c.l.b16 %v56
  %v952 = vunpack.c.l.b16 %v57
  %v953 = vunpack.c.l.b16 %v58
  %v954 = vunpack.c.l.b16 %v59
  %v955 = vunpack.c.l.b16 %v60
  %v956 = vunpack.c.l.b16 %v61
  %v957 = vunpack.c.l.b16 %v62
  %v958 = vunpack.c.l.b16 %v63
  %v959 = vunpack.c.l.b16 %v64
  %v960 = vunpack.c.l.b16 %v65
  %v961 = vunpack.c.l.b16 %v66
  %v962 = vunpack.c.l.b16 %v67
  %v963 = vunpack.c.l.b16 %v68
  %v964 = vunpack.c.l.b16 %v69
  %v965 = vunpack.c.l.b16 %v70
  %v966 = vunpack.c.l.b16 %v71
  %v967 = vunpack.c.l.b16 %v72
  %v968 = vunpack.c.l.b16 %v73
  %v969 = vunpack.c.l.b16 %v74
  %v970 = vunpack.c.l.b16 %v75
  %v971 = vunpack.c.l.b16 %v76
  %v972 = vunpack.c.l.b16 %v77
  %v973 = vunpack.c.l.b16 %v78
  %v974 = vunpack.c.l.b16 %v79
  %v975 = vunpack.c.l.b16 %v80
  %v976 = vunpack.c.l.b16 %v81
  %v977 = vunpack.c.l.b16 %v82
  %v978 = vunpack.c.l.b16 %v83
  %v979 = vunpack.c.l.b16 %v84
  %v980 = vunpack.c.l.b16 %v85
  %v981 = vunpack.c.l.b16 %v86
  %v982 = vunpack.c.l.b16 %v87
  %v983 = vunpack.c.l.b16 %v88
  %v984 = vunpack.c.l.b16 %v89
  %v985 = vunpack.c.l.b16 %v90
  %v986 = vunpack.c.l.b16 %v91
  %v987 = vunpack.c.l.b16 %v92
  %v988 = vunpack.c.l.b16 %v93
  %v989 = vunpack.c.l.b16 %v94
  %v990 = vunpack.c.l.b16 %v95
  %v991 = vunpack.c.l.b16 %v96
  %v992 = vunpack.c.l.b16 %v97
  %v993 = vunpack.c.l.b16 %v98
  %v994 = vunpack.c.l.b16 %v99
  %v995 = vunpack.c.l.b16 %v100
  %v996 = vunpack.c.l.b16 %v101
  %v997 = vunpack.c.l.b16 %v102
  %v998 = vunpack.c.l.b16 %v103
  %v999 = vunpack.c.l.b16 %v104
  %v1000 = vunpack.c.l.b16 %v105
  %v1001 = vunpack.c.l.b16 %v106
  %v1002 = vunpack.c.l.b16 %v107
  %v1003 = vunpack.c.l.b16 %v108
  %v1004 = vunpack.c.l.b16 %v109
  %v1005 = vunpack.c.l.b16 %v110
  %v1006 = vunpack.c.l.b16 %v111
  %v1007 = vunpack.c.l.b16 %v112
  %v1008 = vunpack.c.l.b16 %v113
  %v1009 = vunpack.c.l.b16 %v114
  %v1010 = vunpack.c.l.b16 %v115
  %v1011 = vunpack.c.l.b16 %v116
  %v1012 = vunpack.c.l.b16 %v117
  %v1013 = vunpack.c.l.b16 %v118
  %v1014 = vunpack.c.l.b16 %v119
  %v1015 = vunpack.c.l.b16 %v120
  %v1016 = vunpack.c.l.b16 %v121
  %v1017 = vunpack.c.l.b16 %v122
  %v1018 = vunpack.c.l.b16 %v123
  %v1019 = vunpack.c.l.b16 %v124
  %v1020 = vunpack.c.l.b16 %v125
  %v1021 = vunpack.c.l.b16 %v126
  %v1022 = vunpack.c.l.b16 %v127
  %v1023 = vunpack.c.l.b16 %v128
  %v1024 = vunpack.c.l.b16 %v129
  %v1025 = vunpack.c.l.b16 %v130
  %v1026 = vunpack.c.l.b16 %v131
  %v1027 = vunpack.c.l.b16 %v132
  %v1028 = vunpack.c.l.b16 %v133
  %v1029 = vunpack.c.l.b16 %v134
  %v1030 = vunpack.c.l.b16 %v135
  %v1031 = vunpack.c.l.b16 %v136
  %v1032 = vunpack.c.l.b16 %v137
  %v1033 = vunpack.c.l.b16 %v138
  %v1034 = vunpack.c.l.b16 %v139
  %v1035 = vunpack.c.l.b16 %v140
  %v1036 = vunpack.c.l.b16 %v141
  %v1037 = vunpack.c.l.b16 %v142
  %v1038 = vunpack.c.l.b16 %v143
  %v1039 = vunpack.c.l.b16 %v144
  %v1040 = vunpack.c.l.b16 %v145
  %v1041 = vunpack.c.l.b16 %v146
  %v1042 = vunpack.c.l.b16 %v147
  %v1043 = vunpack.c.l.b16 %v148
  %v1044 = vunpack.c.l.b16 %v149
  %v1045 = vunpack.c.l.b16 %v150
  %v1046 = vunpack.c.l.b16 %v151
  %v1047 = vunpack.c.l.b16 %v152
  %v1048 = vunpack.c.l.b16 %v153
  %v1049 = vunpack.c.l.b16 %v154
  %v1050 = vunpack.c.l.b16 %v155
  %v1051 = vunpack.c.l.b16 %v156
  %v1052 = vunpack.c.l.b16 %v157
  %v1053 = vunpack.c.l.b16 %v158
  %v1054 = vunpack.c.l.b16 %v159
  %v1055 = vunpack.c.l.b16 %v160
  %v1056 = vunpack.c.l.b16 %v161
  %v1057 = vunpack.c.l.b16 %v162
  %v1058 = vunpack.c.l.b16 %v163
  %v1059 = vunpack.c.l.b16 %v164
  %v1060 = vunpack.c.l.b16 %v165
  %v1061 = vunpack.c.l.b16 %v166
  %v1062 = vunpack.c.l.b16 %v167
  %v1063 = vunpack.c.l.b16 %v168
  %v1064 = vunpack.c.l.b16 %v169
  %v1065 = vunpack.c.l.b16 %v170
  %v1066 = vunpack.c.l.b16 %v171
  %v1067 = vunpack.c.l.b16 %v172
  %v1068 = vunpack.c.l.b16 %v173
  %v1069 = vunpack.c.l.b16 %v174
  %v1070 = vunpack.c.l.b16 %v175
  %v1071 = vunpack.c.l.b16 %v176
  %v1072 = vunpack.c.l.b16 %v177
  %v1073 = vunpack.c.l.b16 %v178
  %v1074 = vunpack.c.l.b16 %v179
  %v1075 = vunpack.c.l.b16 %v180
  %v1076 = vunpack.c.l.b16 %v181
  %v1077 = vunpack.c.l.b16 %v182
  %v1078 = vunpack.c.l.b16 %v183
  %v1079 = vunpack.c.l.b16 %v184
  %v1080 = vunpack.c.l.b16 %v185
  %v1081 = vunpack.c.l.b16 %v186
  %v1082 = vunpack.c.l.b16 %v187
  %v1083 = vunpack.c.l.b16 %v188
  %v1084 = vunpack.c.l.b16 %v189
  %v1085 = vunpack.c.l.b16 %v190
  %v1086 = vunpack.c.l.b16 %v191
  %v1087 = vunpack.c.l.b16 %v192
  %v1088 = vunpack.c.l.b16 %v193
  %v1089 = vunpack.c.l.b16 %v194
  %v1090 = vunpack.c.l.b16 %v195
  %v1091 = vunpack.c.l.b16 %v196
  %v1092 = vunpack.c.l.b16 %v197
  %v1093 = vunpack.c.l.b16 %v198
  %v1094 = vunpack.c.l.b16 %v199
  %v1095 = vunpack.c.l.b16 %v200
  %v1096 = vunpack.c.l.b16 %v201
  %v1097 = vunpack.c.l.b16 %v202
  %v1098 = vunpack.c.l.b16 %v203
  %v1099 = vunpack.c.l.b16 %v204
  %v1100 = vunpack.c.l.b16 %v205
  %v1101 = vunpack.c.l.b16 %v206
  %v1102 = vunpack.c.l.b16 %v207
  %v1103 = vunpack.c.l.b16 %v208
  %v1104 = vunpack.c.l.b16 %v209
  %v1105 = vunpack.c.l.b16 %v210
  %v1106 = vunpack.c.l.b16 %v211
  %v1107 = vunpack.c.l.b16 %v212
  %v1108 = vunpack.c.l.b16 %v213
  %v1109 = vunpack.c.l.b16 %v214
  %v1110 = vunpack.c.l.b16 %v215
  %v1111 = vunpack.c.l.b16 %v216
  %v1112 = vunpack.c.l.b16 %v217
  %v1113 = vunpack.c.l.b16 %v218
  %v1114 = vunpack.c.l.b16 %v219
  %v1115 = vunpack.c.l.b16 %v220
  %v1116 = vunpack.c.l.b16 %v221
  %v1117 = vunpack.c.l.b16 %v222
  %v1118 = vunpack.c.l.b16 %v223
  %v1119 = vunpack.c.l.b16 %v224
  %v1120 = vunpack.c.l.b16 %v225
  %v1121 = vunpack.c.l.b16 %v226
  %v1122 = vunpack.c.l.b16 %v227
  %v1123 = vunpack.c.l.b16 %v228
  %v1124 = vunpack.c.l.b16 %v229
  %v1125 = vunpack.c.l.b16 %v230
  %v1126 = vunpack.c.l.b16 %v231
  %v1127 = vunpack.c.l.b16 %v232
  %v1128 = vunpack.c.l.b16 %v233
  %v1129 = vunpack.c.l.b16 %v234
  %v1130 = vunpack.c.l.b16 %v235
  %v1131 = vunpack.c.l.b16 %v236
  %v1132 = vunpack.c.l.b16 %v237
  %v1133 = vunpack.c.l.b16 %v238
  %v1134 = vunpack.c.l.b16 %v239
  %v1135 = vunpack.c.l.b16 %v240
  %v1136 = vunpack.c.l.b16 %v241
  %v1137 = vunpack.c.l.b16 %v242
  %v1138 = vunpack.c.l.b16 %v243
  %v1139 = vunpack.c.l.b16 %v244
  %v1140 = vunpack.c.l.b16 %v245
  %v1141 = vunpack.c.l.b16 %v246
  %v1142 = vunpack.c.l.b16 %v247
  %v1143 = vunpack.c.l.b16 %v248
  %v1144 = vunpack.c.l.b16 %v249
  %v1145 = vunpack.c.l.b16 %v250
  %v1146 = vunpack.c.l.b16 %v251
  %v1147 = vunpack.c.l.b16 %v252
  %v1148 = vunpack.c.l.b16 %v253
  %v1149 = vunpack.c.l.b16 %v254
  %v1150 = vunpack.c.l.b16 %v255
  %v1151 = vunpack.c.l.b16 %v256
  %v1152 = vunpack.c.l.b16 %v257
  %v1153 = vunpack.c.l.b16 %v258
  %v1154 = vunpack.c.l.b16 %v259
  %v1155 = vunpack.c.l.b16 %v260
  %v1156 = vunpack.c.l.b16 %v261
  %v1157 = vunpack.c.l.b16 %v262
  %v1158 = vunpack.c.l.b16 %v263
  %v1159 = vunpack.c.l.b16 %v264
  %v1160 = vunpack.c.l.b16 %v265
  %v1161 = vunpack.c.l.b16 %v266
  %v1162 = vunpack.c.l.b16 %v267
  %v1163 = vunpack.c.l.b16 %v268
  %v1164 = vunpack.c.l.b16 %v269
  %v1165 = vunpack.c.l.b16 %v270
  %v1166 = vunpack.c.l.b16 %v271
  %v1167 = vunpack.c.l.b16 %v272
  %v1168 = vunpack.c.l.b16 %v273
  %v1169 = vunpack.c.l.b16 %v274
  %v1170 = vunpack.c.l.b16 %v275
  %v1171 = vunpack.c.l.b16 %v276
  %v1172 = vunpack.c.l.b16 %v277
  %v1173 = vunpack.c.l.b16 %v278
  %v1174 = vunpack.c.l.b16 %v279
  %v1175 = vunpack.c.l.b16 %v280
  %v1176 = vunpack.c.l.b16 %v281
  %v1177 = vunpack.c.l.b16 %v282
  %v1178 = vunpack.c.l.b16 %v283
  %v1179 = vunpack.c.l.b16 %v284
  %v1180 = vunpack.c.l.b16 %v285
  %v1181 = vunpack.c.l.b16 %v286
  %v1182 = vunpack.c.l.b16 %v287
  %v1183 = vunpack.c.l.b16 %v288
  %v1184 = vunpack.c.l.b16 %v289
  %v1185 = vunpack.c.l.b16 %v290
  %v1186 = vunpack.c.l.b16 %v291
  %v1187 = vunpack.c.l.b16 %v292
  %v1188 = vunpack.c.l.b16 %v293
  %v1189 = vunpack.c.l.b16 %v294
  %v1190 = vunpack.c.l.b16 %v295
  %v1191 = vunpack.c.l.b16 %v296
  %v1192 = vunpack.c.l.b16 %v297
  %v1193 = vunpack.c.l.b16 %v298
  %v1194 = vunpack.c.l.b16 %v299
  %v1195 = vunpack.c.l.b16 %v300
  %v1196 = vunpack.c.l.b16 %v301
  %v1197 = vunpack.c.l.b16 %v302
  %v1198 = vunpack.c.l.b16 %v303
  %v1199 = vunpack.c.l.b16 %v304
  %v1200 = vunpack.c.l.b16 %v305
  %v1201 = vunpack.c.l.b16 %v306
  %v1202 = vunpack.c.l.b16 %v307
  %v1203 = vunpack.c.l.b16 %v308
  %v1204 = vunpack.c.l.b16 %v309
  %v1205 = vunpack.c.l.b16 %v310
  %v1206 = vunpack.c.l.b16 %v311
  %v1207 = vunpack.c.l.b16 %v312
  %v1208 = vunpack.c.l.b16 %v313
  %v1209 = vunpack.c.l.b16 %v314
  %v1210 = vunpack.c.l.b16 %v315
  %v1211 = vunpack.c.l.b16 %v316
  %v1212 = vunpack.c.l.b16 %v317
  %v1213 = vunpack.c.l.b16 %v318
  %v1214 = vunpack.c.l.b16 %v319
  %v1215 = vunpack.c.l.b16 %v320
  %v1216 = vunpack.c.l.b16 %v321
  %v1217 = vunpack.c.l.b16 %v322
  %v1218 = vunpack.c.l.b16 %v323
  %v1219 = vunpack.c.l.b16 %v324
  %v1220 = vunpack.c.l.b16 %v325
  %v1221 = vunpack.c.l.b16 %v326
  %v1222 = vunpack.c.l.b16 %v327
  %v1223 = vunpack.c.l.b16 %v328
  %v1224 = vunpack.c.l.b16 %v329
  %v1225 = vunpack.c.l.b16 %v330
  %v1226 = vunpack.c.l.b16 %v331
  %v1227 = vunpack.c.l.b16 %v332
  %v1228 = vunpack.c.l.b16 %v333
  %v1229 = vunpack.c.l.b16 %v334
  %v1230 = vunpack.c.l.b16 %v335
  %v1231 = vunpack.c.l.b16 %v336
  %v1232 = vunpack.c.l.b16 %v337
  %v1233 = vunpack.c.l.b16 %v338
  %v1234 = vunpack.c.l.b16 %v339
  %v1235 = vunpack.c.l.b16 %v340
  %v1236 = vunpack.c.l.b16 %v341
  %v1237 = vunpack.c.l.b16 %v342
  %v1238 = vunpack.c.l.b16 %v343
  %v1239 = vunpack.c.l.b16 %v344
  %v1240 = vunpack.c.l.b16 %v345
  %v1241 = vunpack.c.l.b16 %v346
  %v1242 = vunpack.c.l.b16 %v347
  %v1243 = vunpack.c.l.b16 %v348
  %v1244 = vunpack.c.l.b16 %v349
  %v1245 = vunpack.c.l.b16 %v350
  %v1246 = vunpack.c.l.b16 %v351
  %v1247 = vunpack.c.l.b16 %v352
  %v1248 = vunpack.c.l.b16 %v353
  %v1249 = vunpack.c.l.b16 %v354
  %v1250 = vunpack.c.l.b16 %v355
  %v1251 = vunpack.c.l.b16 %v356
  %v1252 = vunpack.c.l.b16 %v357
  %v1253 = vunpack.c.l.b16 %v358
  %v1254 = vunpack.c.l.b16 %v359
  %v1255 = vunpack.c.l.b16 %v360
  %v1256 = vunpack.c.l.b16 %v361
  %v1257 = vunpack.c.l.b16 %v362
  %v1258 = vunpack.c.l.b16 %v363
  %v1259 = vunpack.c.l.b16 %v364
  %v1260 = vunpack.c.l.b16 %v365
  %v1261 = vunpack.c.l.b16 %v366
  %v1262 = vunpack.c.l.b16 %v367
  %v1263 = vunpack.c.l.b16 %v368
  %v1264 = vunpack.c.l.b16 %v369
  %v1265 = vunpack.c.l.b16 %v370
  %v1266 = vunpack.c.l.b16 %v371
  %v1267 = vunpack.c.l.b16 %v372
  %v1268 = vunpack.c.l.b16 %v373
  %v1269 = vunpack.c.l.b16 %v374
  %v1270 = vunpack.c.l.b16 %v375
  %v1271 = vunpack.c.l.b16 %v376
  %v1272 = vunpack.c.l.b16 %v377
  %v1273 = vunpack.c.l.b16 %v378
  %v1274 = vunpack.c.l.b16 %v379
  %v1275 = vunpack.c.l.b16 %v380
  %v1276 = vunpack.c.l.b16 %v381
  %v1277 = vunpack.c.l.b16 %v382
  %v1278 = vunpack.c.l.b16 %v383
  %v1279 = vunpack.c.l.b16 %v384
  %v1280 = vunpack.c.l.b16 %v385
  %v1281 = vunpack.c.l.b16 %v386
  %v1282 = vunpack.c.l.b16 %v387
  %v1283 = vunpack.c.l.b16 %v388
  %v1284 = vunpack.c.l.b16 %v389
  %v1285 = vunpack.c.l.b16 %v390
  %v1286 = vunpack.c.l.b16 %v391
  %v1287 = vunpack.c.l.b16 %v392
  %v1288 = vunpack.c.l.b16 %v393
  %v1289 = vunpack.c.l.b16 %v394
  %v1290 = vunpack.c.l.b16 %v395
  %v1291 = vunpack.c.l.b16 %v396
  %v1292 = vunpack.c.l.b16 %v397
  %v1293 = vunpack.c.l.b16 %v398
  %v1294 = vunpack.c.l.b16 %v399
  %v1295 = vunpack.c.l.b16 %v400
  %v1296 = vunpack.c.l.b16 %v401
  %v1297 = vunpack.c.l.b16 %v402
  %v1298 = vunpack.c.l.b16 %v403
  %v1299 = vunpack.c.l.b16 %v404
  %v1300 = vunpack.c.l.b16 %v405
  %v1301 = vunpack.c.l.b16 %v406
  %v1302 = vunpack.c.l.b16 %v407
  %v1303 = vunpack.c.l.b16 %v408
  %v1304 = vunpack.c.l.b16 %v409
  %v1305 = vunpack.c.l.b16 %v410
  %v1306 = vunpack.c.l.b16 %v411
  %v1307 = vunpack.c.l.b16 %v412
  %v1308 = vunpack.c.l.b16 %v413
  %v1309 = vunpack.c.l.b16 %v414
  %v1310 = vunpack.c.l.b16 %v415
  %v1311 = vunpack.c.l.b16 %v416
  %v1312 = vunpack.c.l.b16 %v417
  %v1313 = vunpack.c.l.b16 %v418
  %v1314 = vunpack.c.l.b16 %v419
  %v1315 = vunpack.c.l.b16 %v420
  %v1316 = vunpack.c.l.b16 %v421
  %v1317 = vunpack.c.l.b16 %v422
  %v1318 = vunpack.c.l.b16 %v423
  %v1319 = vunpack.c.l.b16 %v424
  %v1320 = vunpack.c.l.b16 %v425
  %v1321 = vunpack.c.l.b16 %v426
  %v1322 = vunpack.c.l.b16 %v427
  %v1323 = vunpack.c.l.b16 %v428
  %v1324 = vunpack.c.l.b16 %v429
  %v1325 = vunpack.c.l.b16 %v430
  %v1326 = vunpack.c.l.b16 %v431
  %v1327 = vunpack.c.l.b16 %v432
  %v1328 = vunpack.c.l.b16 %v433
  %v1329 = vunpack.c.l.b16 %v434
  %v1330 = vunpack.c.l.b16 %v435
  %v1331 = vunpack.c.l.b16 %v436
  %v1332 = vunpack.c.l.b16 %v437
  %v1333 = vunpack.c.l.b16 %v438
  %v1334 = vunpack.c.l.b16 %v439
  %v1335 = vpack.c.b16 %v936, %v935
  %v1336 = vpack.c.b16 %v938, %v937
  %v1337 = vpack.c.b16 %v940, %v939
  %v1338 = vpack.c.b16 %v942, %v941
  %v1339 = vpack.c.b16 %v944, %v943
  %v1340 = vpack.c.b16 %v946, %v945
  %v1341 = vpack.c.b16 %v948, %v947
  %v1342 = vpack.c.b16 %v950, %v949
  %v1343 = vpack.c.b16 %v952, %v951
  %v1344 = vpack.c.b16 %v954, %v953
  %v1345 = vpack.c.b16 %v956, %v955
  %v1346 = vpack.c.b16 %v958, %v957
  %v1347 = vpack.c.b16 %v960, %v959
  %v1348 = vpack.c.b16 %v962, %v961
  %v1349 = vpack.c.b16 %v964, %v963
  %v1350 = vpack.c.b16 %v966, %v965
  %v1351 = vpack.c.b16 %v968, %v967
  %v1352 = vpack.c.b16 %v970, %v969
  %v1353 = vpack.c.b16 %v972, %v971
  %v1354 = vpack.c.b16 %v974, %v973
  %v1355 = vpack.c.b16 %v976, %v975
  %v1356 = vpack.c.b16 %v978, %v977
  %v1357 = vpack.c.b16 %v980, %v979
  %v1358 = vpack.c.b16 %v982, %v981
  %v1359 = vpack.c.b16 %v984, %v983
  %v1360 = vpack.c.b16 %v986, %v985
  %v1361 = vpack.c.b16 %v988, %v987
  %v1362 = vpack.c.b16 %v990, %v989
  %v1363 = vpack.c.b16 %v992, %v991
  %v1364 = vpack.c.b16 %v994, %v993
  %v1365 = vpack.c.b16 %v996, %v995
  %v1366 = vpack.c.b16 %v998, %v997
  %v1367 = vpack.c.b16 %v1000, %v999
  %v1368 = vpack.c.b16 %v1002, %v1001
  %v1369 = vpack.c.b16 %v1004, %v1003
  %v1370 = vpack.c.b16 %v1006, %v1005
  %v1371 = vpack.c.b16 %v1008, %v1007
  %v1372 = vpack.c.b16 %v1010, %v1009
  %v1373 = vpack.c.b16 %v1012, %v1011
  %v1374 = vpack.c.b16 %v1014, %v1013
  %v1375 = vpack.c.b16 %v1016, %v1015
  %v1376 = vpack.c.b16 %v1018, %v1017
  %v1377 = vpack.c.b16 %v1020, %v1019
  %v1378 = vpack.c.b16 %v1022, %v1021
  %v1379 = vpack.c.b16 %v1024, %v1023
  %v1380 = vpack.c.b16 %v1026, %v1025
  %v1381 = vpack.c.b16 %v1028, %v1027
  %v1382 = vpack.c.b16 %v1030, %v1029
  %v1383 = vpack.c.b16 %v1032, %v1031
  %v1384 = vpack.c.b16 %v1034, %v1033
  %v1385 = vpack.c.b16 %v1036, %v1035
  %v1386 = vpack.c.b16 %v1038, %v1037
  %v1387 = vpack.c.b16 %v1040, %v1039
  %v1388 = vpack.c.b16 %v1042, %v1041
  %v1389 = vpack.c.b16 %v1044, %v1043
  %v1390 = vpack.c.b16 %v1046, %v1045
  %v1391 = vpack.c.b16 %v1048, %v1047
  %v1392 = vpack.c.b16 %v1050, %v1049
  %v1393 = vpack.c.b16 %v1052, %v1051
  %v1394 = vpack.c.b16 %v1054, %v1053
  %v1395 = vpack.c.b16 %v1056, %v1055
  %v1396 = vpack.c.b16 %v1058, %v1057
  %v1397 = vpack.c.b16 %v1060, %v1059
  %v1398 = vpack.c.b16 %v1062, %v1061
  %v1399 = vpack.c.b16 %v1064, %v1063
  %v1400 = vpack.c.b16 %v1066, %v1065
  %v1401 = vpack.c.b16 %v1068, %v1067
  %v1402 = vpack.c.b16 %v1070, %v1069
  %v1403 = vpack.c.b16 %v1072, %v1071
  %v1404 = vpack.c.b16 %v1074, %v1073
  %v1405 = vpack.c.b16 %v1076, %v1075
  %v1406 = vpack.c.b16 %v1078, %v1077
  %v1407 = vpack.c.b16 %v1080, %v1079
  %v1408 = vpack.c.b16 %v1082, %v1081
  %v1409 = vpack.c.b16 %v1084, %v1083
  %v1410 = vpack.c.b16 %v1086, %v1085
  %v1411 = vpack.c.b16 %v1088, %v1087
  %v1412 = vpack.c.b16 %v1090, %v1089
  %v1413 = vpack.c.b16 %v1092, %v1091
  %v1414 = vpack.c.b16 %v1094, %v1093
  %v1415 = vpack.c.b16 %v1096, %v1095
  %v1416 = vpack.c.b16 %v1098, %v1097
  %v1417 = vpack.c.b16 %v1100, %v1099
  %v1418 = vpack.c.b16 %v1102, %v1101
  %v1419 = vpack.c.b16 %v1104, %v1103
  %v1420 = vpack.c.b16 %v1106, %v1105
  %v1421 = vpack.c.b16 %v1108, %v1107
  %v1422 = vpack.c.b16 %v1110, %v1109
  %v1423 = vpack.c.b16 %v1112, %v1111
  %v1424 = vpack.c.b16 %v1114, %v1113
  %v1425 = vpack.c.b16 %v1116, %v1115
  %v1426 = vpack.c.b16 %v1118, %v1117
  %v1427 = vpack.c.b16 %v1120, %v1119
  %v1428 = vpack.c.b16 %v1122, %v1121
  %v1429 = vpack.c.b16 %v1124, %v1123
  %v1430 = vpack.c.b16 %v1126, %v1125
  %v1431 = vpack.c.b16 %v1128, %v1127
  %v1432 = vpack.c.b16 %v1130, %v1129
  %v1433 = vpack.c.b16 %v1132, %v1131
  %v1434 = vpack.c.b16 %v1134, %v1133
  %v1435 = vpack.c.b16 %v1136, %v1135
  %v1436 = vpack.c.b16 %v1138, %v1137
  %v1437 = vpack.c.b16 %v1140, %v1139
  %v1438 = vpack.c.b16 %v1142, %v1141
  %v1439 = vpack.c.b16 %v1144, %v1143
  %v1440 = vpack.c.b16 %v1146, %v1145
  %v1441 = vpack.c.b16 %v1148, %v1147
  %v1442 = vpack.c.b16 %v1150, %v1149
  %v1443 = vpack.c.b16 %v1152, %v1151
  %v1444 = vpack.c.b16 %v1154, %v1153
  %v1445 = vpack.c.b16 %v1156, %v1155
  %v1446 = vpack.c.b16 %v1158, %v1157
  %v1447 = vpack.c.b16 %v1160, %v1159
  %v1448 = vpack.c.b16 %v1162, %v1161
  %v1449 = vpack.c.b16 %v1164, %v1163
  %v1450 = vpack.c.b16 %v1166, %v1165
  %v1451 = vpack.c.b16 %v1168, %v1167
  %v1452 = vpack.c.b16 %v1170, %v1169
  %v1453 = vpack.c.b16 %v1172, %v1171
  %v1454 = vpack.c.b16 %v1174, %v1173
  %v1455 = vpack.c.b16 %v1176, %v1175
  %v1456 = vpack.c.b16 %v1178, %v1177
  %v1457 = vpack.c.b16 %v1180, %v1179
  %v1458 = vpack.c.b16 %v1182, %v1181
  %v1459 = vpack.c.b16 %v1184, %v1183
  %v1460 = vpack.c.b16 %v1186, %v1185
  %v1461 = vpack.c.b16 %v1188, %v1187
  %v1462 = vpack.c.b16 %v1190, %v1189
  %v1463 = vpack.c.b16 %v1192, %v1191
  %v1464 = vpack.c.b16 %v1194, %v1193
  %v1465 = vpack.c.b16 %v1196, %v1195
  %v1466 = vpack.c.b16 %v1198, %v1197
  %v1467 = vpack.c.b16 %v1200, %v1199
  %v1468 = vpack.c.b16 %v1202, %v1201
  %v1469 = vpack.c.b16 %v1204, %v1203
  %v1470 = vpack.c.b16 %v1206, %v1205
  %v1471 = vpack.c.b16 %v1208, %v1207
  %v1472 = vpack.c.b16 %v1210, %v1209
  %v1473 = vpack.c.b16 %v1212, %v1211
  %v1474 = vpack.c.b16 %v1214, %v1213
  %v1475 = vpack.c.b16 %v1216, %v1215
  %v1476 = vpack.c.b16 %v1218, %v1217
  %v1477 = vpack.c.b16 %v1220, %v1219
  %v1478 = vpack.c.b16 %v1222, %v1221
  %v1479 = vpack.c.b16 %v1224, %v1223
  %v1480 = vpack.c.b16 %v1226, %v1225
  %v1481 = vpack.c.b16 %v1228, %v1227
  %v1482 = vpack.c.b16 %v1230, %v1229
  %v1483 = vpack.c.b16 %v1232, %v1231
  %v1484 = vpack.c.b16 %v1234, %v1233
  %v1485 = vpack.c.b16 %v1236, %v1235
  %v1486 = vpack.c.b16 %v1238, %v1237
  %v1487 = vpack.c.b16 %v1240, %v1239
  %v1488 = vpack.c.b16 %v1242, %v1241
  %v1489 = vpack.c.b16 %v1244, %v1243
  %v1490 = vpack.c.b16 %v1246, %v1245
  %v1491 = vpack.c.b16 %v1248, %v1247
  %v1492 = vpack.c.b16 %v1250, %v1249
  %v1493 = vpack.c.b16 %v1252, %v1251
  %v1494 = vpack.c.b16 %v1254, %v1253
  %v1495 = vpack.c.b16 %v1256, %v1255
  %v1496 = vpack.c.b16 %v1258, %v1257
  %v1497 = vpack.c.b16 %v1260, %v1259
  %v1498 = vpack.c.b16 %v1262, %v1261
  %v1499 = vpack.c.b16 %v1264, %v1263
  %v1500 = vpack.c.b16 %v1266, %v1265
  %v1501 = vpack.c.b16 %v1268, %v1267
  %v1502 = vpack.c.b16 %v1270, %v1269
  %v1503 = vpack.c.b16 %v1272, %v1271
  %v1504 = vpack.c.b16 %v1274, %v1273
  %v1505 = vpack.c.b16 %v1276, %v1275
  %v1506 = vpack.c.b16 %v1278, %v1277
  %v1507 = vpack.c.b16 %v1280, %v1279
  %v1508 = vpack.c.b16 %v1282, %v1281
  %v1509 = vpack.c.b16 %v1284, %v1283
  %v1510 = vpack.c.b16 %v1286, %v1285
  %v1511 = vpack.c.b16 %v1288, %v1287
  %v1512 = vpack.c.b16 %v1290, %v1289
  %v1513 = vpack.c.b16 %v1292, %v1291
  %v1514 = vpack.c.b16 %v1294, %v1293
  %v1515 = vpack.c.b16 %v1296, %v1295
  %v1516 = vpack.c.b16 %v1298, %v1297
  %v1517 = vpack.c.b16 %v1300, %v1299
  %v1518 = vpack.c.b16 %v1302, %v1301
  %v1519 = vpack.c.b16 %v1304, %v1303
  %v1520 = vpack.c.b16 %v1306, %v1305
  %v1521 = vpack.c.b16 %v1308, %v1307
  %v1522 = vpack.c.b16 %v1310, %v1309
  %v1523 = vpack.c.b16 %v1312, %v1311
  %v1524 = vpack.c.b16 %v1314, %v1313
  %v1525 = vpack.c.b16 %v1316, %v1315
  %v1526 = vpack.c.b16 %v1318, %v1317
  %v1527 = vpack.c.b16 %v1320, %v1319
  %v1528 = vpack.c.b16 %v1322, %v1321
  %v1529 = vpack.c.b16 %v1324, %v1323
  %v1530 = vpack.c.b16 %v1326, %v1325
  %v1531 = vpack.c.b16 %v1328, %v1327
  %v1532 = vpack.c.b16 %v1330, %v1329
  %v1533 = vpack.c.b16 %v1332, %v1331
  %v1534 = vpack.c.b16 %v1334, %v1333
  %1735 = vmatprep.subr.bf16.mxu0 0
  %1736 = vmatpush1.bf16.msra.mxu0 %v1335
  %1737 = vmatprep.subr.bf16.mxu0 0
  %1738 = vmatpush1.bf16.msra.mxu0 %v1336
  %1739 = vmatprep.subr.bf16.mxu0 0
  %1740 = vmatpush1.bf16.msra.mxu0 %v1337
  %1741 = vmatprep.subr.bf16.mxu0 0
  %1742 = vmatpush1.bf16.msra.mxu0 %v1338
  %1743 = vmatprep.subr.bf16.mxu0 0
  %1744 = vmatpush1.bf16.msra.mxu0 %v1339
  %1745 = vmatprep.subr.bf16.mxu0 0
  %1746 = vmatpush1.bf16.msra.mxu0 %v1340
  %1747 = vmatprep.subr.bf16.mxu0 0
  %1748 = vmatpush1.bf16.msra.mxu0 %v1341
  %1749 = vmatprep.subr.bf16.mxu0 0
  %1750 = vmatpush1.bf16.msra.mxu0 %v1342
  %1751 = vmatprep.subr.bf16.mxu0 0
  %1752 = vmatpush1.bf16.msra.mxu0 %v1343
  %1753 = vmatprep.subr.bf16.mxu0 0
  %1754 = vmatpush1.bf16.msra.mxu0 %v1344
  %1755 = vmatprep.subr.bf16.mxu0 0
  %1756 = vmatpush1.bf16.msra.mxu0 %v1345
  %1757 = vmatprep.subr.bf16.mxu0 0
  %1758 = vmatpush1.bf16.msra.mxu0 %v1346
  %1759 = vmatprep.subr.bf16.mxu0 0
  %1760 = vmatpush1.bf16.msra.mxu0 %v1347
  %1761 = vmatprep.subr.bf16.mxu0 0
  %1762 = vmatpush1.bf16.msra.mxu0 %v1348
  %1763 = vmatprep.subr.bf16.mxu0 0
  %1764 = vmatpush1.bf16.msra.mxu0 %v1349
  %1765 = vmatprep.subr.bf16.mxu0 0
  %1766 = vmatpush1.bf16.msra.mxu0 %v1350
  %1767 = vmatprep.mubr.bf16.mxu0 %v486
  %1768 = vmatmul.mubr.bf16.gmra.mrb[0].mxu0 %v485
  %v1769 = vpop.f32.mrb[0].mxu0
  %v1770 = vadd.f32 %v445, %v1769
  %v1771 = vpop.f32.mrb[0].mxu0
  %v1772 = vpop.f32.mrb[0].mxu0
  %v1773 = vpop.f32.mrb[0].mxu0
  %1774 = vdwg.mxu0
  %1775 = vmatprep.subr.bf16.mxu0 0
  %1776 = vmatpush1.bf16.msra.mxu0 %v1351
  %1777 = vmatprep.subr.bf16.mxu0 0
  %1778 = vmatpush1.bf16.msra.mxu0 %v1352
  %1779 = vmatprep.subr.bf16.mxu0 0
  %1780 = vmatpush1.bf16.msra.mxu0 %v1353
  %1781 = vmatprep.subr.bf16.mxu0 0
  %1782 = vmatpush1.bf16.msra.mxu0 %v1354
  %1783 = vmatprep.subr.bf16.mxu0 0
  %1784 = vmatpush1.bf16.msra.mxu0 %v1355
  %1785 = vmatprep.subr.bf16.mxu0 0
  %1786 = vmatpush1.bf16.msra.mxu0 %v1356
  %1787 = vmatprep.subr.bf16.mxu0 0
  %1788 = vmatpush1.bf16.msra.mxu0 %v1357
  %1789 = vmatprep.subr.bf16.mxu0 0
  %1790 = vmatpush1.bf16.msra.mxu0 %v1358
  %1791 = vmatprep.subr.bf16.mxu0 0
  %1792 = vmatpush1.bf16.msra.mxu0 %v1359
  %1793 = vmatprep.subr.bf16.mxu0 0
  %1794 = vmatpush1.bf16.msra.mxu0 %v1360
  %1795 = vmatprep.subr.bf16.mxu0 0
  %1796 = vmatpush1.bf16.msra.mxu0 %v1361
  %1797 = vmatprep.subr.bf16.mxu0 0
  %1798 = vmatpush1.bf16.msra.mxu0 %v1362
  %1799 = vmatprep.subr.bf16.mxu0 0
  %1800 = vmatpush1.bf16.msra.mxu0 %v1363
  %1801 = vmatprep.subr.bf16.mxu0 0
  %1802 = vmatpush1.bf16.msra.mxu0 %v1364
  %1803 = vmatprep.subr.bf16.mxu0 0
  %1804 = vmatpush1.bf16.msra.mxu0 %v1365
  %1805 = vmatprep.subr.bf16.mxu0 0
  %1806 = vmatpush1.bf16.msra.mxu0 %v1366
  %1807 = vmatprep.mubr.bf16.mxu0 %v488
  %1808 = vmatmul.mubr.bf16.gmra.mrb[0].mxu0 %v487
  %v1809 = vpop.f32.mrb[0].mxu0
  %v1810 = vadd.f32 %v1770, %v1809
  %v1811 = vpop.f32.mrb[0].mxu0
  %v1812 = vpop.f32.mrb[0].mxu0
  %v1813 = vpop.f32.mrb[0].mxu0
  %1814 = vdwg.mxu0
  %1815 = vmatprep.subr.bf16.mxu0 0
  %1816 = vmatpush1.bf16.msra.mxu0 %v1367
  %1817 = vmatprep.subr.bf16.mxu0 0
  %1818 = vmatpush1.bf16.msra.mxu0 %v1368
  %1819 = vmatprep.subr.bf16.mxu0 0
  %1820 = vmatpush1.bf16.msra.mxu0 %v1369
  %1821 = vmatprep.subr.bf16.mxu0 0
  %1822 = vmatpush1.bf16.msra.mxu0 %v1370
  %1823 = vmatprep.subr.bf16.mxu0 0
  %1824 = vmatpush1.bf16.msra.mxu0 %v1371
  %1825 = vmatprep.subr.bf16.mxu0 0
  %1826 = vmatpush1.bf16.msra.mxu0 %v1372
  %1827 = vmatprep.subr.bf16.mxu0 0
  %1828 = vmatpush1.bf16.msra.mxu0 %v1373
  %1829 = vmatprep.subr.bf16.mxu0 0
  %1830 = vmatpush1.bf16.msra.mxu0 %v1374
  %1831 = vmatprep.subr.bf16.mxu0 0
  %1832 = vmatpush1.bf16.msra.mxu0 %v1375
  %1833 = vmatprep.subr.bf16.mxu0 0
  %1834 = vmatpush1.bf16.msra.mxu0 %v1376
  %1835 = vmatprep.subr.bf16.mxu0 0
  %1836 = vmatpush1.bf16.msra.mxu0 %v1377
  %1837 = vmatprep.subr.bf16.mxu0 0
  %1838 = vmatpush1.bf16.msra.mxu0 %v1378
  %1839 = vmatprep.subr.bf16.mxu0 0
  %1840 = vmatpush1.bf16.msra.mxu0 %v1379
  %1841 = vmatprep.subr.bf16.mxu0 0
  %1842 = vmatpush1.bf16.msra.mxu0 %v1380
  %1843 = vmatprep.subr.bf16.mxu0 0
  %1844 = vmatpush1.bf16.msra.mxu0 %v1381
  %1845 = vmatprep.subr.bf16.mxu0 0
  %1846 = vmatpush1.bf16.msra.mxu0 %v1382
  %1847 = vmatprep.mubr.bf16.mxu0 %v490
  %1848 = vmatmul.mubr.bf16.gmra.mrb[0].mxu0 %v489
  %v1849 = vpop.f32.mrb[0].mxu0
  %v1850 = vadd.f32 %v1810, %v1849
  %v1851 = vpop.f32.mrb[0].mxu0
  %v1852 = vpop.f32.mrb[0].mxu0
  %v1853 = vpop.f32.mrb[0].mxu0
  %1854 = vdwg.mxu0
  %1855 = vmatprep.subr.bf16.mxu0 0
  %1856 = vmatpush1.bf16.msra.mxu0 %v1383
  %1857 = vmatprep.subr.bf16.mxu0 0
  %1858 = vmatpush1.bf16.msra.mxu0 %v1384
  %1859 = vmatprep.subr.bf16.mxu0 0
  %1860 = vmatpush1.bf16.msra.mxu0 %v1385
  %1861 = vmatprep.subr.bf16.mxu0 0
  %1862 = vmatpush1.bf16.msra.mxu0 %v1386
  %1863 = vmatprep.subr.bf16.mxu0 0
  %1864 = vmatpush1.bf16.msra.mxu0 %v1387
  %1865 = vmatprep.subr.bf16.mxu0 0
  %1866 = vmatpush1.bf16.msra.mxu0 %v1388
  %1867 = vmatprep.subr.bf16.mxu0 0
  %1868 = vmatpush1.bf16.msra.mxu0 %v1389
  %1869 = vmatprep.subr.bf16.mxu0 0
  %1870 = vmatpush1.bf16.msra.mxu0 %v1390
  %1871 = vmatprep.subr.bf16.mxu0 0
  %1872 = vmatpush1.bf16.msra.mxu0 %v1391
  %1873 = vmatprep.subr.bf16.mxu0 0
  %1874 = vmatpush1.bf16.msra.mxu0 %v1392
  %1875 = vmatprep.subr.bf16.mxu0 0
  %1876 = vmatpush1.bf16.msra.mxu0 %v1393
  %1877 = vmatprep.subr.bf16.mxu0 0
  %1878 = vmatpush1.bf16.msra.mxu0 %v1394
  %1879 = vmatprep.subr.bf16.mxu0 0
  %1880 = vmatpush1.bf16.msra.mxu0 %v1395
  %1881 = vmatprep.subr.bf16.mxu0 0
  %1882 = vmatpush1.bf16.msra.mxu0 %v1396
  %1883 = vmatprep.subr.bf16.mxu0 0
  %1884 = vmatpush1.bf16.msra.mxu0 %v1397
  %1885 = vmatprep.subr.bf16.mxu0 0
  %1886 = vmatpush1.bf16.msra.mxu0 %v1398
  %1887 = vmatprep.mubr.bf16.mxu0 %v492
  %1888 = vmatmul.mubr.bf16.gmra.mrb[0].mxu0 %v491
  %v1889 = vpop.f32.mrb[0].mxu0
  %v1890 = vadd.f32 %v1850, %v1889
  %v1891 = vpop.f32.mrb[0].mxu0
  %v1892 = vpop.f32.mrb[0].mxu0
  %v1893 = vpop.f32.mrb[0].mxu0
  %1894 = vdwg.mxu0
  %1895 = vmatprep.subr.bf16.mxu0 0
  %1896 = vmatpush1.bf16.msra.mxu0 %v1399
  %1897 = vmatprep.subr.bf16.mxu0 0
  %1898 = vmatpush1.bf16.msra.mxu0 %v1400
  %1899 = vmatprep.subr.bf16.mxu0 0
  %1900 = vmatpush1.bf16.msra.mxu0 %v1401
  %1901 = vmatprep.subr.bf16.mxu0 0
  %1902 = vmatpush1.bf16.msra.mxu0 %v1402
  %1903 = vmatprep.subr.bf16.mxu0 0
  %1904 = vmatpush1.bf16.msra.mxu0 %v1403
  %1905 = vmatprep.subr.bf16.mxu0 0
  %1906 = vmatpush1.bf16.msra.mxu0 %v1404
  %1907 = vmatprep.subr.bf16.mxu0 0
  %1908 = vmatpush1.bf16.msra.mxu0 %v1405
  %1909 = vmatprep.subr.bf16.mxu0 0
  %1910 = vmatpush1.bf16.msra.mxu0 %v1406
  %1911 = vmatprep.subr.bf16.mxu0 0
  %1912 = vmatpush1.bf16.msra.mxu0 %v1407
  %1913 = vmatprep.subr.bf16.mxu0 0
  %1914 = vmatpush1.bf16.msra.mxu0 %v1408
  %1915 = vmatprep.subr.bf16.mxu0 0
  %1916 = vmatpush1.bf16.msra.mxu0 %v1409
  %1917 = vmatprep.subr.bf16.mxu0 0
  %1918 = vmatpush1.bf16.msra.mxu0 %v1410
  %1919 = vmatprep.subr.bf16.mxu0 0
  %1920 = vmatpush1.bf16.msra.mxu0 %v1411
  %1921 = vmatprep.subr.bf16.mxu0 0
  %1922 = vmatpush1.bf16.msra.mxu0 %v1412
  %1923 = vmatprep.subr.bf16.mxu0 0
  %1924 = vmatpush1.bf16.msra.mxu0 %v1413
  %1925 = vmatprep.subr.bf16.mxu0 0
  %1926 = vmatpush1.bf16.msra.mxu0 %v1414
  %1927 = vmatprep.mubr.bf16.mxu0 %v494
  %1928 = vmatmul.mubr.bf16.gmra.mrb[0].mxu0 %v493
  %v1929 = vpop.f32.mrb[0].mxu0
  %v1930 = vadd.f32 %v1890, %v1929
  %v1931 = vpop.f32.mrb[0].mxu0
  %v1932 = vpop.f32.mrb[0].mxu0
  %v1933 = vpop.f32.mrb[0].mxu0
  %1934 = vdwg.mxu0
  %1935 = vmatprep.subr.bf16.mxu0 0
  %1936 = vmatpush1.bf16.msra.mxu0 %v1415
  %1937 = vmatprep.subr.bf16.mxu0 0
  %1938 = vmatpush1.bf16.msra.mxu0 %v1416
  %1939 = vmatprep.subr.bf16.mxu0 0
  %1940 = vmatpush1.bf16.msra.mxu0 %v1417
  %1941 = vmatprep.subr.bf16.mxu0 0
  %1942 = vmatpush1.bf16.msra.mxu0 %v1418
  %1943 = vmatprep.subr.bf16.mxu0 0
  %1944 = vmatpush1.bf16.msra.mxu0 %v1419
  %1945 = vmatprep.subr.bf16.mxu0 0
  %1946 = vmatpush1.bf16.msra.mxu0 %v1420
  %1947 = vmatprep.subr.bf16.mxu0 0
  %1948 = vmatpush1.bf16.msra.mxu0 %v1421
  %1949 = vmatprep.subr.bf16.mxu0 0
  %1950 = vmatpush1.bf16.msra.mxu0 %v1422
  %1951 = vmatprep.subr.bf16.mxu0 0
  %1952 = vmatpush1.bf16.msra.mxu0 %v1423
  %1953 = vmatprep.subr.bf16.mxu0 0
  %1954 = vmatpush1.bf16.msra.mxu0 %v1424
  %1955 = vmatprep.subr.bf16.mxu0 0
  %1956 = vmatpush1.bf16.msra.mxu0 %v1425
  %1957 = vmatprep.subr.bf16.mxu0 0
  %1958 = vmatpush1.bf16.msra.mxu0 %v1426
  %1959 = vmatprep.subr.bf16.mxu0 0
  %1960 = vmatpush1.bf16.msra.mxu0 %v1427
  %1961 = vmatprep.subr.bf16.mxu0 0
  %1962 = vmatpush1.bf16.msra.mxu0 %v1428
  %1963 = vmatprep.subr.bf16.mxu0 0
  %1964 = vmatpush1.bf16.msra.mxu0 %v1429
  %1965 = vmatprep.subr.bf16.mxu0 0
  %1966 = vmatpush1.bf16.msra.mxu0 %v1430
  %1967 = vmatprep.mubr.bf16.mxu0 %v496
  %1968 = vmatmul.mubr.bf16.gmra.mrb[0].mxu0 %v495
  %v1969 = vpop.f32.mrb[0].mxu0
  %v1970 = vadd.f32 %v1930, %v1969
  %v1971 = vpop.f32.mrb[0].mxu0
  %v1972 = vpop.f32.mrb[0].mxu0
  %v1973 = vpop.f32.mrb[0].mxu0
  %1974 = vdwg.mxu0
  %1975 = vmatprep.subr.bf16.mxu0 0
  %1976 = vmatpush1.bf16.msra.mxu0 %v1431
  %1977 = vmatprep.subr.bf16.mxu0 0
  %1978 = vmatpush1.bf16.msra.mxu0 %v1432
  %1979 = vmatprep.subr.bf16.mxu0 0
  %1980 = vmatpush1.bf16.msra.mxu0 %v1433
  %1981 = vmatprep.subr.bf16.mxu0 0
  %1982 = vmatpush1.bf16.msra.mxu0 %v1434
  %1983 = vmatprep.subr.bf16.mxu0 0
  %1984 = vmatpush1.bf16.msra.mxu0 %v1435
  %1985 = vmatprep.subr.bf16.mxu0 0
  %1986 = vmatpush1.bf16.msra.mxu0 %v1436
  %1987 = vmatprep.subr.bf16.mxu0 0
  %1988 = vmatpush1.bf16.msra.mxu0 %v1437
  %1989 = vmatprep.subr.bf16.mxu0 0
  %1990 = vmatpush1.bf16.msra.mxu0 %v1438
  %1991 = vmatprep.subr.bf16.mxu0 0
  %1992 = vmatpush1.bf16.msra.mxu0 %v1439
  %1993 = vmatprep.subr.bf16.mxu0 0
  %1994 = vmatpush1.bf16.msra.mxu0 %v1440
  %1995 = vmatprep.subr.bf16.mxu0 0
  %1996 = vmatpush1.bf16.msra.mxu0 %v1441
  %1997 = vmatprep.subr.bf16.mxu0 0
  %1998 = vmatpush1.bf16.msra.mxu0 %v1442
  %1999 = vmatprep.subr.bf16.mxu0 0
  %2000 = vmatpush1.bf16.msra.mxu0 %v1443
  %2001 = vmatprep.subr.bf16.mxu0 0
  %2002 = vmatpush1.bf16.msra.mxu0 %v1444
  %2003 = vmatprep.subr.bf16.mxu0 0
  %2004 = vmatpush1.bf16.msra.mxu0 %v1445
  %2005 = vmatprep.subr.bf16.mxu0 0
  %2006 = vmatpush1.bf16.msra.mxu0 %v1446
  %2007 = vmatprep.mubr.bf16.mxu0 %v498
  %2008 = vmatmul.mubr.bf16.gmra.mrb[0].mxu0 %v497
  %v2009 = vpop.f32.mrb[0].mxu0
  %v2010 = vadd.f32 %v1970, %v2009
  %v2011 = vpop.f32.mrb[0].mxu0
  %v2012 = vpop.f32.mrb[0].mxu0
  %v2013 = vpop.f32.mrb[0].mxu0
  %2014 = vdwg.mxu0
  %2015 = vmatprep.subr.bf16.mxu0 0
  %2016 = vmatpush1.bf16.msra.mxu0 %v1447
  %2017 = vmatprep.subr.bf16.mxu0 0
  %2018 = vmatpush1.bf16.msra.mxu0 %v1448
  %2019 = vmatprep.subr.bf16.mxu0 0
  %2020 = vmatpush1.bf16.msra.mxu0 %v1449
  %2021 = vmatprep.subr.bf16.mxu0 0
  %2022 = vmatpush1.bf16.msra.mxu0 %v1450
  %2023 = vmatprep.subr.bf16.mxu0 0
  %2024 = vmatpush1.bf16.msra.mxu0 %v1451
  %2025 = vmatprep.subr.bf16.mxu0 0
  %2026 = vmatpush1.bf16.msra.mxu0 %v1452
  %2027 = vmatprep.subr.bf16.mxu0 0
  %2028 = vmatpush1.bf16.msra.mxu0 %v1453
  %2029 = vmatprep.subr.bf16.mxu0 0
  %2030 = vmatpush1.bf16.msra.mxu0 %v1454
  %2031 = vmatprep.subr.bf16.mxu0 0
  %2032 = vmatpush1.bf16.msra.mxu0 %v1455
  %2033 = vmatprep.subr.bf16.mxu0 0
  %2034 = vmatpush1.bf16.msra.mxu0 %v1456
  %2035 = vmatprep.subr.bf16.mxu0 0
  %2036 = vmatpush1.bf16.msra.mxu0 %v1457
  %2037 = vmatprep.subr.bf16.mxu0 0
  %2038 = vmatpush1.bf16.msra.mxu0 %v1458
  %2039 = vmatprep.subr.bf16.mxu0 0
  %2040 = vmatpush1.bf16.msra.mxu0 %v1459
  %2041 = vmatprep.subr.bf16.mxu0 0
  %2042 = vmatpush1.bf16.msra.mxu0 %v1460
  %2043 = vmatprep.subr.bf16.mxu0 0
  %2044 = vmatpush1.bf16.msra.mxu0 %v1461
  %2045 = vmatprep.subr.bf16.mxu0 0
  %2046 = vmatpush1.bf16.msra.mxu0 %v1462
  %2047 = vmatprep.mubr.bf16.mxu0 %v500
  %2048 = vmatmul.mubr.bf16.gmra.mrb[0].mxu0 %v499
  %v2049 = vpop.f32.mrb[0].mxu0
  %v2050 = vadd.f32 %v2010, %v2049
  %v2051 = vpop.f32.mrb[0].mxu0
  %v2052 = vpop.f32.mrb[0].mxu0
  %v2053 = vpop.f32.mrb[0].mxu0
  %2054 = vdwg.mxu0
  %2055 = vmatprep.subr.bf16.mxu0 0
  %2056 = vmatpush1.bf16.msra.mxu0 %v1463
  %2057 = vmatprep.subr.bf16.mxu0 0
  %2058 = vmatpush1.bf16.msra.mxu0 %v1464
  %2059 = vmatprep.subr.bf16.mxu0 0
  %2060 = vmatpush1.bf16.msra.mxu0 %v1465
  %2061 = vmatprep.subr.bf16.mxu0 0
  %2062 = vmatpush1.bf16.msra.mxu0 %v1466
  %2063 = vmatprep.subr.bf16.mxu0 0
  %2064 = vmatpush1.bf16.msra.mxu0 %v1467
  %2065 = vmatprep.subr.bf16.mxu0 0
  %2066 = vmatpush1.bf16.msra.mxu0 %v1468
  %2067 = vmatprep.subr.bf16.mxu0 0
  %2068 = vmatpush1.bf16.msra.mxu0 %v1469
  %2069 = vmatprep.subr.bf16.mxu0 0
  %2070 = vmatpush1.bf16.msra.mxu0 %v1470
  %2071 = vmatprep.subr.bf16.mxu0 0
  %2072 = vmatpush1.bf16.msra.mxu0 %v1471
  %2073 = vmatprep.subr.bf16.mxu0 0
  %2074 = vmatpush1.bf16.msra.mxu0 %v1472
  %2075 = vmatprep.subr.bf16.mxu0 0
  %2076 = vmatpush1.bf16.msra.mxu0 %v1473
  %2077 = vmatprep.subr.bf16.mxu0 0
  %2078 = vmatpush1.bf16.msra.mxu0 %v1474
  %2079 = vmatprep.subr.bf16.mxu0 0
  %2080 = vmatpush1.bf16.msra.mxu0 %v1475
  %2081 = vmatprep.subr.bf16.mxu0 0
  %2082 = vmatpush1.bf16.msra.mxu0 %v1476
  %2083 = vmatprep.subr.bf16.mxu0 0
  %2084 = vmatpush1.bf16.msra.mxu0 %v1477
  %2085 = vmatprep.subr.bf16.mxu0 0
  %2086 = vmatpush1.bf16.msra.mxu0 %v1478
  %2087 = vmatprep.mubr.bf16.mxu0 %v502
  %2088 = vmatmul.mubr.bf16.gmra.mrb[0].mxu0 %v501
  %v2089 = vpop.f32.mrb[0].mxu0
  %v2090 = vadd.f32 %v2050, %v2089
  %v2091 = vpop.f32.mrb[0].mxu0
  %v2092 = vpop.f32.mrb[0].mxu0
  %v2093 = vpop.f32.mrb[0].mxu0
  %2094 = vdwg.mxu0
  %2095 = vmatprep.subr.bf16.mxu0 0
  %2096 = vmatpush1.bf16.msra.mxu0 %v1479
  %2097 = vmatprep.subr.bf16.mxu0 0
  %2098 = vmatpush1.bf16.msra.mxu0 %v1480
  %2099 = vmatprep.subr.bf16.mxu0 0
  %2100 = vmatpush1.bf16.msra.mxu0 %v1481
  %2101 = vmatprep.subr.bf16.mxu0 0
  %2102 = vmatpush1.bf16.msra.mxu0 %v1482
  %2103 = vmatprep.subr.bf16.mxu0 0
  %2104 = vmatpush1.bf16.msra.mxu0 %v1483
  %2105 = vmatprep.subr.bf16.mxu0 0
  %2106 = vmatpush1.bf16.msra.mxu0 %v1484
  %2107 = vmatprep.subr.bf16.mxu0 0
  %2108 = vmatpush1.bf16.msra.mxu0 %v1485
  %2109 = vmatprep.subr.bf16.mxu0 0
  %2110 = vmatpush1.bf16.msra.mxu0 %v1486
  %2111 = vmatprep.subr.bf16.mxu0 0
  %2112 = vmatpush1.bf16.msra.mxu0 %v1487
  %2113 = vmatprep.subr.bf16.mxu0 0
  %2114 = vmatpush1.bf16.msra.mxu0 %v1488
  %2115 = vmatprep.subr.bf16.mxu0 0
  %2116 = vmatpush1.bf16.msra.mxu0 %v1489
  %2117 = vmatprep.subr.bf16.mxu0 0
  %2118 = vmatpush1.bf16.msra.mxu0 %v1490
  %2119 = vmatprep.subr.bf16.mxu0 0
  %2120 = vmatpush1.bf16.msra.mxu0 %v1491
  %2121 = vmatprep.subr.bf16.mxu0 0
  %2122 = vmatpush1.bf16.msra.mxu0 %v1492
  %2123 = vmatprep.subr.bf16.mxu0 0
  %2124 = vmatpush1.bf16.msra.mxu0 %v1493
  %2125 = vmatprep.subr.bf16.mxu0 0
  %2126 = vmatpush1.bf16.msra.mxu0 %v1494
  %2127 = vmatprep.mubr.bf16.mxu0 %v504
  %2128 = vmatmul.mubr.bf16.gmra.mrb[0].mxu0 %v503
  %v2129 = vpop.f32.mrb[0].mxu0
  %v2130 = vadd.f32 %v2090, %v2129
  %v2131 = vpop.f32.mrb[0].mxu0
  %v2132 = vpop.f32.mrb[0].mxu0
  %v2133 = vpop.f32.mrb[0].mxu0
  %2134 = vdwg.mxu0
  %2135 = vmatprep.subr.bf16.mxu0 0
  %2136 = vmatpush1.bf16.msra.mxu0 %v1495
  %2137 = vmatprep.subr.bf16.mxu0 0
  %2138 = vmatpush1.bf16.msra.mxu0 %v1496
  %2139 = vmatprep.subr.bf16.mxu0 0
  %2140 = vmatpush1.bf16.msra.mxu0 %v1497
  %2141 = vmatprep.subr.bf16.mxu0 0
  %2142 = vmatpush1.bf16.msra.mxu0 %v1498
  %2143 = vmatprep.subr.bf16.mxu0 0
  %2144 = vmatpush1.bf16.msra.mxu0 %v1499
  %2145 = vmatprep.subr.bf16.mxu0 0
  %2146 = vmatpush1.bf16.msra.mxu0 %v1500
  %2147 = vmatprep.subr.bf16.mxu0 0
  %2148 = vmatpush1.bf16.msra.mxu0 %v1501
  %2149 = vmatprep.subr.bf16.mxu0 0
  %2150 = vmatpush1.bf16.msra.mxu0 %v1502
  %2151 = vmatprep.subr.bf16.mxu0 0
  %2152 = vmatpush1.bf16.msra.mxu0 %v1503
  %2153 = vmatprep.subr.bf16.mxu0 0
  %2154 = vmatpush1.bf16.msra.mxu0 %v1504
  %2155 = vmatprep.subr.bf16.mxu0 0
  %2156 = vmatpush1.bf16.msra.mxu0 %v1505
  %2157 = vmatprep.subr.bf16.mxu0 0
  %2158 = vmatpush1.bf16.msra.mxu0 %v1506
  %2159 = vmatprep.subr.bf16.mxu0 0
  %2160 = vmatpush1.bf16.msra.mxu0 %v1507
  %2161 = vmatprep.subr.bf16.mxu0 0
  %2162 = vmatpush1.bf16.msra.mxu0 %v1508
  %2163 = vmatprep.subr.bf16.mxu0 0
  %2164 = vmatpush1.bf16.msra.mxu0 %v1509
  %2165 = vmatprep.subr.bf16.mxu0 0
  %2166 = vmatpush1.bf16.msra.mxu0 %v1510
  %2167 = vmatprep.mubr.bf16.mxu0 %v506
  %2168 = vmatmul.mubr.bf16.gmra.mrb[0].mxu0 %v505
  %v2169 = vpop.f32.mrb[0].mxu0
  %v2170 = vadd.f32 %v2130, %v2169
  %v2171 = vpop.f32.mrb[0].mxu0
  %v2172 = vpop.f32.mrb[0].mxu0
  %v2173 = vpop.f32.mrb[0].mxu0
  %2174 = vdwg.mxu0
  %2175 = vmatprep.subr.bf16.mxu0 0
  %2176 = vmatpush1.bf16.msra.mxu0 %v1511
  %2177 = vmatprep.subr.bf16.mxu0 0
  %2178 = vmatpush1.bf16.msra.mxu0 %v1512
  %2179 = vmatprep.subr.bf16.mxu0 0
  %2180 = vmatpush1.bf16.msra.mxu0 %v1513
  %2181 = vmatprep.subr.bf16.mxu0 0
  %2182 = vmatpush1.bf16.msra.mxu0 %v1514
  %2183 = vmatprep.subr.bf16.mxu0 0
  %2184 = vmatpush1.bf16.msra.mxu0 %v1515
  %2185 = vmatprep.subr.bf16.mxu0 0
  %2186 = vmatpush1.bf16.msra.mxu0 %v1516
  %2187 = vmatprep.subr.bf16.mxu0 0
  %2188 = vmatpush1.bf16.msra.mxu0 %v1517
  %2189 = vmatprep.subr.bf16.mxu0 0
  %2190 = vmatpush1.bf16.msra.mxu0 %v1518
  %2191 = vmatprep.subr.bf16.mxu0 0
  %2192 = vmatpush1.bf16.msra.mxu0 %v1519
  %2193 = vmatprep.subr.bf16.mxu0 0
  %2194 = vmatpush1.bf16.msra.mxu0 %v1520
  %2195 = vmatprep.subr.bf16.mxu0 0
  %2196 = vmatpush1.bf16.msra.mxu0 %v1521
  %2197 = vmatprep.subr.bf16.mxu0 0
  %2198 = vmatpush1.bf16.msra.mxu0 %v1522
  %2199 = vmatprep.subr.bf16.mxu0 0
  %2200 = vmatpush1.bf16.msra.mxu0 %v1523
  %2201 = vmatprep.subr.bf16.mxu0 0
  %2202 = vmatpush1.bf16.msra.mxu0 %v1524
  %2203 = vmatprep.subr.bf16.mxu0 0
  %2204 = vmatpush1.bf16.msra.mxu0 %v1525
  %2205 = vmatprep.subr.bf16.mxu0 0
  %2206 = vmatpush1.bf16.msra.mxu0 %v1526
  %2207 = vmatprep.mubr.bf16.mxu0 %v508
  %2208 = vmatmul.mubr.bf16.gmra.mrb[0].mxu0 %v507
  %v2209 = vpop.f32.mrb[0].mxu0
  %v2210 = vadd.f32 %v2170, %v2209
  %v2211 = vpop.f32.mrb[0].mxu0
  %v2212 = vpop.f32.mrb[0].mxu0
  %v2213 = vpop.f32.mrb[0].mxu0
  %2214 = vdwg.mxu0
  %2215 = vmatprep.subr.bf16.mxu0 0
  %2216 = vmatpush1.bf16.msra.mxu0 %v1527
  %2217 = vmatprep.subr.bf16.mxu0 0
  %2218 = vmatpush1.bf16.msra.mxu0 %v1528
  %2219 = vmatprep.subr.bf16.mxu0 0
  %2220 = vmatpush1.bf16.msra.mxu0 %v1529
  %2221 = vmatprep.subr.bf16.mxu0 0
  %2222 = vmatpush1.bf16.msra.mxu0 %v1530
  %2223 = vmatprep.subr.bf16.mxu0 0
  %2224 = vmatpush1.bf16.msra.mxu0 %v1531
  %2225 = vmatprep.subr.bf16.mxu0 0
  %2226 = vmatpush1.bf16.msra.mxu0 %v1532
  %2227 = vmatprep.subr.bf16.mxu0 0
  %2228 = vmatpush1.bf16.msra.mxu0 %v1533
  %2229 = vmatprep.subr.bf16.mxu0 0
  %2230 = vmatpush1.bf16.msra.mxu0 %v1534
  %2231 = vmatprep.subr.bf16.mxu0 0
  %2232 = vmatpush1.bf16.msra.mxu0 0
  %2233 = vmatprep.subr.bf16.mxu0 0
  %2234 = vmatpush1.bf16.msra.mxu0 0
  %2235 = vmatprep.subr.bf16.mxu0 0
  %2236 = vmatpush1.bf16.msra.mxu0 0
  %2237 = vmatprep.subr.bf16.mxu0 0
  %2238 = vmatpush1.bf16.msra.mxu0 0
  %2239 = vmatprep.subr.bf16.mxu0 0
  %2240 = vmatpush1.bf16.msra.mxu0 0
  %2241 = vmatprep.subr.bf16.mxu0 0
  %2242 = vmatpush1.bf16.msra.mxu0 0
  %2243 = vmatprep.subr.bf16.mxu0 0
  %2244 = vmatpush1.bf16.msra.mxu0 0
  %2245 = vmatprep.subr.bf16.mxu0 0
  %2246 = vmatpush1.bf16.msra.mxu0 0
  %2247 = vmatprep.mubr.bf16.mxu0 0
  %2248 = vmatmul.mubr.bf16.gmra.mrb[0].mxu0 %v509
  %v2249 = vpop.f32.mrb[0].mxu0
  %v2250 = vadd.f32 %v2210, %v2249
  %v2251 = vpop.f32.mrb[0].mxu0
  %v2252 = vpop.f32.mrb[0].mxu0
  %v2253 = vpop.f32.mrb[0].mxu0
  %2254 = vdwg.mxu0
  %v2255 = vmax.f32 %v2250, 0.0
  %v2256 = vpack.c.bf16 %v2255, %v2255
  %v2257 = vld [vmem:[%s3] sm:$0xf]
  %v2258 = vld [vmem:[%s3 + $0x4] sm:$0xf]
  %v2259 = vld [vmem:[%s3 + $0x8] sm:$0xf]
  %v2260 = vld [vmem:[%s3 + $0xc] sm:$0xf]
  %v2261 = vld [vmem:[%s3 + $0x10] sm:$0xf]
  %v2262 = vld [vmem:[%s3 + $0x14] sm:$0xf]
  %v2263 = vld [vmem:[%s3 + $0x18] sm:$0xf]
  %v2264 = vld [vmem:[%s3 + $0x1c] sm:$0xf]
  %v2265 = vld [vmem:[%s3 + $0x20] sm:$0xf]
  %v2266 = vld [vmem:[%s3 + $0x24] sm:$0xf]
  %v2267 = vld [vmem:[%s3 + $0x28] sm:$0xf]
  %v2268 = vld [vmem:[%s3 + $0x2c] sm:$0xf]
  %v2269 = vld [vmem:[%s3 + $0x30] sm:$0xf]
  %v2270 = vld [vmem:[%s3 + $0x34] sm:$0xf]
  %v2271 = vld [vmem:[%s3 + $0x38] sm:$0xf]
  %v2272 = vld [vmem:[%s3 + $0x3c] sm:$0xf]
  %v2273 = vld [vmem:[%s4] sm:$0x1]
  %v2275 = vlaneseq
  %v2276 = vshrl.u32 %v2275, 7
  %v2277 = vsub.s32 0, %v2276
  %v2278 = vrot.slane %v2273, %v2277
  %v2296 = vunpack.c.l.b16 %v2257
  %v2297 = vunpack.c.l.b16 %v2258
  %v2298 = vunpack.c.l.b16 %v2259
  %v2299 = vunpack.c.l.b16 %v2260
  %v2300 = vunpack.c.l.b16 %v2261
  %v2301 = vunpack.c.l.b16 %v2262
  %v2302 = vunpack.c.l.b16 %v2263
  %v2303 = vunpack.c.l.b16 %v2264
  %v2304 = vunpack.c.l.b16 %v2265
  %v2305 = vunpack.c.l.b16 %v2266
  %v2306 = vunpack.c.l.b16 %v2267
  %v2307 = vunpack.c.l.b16 %v2268
  %v2308 = vunpack.c.l.b16 %v2269
  %v2309 = vunpack.c.l.b16 %v2270
  %v2310 = vunpack.c.l.b16 %v2271
  %v2311 = vunpack.c.l.b16 %v2272
  %v2312 = vpack.c.b16 %v2297, %v2296
  %v2313 = vpack.c.b16 %v2299, %v2298
  %v2314 = vpack.c.b16 %v2301, %v2300
  %v2315 = vpack.c.b16 %v2303, %v2302
  %v2316 = vpack.c.b16 %v2305, %v2304
  %v2317 = vpack.c.b16 %v2307, %v2306
  %v2318 = vpack.c.b16 %v2309, %v2308
  %v2319 = vpack.c.b16 %v2311, %v2310
  %2328 = vmatprep.subr.bf16.mxu0 0
  %2329 = vmatpush1.bf16.msra.mxu0 %v2312
  %2330 = vmatprep.subr.bf16.mxu0 0
  %2331 = vmatpush1.bf16.msra.mxu0 %v2313
  %2332 = vmatprep.subr.bf16.mxu0 0
  %2333 = vmatpush1.bf16.msra.mxu0 %v2314
  %2334 = vmatprep.subr.bf16.mxu0 0
  %2335 = vmatpush1.bf16.msra.mxu0 %v2315
  %2336 = vmatprep.subr.bf16.mxu0 0
  %2337 = vmatpush1.bf16.msra.mxu0 %v2316
  %2338 = vmatprep.subr.bf16.mxu0 0
  %2339 = vmatpush1.bf16.msra.mxu0 %v2317
  %2340 = vmatprep.subr.bf16.mxu0 0
  %2341 = vmatpush1.bf16.msra.mxu0 %v2318
  %2342 = vmatprep.subr.bf16.mxu0 0
  %2343 = vmatpush1.bf16.msra.mxu0 %v2319
  %2344 = vmatprep.subr.bf16.mxu0 0
  %2345 = vmatpush1.bf16.msra.mxu0 0
  %2346 = vmatprep.subr.bf16.mxu0 0
  %2347 = vmatpush1.bf16.msra.mxu0 0
  %2348 = vmatprep.subr.bf16.mxu0 0
  %2349 = vmatpush1.bf16.msra.mxu0 0
  %2350 = vmatprep.subr.bf16.mxu0 0
  %2351 = vmatpush1.bf16.msra.mxu0 0
  %2352 = vmatprep.subr.bf16.mxu0 0
  %2353 = vmatpush1.bf16.msra.mxu0 0
  %2354 = vmatprep.subr.bf16.mxu0 0
  %2355 = vmatpush1.bf16.msra.mxu0 0
  %2356 = vmatprep.subr.bf16.mxu0 0
  %2357 = vmatpush1.bf16.msra.mxu0 0
  %2358 = vmatprep.subr.bf16.mxu0 0
  %2359 = vmatpush1.bf16.msra.mxu0 0
  %2360 = vmatprep.mubr.bf16.mxu0 0
  %2361 = vmatmul.mubr.bf16.gmra.mrb[0].mxu0 %v2256
  %v2362 = vpop.f32.mrb[0].mxu0
  %v2363 = vadd.f32 %v2278, %v2362
  %v2364 = vpop.f32.mrb[0].mxu0
  %v2365 = vpop.f32.mrb[0].mxu0
  %v2366 = vpop.f32.mrb[0].mxu0
  %2367 = vdwg.mxu0
  %v2368 = vmax.f32 %v2363, 0.0
  %v2369 = vpack.c.bf16 %v2368, %v2368
  %v2370 = vld [vmem:[%s5] sm:$0xf]
  %v2371 = vld [vmem:[%s5 + $0x4] sm:$0xf]
  %v2372 = vld [vmem:[%s5 + $0x8] sm:$0xf]
  %v2373 = vld [vmem:[%s5 + $0xc] sm:$0xf]
  %v2374 = vld [vmem:[%s5 + $0x10] sm:$0xf]
  %v2375 = vld [vmem:[%s5 + $0x14] sm:$0xf]
  %v2376 = vld [vmem:[%s5 + $0x18] sm:$0xf]
  %v2377 = vld [vmem:[%s5 + $0x1c] sm:$0xf]
  %v2378 = vld [vmem:[%s5 + $0x20] sm:$0xf]
  %v2379 = vld [vmem:[%s5 + $0x24] sm:$0xf]
  %v2380 = vld [vmem:[%s5 + $0x28] sm:$0xf]
  %v2381 = vld [vmem:[%s5 + $0x2c] sm:$0xf]
  %v2382 = vld [vmem:[%s5 + $0x30] sm:$0xf]
  %v2383 = vld [vmem:[%s5 + $0x34] sm:$0xf]
  %v2384 = vld [vmem:[%s5 + $0x38] sm:$0xf]
  %v2385 = vld [vmem:[%s5 + $0x3c] sm:$0xf]
  %v2386 = vld [vmem:[%s6] sm:$0x1]
  %v2388 = vlaneseq
  %v2389 = vshrl.u32 %v2388, 7
  %v2390 = vsub.s32 0, %v2389
  %v2391 = vrot.slane %v2386, %v2390
  %v2409 = vunpack.c.l.b16 %v2370
  %v2410 = vunpack.c.l.b16 %v2371
  %v2411 = vunpack.c.l.b16 %v2372
  %v2412 = vunpack.c.l.b16 %v2373
  %v2413 = vunpack.c.l.b16 %v2374
  %v2414 = vunpack.c.l.b16 %v2375
  %v2415 = vunpack.c.l.b16 %v2376
  %v2416 = vunpack.c.l.b16 %v2377
  %v2417 = vunpack.c.l.b16 %v2378
  %v2418 = vunpack.c.l.b16 %v2379
  %v2419 = vunpack.c.l.b16 %v2380
  %v2420 = vunpack.c.l.b16 %v2381
  %v2421 = vunpack.c.l.b16 %v2382
  %v2422 = vunpack.c.l.b16 %v2383
  %v2423 = vunpack.c.l.b16 %v2384
  %v2424 = vunpack.c.l.b16 %v2385
  %v2425 = vpack.c.b16 %v2410, %v2409
  %v2426 = vpack.c.b16 %v2412, %v2411
  %v2427 = vpack.c.b16 %v2414, %v2413
  %v2428 = vpack.c.b16 %v2416, %v2415
  %v2429 = vpack.c.b16 %v2418, %v2417
  %v2430 = vpack.c.b16 %v2420, %v2419
  %v2431 = vpack.c.b16 %v2422, %v2421
  %v2432 = vpack.c.b16 %v2424, %v2423
  %2441 = vmatprep.subr.bf16.mxu0 0
  %2442 = vmatpush1.bf16.msra.mxu0 %v2425
  %2443 = vmatprep.subr.bf16.mxu0 0
  %2444 = vmatpush1.bf16.msra.mxu0 %v2426
  %2445 = vmatprep.subr.bf16.mxu0 0
  %2446 = vmatpush1.bf16.msra.mxu0 %v2427
  %2447 = vmatprep.subr.bf16.mxu0 0
  %2448 = vmatpush1.bf16.msra.mxu0 %v2428
  %2449 = vmatprep.subr.bf16.mxu0 0
  %2450 = vmatpush1.bf16.msra.mxu0 %v2429
  %2451 = vmatprep.subr.bf16.mxu0 0
  %2452 = vmatpush1.bf16.msra.mxu0 %v2430
  %2453 = vmatprep.subr.bf16.mxu0 0
  %2454 = vmatpush1.bf16.msra.mxu0 %v2431
  %2455 = vmatprep.subr.bf16.mxu0 0
  %2456 = vmatpush1.bf16.msra.mxu0 %v2432
  %2457 = vmatprep.subr.bf16.mxu0 0
  %2458 = vmatpush1.bf16.msra.mxu0 0
  %2459 = vmatprep.subr.bf16.mxu0 0
  %2460 = vmatpush1.bf16.msra.mxu0 0
  %2461 = vmatprep.subr.bf16.mxu0 0
  %2462 = vmatpush1.bf16.msra.mxu0 0
  %2463 = vmatprep.subr.bf16.mxu0 0
  %2464 = vmatpush1.bf16.msra.mxu0 0
  %2465 = vmatprep.subr.bf16.mxu0 0
  %2466 = vmatpush1.bf16.msra.mxu0 0
  %2467 = vmatprep.subr.bf16.mxu0 0
  %2468 = vmatpush1.bf16.msra.mxu0 0
  %2469 = vmatprep.subr.bf16.mxu0 0
  %2470 = vmatpush1.bf16.msra.mxu0 0
  %2471 = vmatprep.subr.bf16.mxu0 0
  %2472 = vmatpush1.bf16.msra.mxu0 0
  %2473 = vmatprep.mubr.bf16.mxu0 0
  %2474 = vmatmul.mubr.bf16.gmra.mrb[0].mxu0 %v2369
  %v2475 = vpop.f32.mrb[0].mxu0
  %v2476 = vadd.f32 %v2391, %v2475
  %v2477 = vpop.f32.mrb[0].mxu0
  %v2478 = vpop.f32.mrb[0].mxu0
  %v2479 = vpop.f32.mrb[0].mxu0
  %2480 = vdwg.mxu0
  %2481 = vst [vmem:[%s7] sm:$0xff] %v2476
  // Predicated region
  $region30: #{forward.5} parent=0 // pred_check
    _
  $region31: #{forward.5} parent=0 // pred_check_branch
    %2483 = sbr.rel (0) target = $region33
  $region32: #{forward.5} parent=0 // pred_region
    _
  $region33: #{forward.5} parent=0 // pred_fallthru
    _
  // Predicated region
  $region34: #{forward.5} parent=0 // pred_check
    _
  $region35: #{forward.5} parent=0 // pred_check_branch
    %2485 = sbr.rel (0) target = $region37
  $region36: #{forward.5} parent=0 // pred_region
    _
  $region37: #{forward.5} parent=0 // pred_fallthru
    _

</llo_original>
